<compile_context>
chip_gen: v6e
topology: v6e:2x2x1
jax: 0.10.0
libtpu: 0.0.40
codegen_flags: <defaults>
</compile_context>

<pallas_src>
import functools
import inspect

import numpy as np
import jax
import jax.numpy as jnp
from jax.experimental import pallas as pl
from jax.experimental.pallas import tpu as pltpu


def _round_up(a, m):
    return (a + m - 1) // m * m


# ---------------------------------------------------------------------------
# Kernel
# ---------------------------------------------------------------------------
def actc_kernel(x_ref, t1a_ref, t1b_ref, t1c_ref, b1_ref, t2_ref, b2_ref,
                o_ref, *, h, rows_pad):
    """B images per grid step.

    x_ref   : (B, Hp2, (W+6)*Cin) zero-padded input (4 rows top, 3 cols each
              side, bottom-padded to Hp2), (w, ci) flattened on lanes
    t1a/b/c : (k, (W+6)*Cin, (W+2)*7) per-branch row-shift Toeplitz weights
              (k = 3/5/7); columns w2=0 and w2=W+1 are zero (lane halo of cx)
    b1_ref  : (3, (W+2)*7)  per-branch bias tiled over w, zero in halo cols
    t2_ref  : (3, 3, (W+2)*7, W*3) final 3x3 conv: [branch, row-shift] Toeplitz
    b2_ref  : (1, W*3)
    o_ref   : (B, hrows, W*3) output, (w, co) on lanes; hrows = round_up(H, 8)
    """
    B, _, k1 = x_ref.shape
    n1 = t1a_ref.shape[-1]            # (W+2)*7
    hrows = o_ref.shape[1]
    n2 = o_ref.shape[-1]              # W*3
    m1 = B * rows_pad
    m2 = B * hrows

    x = x_ref[...].astype(jnp.float32)

    # Branch activations, computed once on the padded view.  All three map
    # 0 -> 0, so activating the zero padding is exact.
    a1 = jnp.maximum(x, 0.0)                          # relu(x)
    a2 = x / (1.0 + jnp.exp(-x))                      # silu(x) = x * sigmoid(x)
    t = jnp.exp(jnp.minimum(x, 20.0))                 # clamp = large-x guard
    g = t * (t + 2.0)
    a3 = x * g / (g + 2.0)                            # mish(x) = x*tanh(softplus(x))

    # (rows_pad, 1) 0/1 mask: valid conv rows are 1..h within each image's
    # rows_pad slab; rows 0, h+1 and the alignment-pad rows must be zero so the
    # final conv sees a proper zero row-halo.
    ri = jax.lax.broadcasted_iota(jnp.int32, (rows_pad, 1), 0)
    rmask = ((ri >= 1) & (ri <= h)).astype(jnp.float32).reshape(1, rows_pad, 1)

    def branch_conv(a, t_ref, bias, off):
        """One fused branch conv: k row-shift matmuls with K = (W+6)*Cin."""
        k = t_ref.shape[0]
        acc = jnp.zeros((m1, n1), jnp.float32)
        for r in range(k):                            # static unroll; sublane slices
            lhs = a[:, r + off:r + off + rows_pad, :].reshape(m1, k1)
            acc = acc + jnp.dot(lhs, t_ref[r], preferred_element_type=jnp.float32)
        acc = acc + bias                              # bias already zero in w-halo cols
        return acc.reshape(B, rows_pad, n1) * rmask   # zero the row halo

    c1 = branch_conv(a1, t1a_ref, b1_ref[0:1, :], 2)  # 3x3 conv, pad 1
    c2 = branch_conv(a2, t1b_ref, b1_ref[1:2, :], 1)  # 5x5 conv, pad 2
    c3 = branch_conv(a3, t1c_ref, b1_ref[2:3, :], 0)  # 7x7 conv, pad 3

    # Final 3x3 conv: 3 row shifts x 3 branch K-blocks (no channel concat).
    acc = jnp.zeros((m2, n2), jnp.float32)
    for r in range(3):
        for bi, c in enumerate((c1, c2, c3)):
            lhs = c[:, r:r + hrows, :].reshape(m2, n1)
            acc = acc + jnp.dot(lhs, t2_ref[bi, r], preferred_element_type=jnp.float32)
    acc = acc + b2_ref[...]
    o_ref[...] = acc.reshape(B, hrows, n2).astype(o_ref.dtype)


# ---------------------------------------------------------------------------
# Grid-invariant weight preparation (built ONCE per (params, W), off hot path)
# ---------------------------------------------------------------------------
def _branch_toeplitz(w_hwio, W):
    """(k, (W+6)*Cin, (W+2)*Cout) row-shift Toeplitz for one branch conv."""
    k, _, cin, cout = w_hwio.shape
    off = 3 - (k - 1) // 2
    Wp = W + 6
    shifts = jnp.stack([jnp.eye(Wp, W, k=-(kw + off), dtype=jnp.float32)
                        for kw in range(k)])                       # (k, Wp, W)
    T = jnp.einsum('xuw,hxic->huiwc', shifts, w_hwio.astype(jnp.float32))
    T = jnp.pad(T, ((0, 0), (0, 0), (0, 0), (1, 1), (0, 0)))       # zero w2 halo cols
    return T.reshape(k, Wp * cin, (W + 2) * cout)


def _final_toeplitz(wf, W):
    """(3 branches, 3 row-shifts, (W+2)*7, W*3) for the final 3x3 conv (pad 1)."""
    shifts = jnp.stack([jnp.eye(W + 2, W, k=-kw, dtype=jnp.float32)
                        for kw in range(3)])                       # (3, W+2, W)
    wfb = wf.astype(jnp.float32).reshape(3, 3, 3, 7, 3)            # (kh,kw,branch,ci,co)
    T = jnp.einsum('xuw,hxbic->bhuiwc', shifts, wfb)               # (b,kh,W+2,7,W,3)
    return T.reshape(3, 3, (W + 2) * 7, W * 3)


def _tile_bias(b, W):
    """((W+2)*Cout,) bias row with zeros in the 1-col halo."""
    cout = b.shape[0]
    return jnp.pad(jnp.tile(b.astype(jnp.float32), (W,)), (cout, cout))


def prepare_actc(params, W):
    """Build the Toeplitz weights once per (params, W); reuse across forwards."""
    w1, b1, w2, b2, w3, b3, wf, bf = params
    return dict(
        t1a=_branch_toeplitz(w1, W),                               # (3, Wp*Cin, (W+2)*7)
        t1b=_branch_toeplitz(w2, W),                               # (5, ...)
        t1c=_branch_toeplitz(w3, W),                               # (7, ...)
        b1=jnp.stack([_tile_bias(b1, W), _tile_bias(b2, W), _tile_bias(b3, W)]),
        t2=_final_toeplitz(wf, W),                                 # (3, 3, (W+2)*7, W*3)
        b2=jnp.tile(bf.astype(jnp.float32), (W,)).reshape(1, W * 3),
    )


# ---------------------------------------------------------------------------
# Forward wrapper
# ---------------------------------------------------------------------------
@functools.lru_cache(maxsize=1)
def _vmem_limit_bytes():
    cap = 0
    try:
        cap = int(getattr(pltpu.get_tpu_info(), "vmem_capacity_bytes", 0))
    except Exception:
        cap = 0
    if cap <= 0:
        cap = 64 << 20                 # conservative default: v7x per-TC VMEM
    return min(cap * 3 // 4, 96 << 20)


_HAS_PIPELINE_MODE = "pipeline_mode" in inspect.signature(pl.BlockSpec).parameters


def _const_weight_spec(arr):
    """Whole-array block, constant index map, single-buffered when supported
    (grid-invariant weights; double-buffering only wastes VMEM)."""
    nd = arr.ndim
    kw = {"pipeline_mode": pl.Buffered(1)} if _HAS_PIPELINE_MODE else {}
    return pl.BlockSpec(arr.shape, lambda *_: (0,) * nd, **kw)


def _pick_batch_block(n, rows_pad):
    """Images folded into one matmul M.  Target M >= 256 (fills an MXU LHS
    pass on v6e/v7x) but keep >= 2 grid steps so both v7x cores stay busy."""
    b = max(1, min(n, max(1, 256 // rows_pad)))
    while b > 1 and (n + b - 1) // b < 2:
        b -= 1
    return b


def actc_forward(x_nchw, prepared):
    """x_nchw: (N, Cin, H, W) f32; prepared: prepare_actc(...). -> (N, 3, H, W)."""
    N, Cin, H, W = x_nchw.shape
    Wp = W + 6
    hrows = _round_up(H, 8)             # stage-2 / output rows per image
    rows_pad = hrows + 8                # stage-1 (cx) rows per image, 8-aligned
    Hp2 = _round_up(rows_pad + 6, 8)    # padded input rows (max row-shift 6)

    B = _pick_batch_block(N, rows_pad)
    steps = (N + B - 1) // B
    Np = steps * B

    # NCHW -> NHWC -> zero-pad (4 rows top, 3 cols each side) -> (w, ci) lanes.
    x = jnp.transpose(x_nchw, (0, 2, 3, 1))
    xp = jnp.pad(x, ((0, Np - N), (4, Hp2 - 4 - H), (3, 3), (0, 0)))
    xpf = xp.reshape(Np, Hp2, Wp * Cin)

    t1a, t1b, t1c = prepared['t1a'], prepared['t1b'], prepared['t1c']
    b1, t2, b2 = prepared['b1'], prepared['t2'], prepared['b2']

    out = pl.pallas_call(
        functools.partial(actc_kernel, h=H, rows_pad=rows_pad),
        out_shape=jax.ShapeDtypeStruct((Np, hrows, W * 3), x_nchw.dtype),
        grid_spec=pltpu.PrefetchScalarGridSpec(
            num_scalar_prefetch=0,
            grid=(steps,),
            in_specs=[
                pl.BlockSpec((B, Hp2, Wp * Cin), lambda n: (n, 0, 0)),
                _const_weight_spec(t1a),
                _const_weight_spec(t1b),
                _const_weight_spec(t1c),
                _const_weight_spec(b1),
                _const_weight_spec(t2),
                _const_weight_spec(b2),
            ],
            out_specs=pl.BlockSpec((B, hrows, W * 3), lambda n: (n, 0, 0)),
        ),
        compiler_params=pltpu.CompilerParams(
            dimension_semantics=("parallel",),        # independent batch blocks
            vmem_limit_bytes=_vmem_limit_bytes()),
    )(xpf, t1a, t1b, t1c, b1, t2, b2)

    # Layout plumbing only: (Np, hrows, W*3) -> (N, 3, H, W).
    out = out[:N, :H, :].reshape(N, H, W, 3)
    return jnp.transpose(out, (0, 3, 1, 2))


# ---------------------------------------------------------------------------
# Pure-JAX reference (matches the PyTorch module semantics) + init
# ---------------------------------------------------------------------------
def ref_forward(x_nchw, params):
    w1, b1, w2, b2, w3, b3, wf, bf = params
    x = jnp.transpose(x_nchw, (0, 2, 3, 1))
    x1 = jax.nn.relu(x)
    x3 = jax.nn.sigmoid(x) * x
    x5 = jnp.tanh(jax.nn.softplus(x)) * x

    def conv(inp, w, b, p):
        out = jax.lax.conv_general_dilated(
            inp, w, window_strides=(1, 1), padding=[(p, p), (p, p)],
            dimension_numbers=('NHWC', 'HWIO', 'NHWC'))
        return out + b

    c1 = conv(x1, w1, b1, 1)
    c2 = conv(x3, w2, b2, 2)
    c3 = conv(x5, w3, b3, 3)
    cx = jnp.concatenate([c1, c2, c3], axis=-1)
    out = conv(cx, wf, bf, 1)
    return jnp.transpose(out, (0, 3, 1, 2))


def init_params(key, in_channels):
    def init_conv(k_rng, ksz, cin, cout):
        kw, kb = jax.random.split(k_rng)
        bound = 1.0 / np.sqrt(cin * ksz * ksz)
        w = jax.random.uniform(kw, (ksz, ksz, cin, cout), jnp.float32, -bound, bound)
        b = jax.random.uniform(kb, (cout,), jnp.float32, -bound, bound)
        return w, b

    k1, k2, k3, k4 = jax.random.split(key, 4)
    w1, b1 = init_conv(k1, 3, in_channels, 7)
    w2, b2 = init_conv(k2, 5, in_channels, 7)
    w3, b3 = init_conv(k3, 7, in_channels, 7)
    wf, bf = init_conv(k4, 3, 21, 3)
    return (w1, b1, w2, b2, w3, b3, wf, bf)


if __name__ == "__main__":
    key = jax.random.PRNGKey(0)
    k_param, k_x = jax.random.split(key)

    N, Cin, H, W = 2, 4, 16, 16
    params = init_params(k_param, Cin)
    x = jax.random.normal(k_x, (N, Cin, H, W), jnp.float32)

    # Toeplitz weight build is hoisted off the hot path: once per (params, W).
    prepared = jax.block_until_ready(prepare_actc(params, W))

    fwd = jax.jit(actc_forward)
    out = jax.block_until_ready(fwd(x, prepared))

    ref = jax.block_until_ready(ref_forward(x, params))
    np.testing.assert_allclose(np.asarray(out), np.asarray(ref),
                               rtol=2e-4, atol=2e-4)
    print("KERNEL_OK")
</pallas_src>

<mosaic_0001>
module attributes {stable_mosaic.version = 11 : i64} {
  func.func @actc_kernel(%arg0: i32, %arg1: memref<1x32x88xf32, #tpu.memory_space<vmem>>, %arg2: memref<3x88x126xf32, #tpu.memory_space<vmem>>, %arg3: memref<5x88x126xf32, #tpu.memory_space<vmem>>, %arg4: memref<7x88x126xf32, #tpu.memory_space<vmem>>, %arg5: memref<3x126xf32, #tpu.memory_space<vmem>>, %arg6: memref<3x3x126x48xf32, #tpu.memory_space<vmem>>, %arg7: memref<1x48xf32, #tpu.memory_space<vmem>>, %arg8: memref<1x16x48xf32, #tpu.memory_space<vmem>>) attributes {dimension_semantics = [#tpu.dimension_semantics<parallel>], iteration_bounds = array<i64: 2>, scalar_prefetch = 0 : i64, scratch_operands = 0 : i64, tpu.core_type = #tpu.core_type<tc>, window_params = [{transform_indices = @transform_0, window_bounds = array<i64: 1, 32, 88>}, {pipeline_mode = #tpu.pipeline_mode<synchronous>, transform_indices = @transform_1, window_bounds = array<i64: 3, 88, 126>}, {pipeline_mode = #tpu.pipeline_mode<synchronous>, transform_indices = @transform_2, window_bounds = array<i64: 5, 88, 126>}, {pipeline_mode = #tpu.pipeline_mode<synchronous>, transform_indices = @transform_3, window_bounds = array<i64: 7, 88, 126>}, {pipeline_mode = #tpu.pipeline_mode<synchronous>, transform_indices = @transform_4, window_bounds = array<i64: 3, 126>}, {pipeline_mode = #tpu.pipeline_mode<synchronous>, transform_indices = @transform_5, window_bounds = array<i64: 3, 3, 126, 48>}, {pipeline_mode = #tpu.pipeline_mode<synchronous>, transform_indices = @transform_6, window_bounds = array<i64: 1, 48>}, {transform_indices = @transform_7, window_bounds = array<i64: 1, 16, 48>}]} {
    %c0 = arith.constant 0 : index
    %c0_0 = arith.constant 0 : index
    %c0_1 = arith.constant 0 : index
    %0 = vector.load %arg1[%c0, %c0_0, %c0_1] : memref<1x32x88xf32, #tpu.memory_space<vmem>>, vector<1x32x88xf32>
    %cst = arith.constant 0.000000e+00 : f32
    %1 = vector.broadcast %cst : f32 to vector<1x32x88xf32>
    %2 = arith.maximumf %0, %1 : vector<1x32x88xf32>
    %cst_2 = arith.constant 0.000000e+00 : f32
    %3 = vector.broadcast %cst_2 : f32 to vector<1x32x88xf32>
    %4 = arith.subf %3, %0 : vector<1x32x88xf32>
    %5 = math.exp %4 : vector<1x32x88xf32>
    %cst_3 = arith.constant 1.000000e+00 : f32
    %6 = vector.broadcast %cst_3 : f32 to vector<1x32x88xf32>
    %7 = arith.addf %6, %5 : vector<1x32x88xf32>
    %8 = arith.divf %0, %7 : vector<1x32x88xf32>
    %cst_4 = arith.constant 2.000000e+01 : f32
    %9 = vector.broadcast %cst_4 : f32 to vector<1x32x88xf32>
    %10 = arith.minimumf %0, %9 : vector<1x32x88xf32>
    %11 = math.exp %10 : vector<1x32x88xf32>
    %cst_5 = arith.constant 2.000000e+00 : f32
    %12 = vector.broadcast %cst_5 : f32 to vector<1x32x88xf32>
    %13 = arith.addf %11, %12 : vector<1x32x88xf32>
    %14 = arith.mulf %11, %13 : vector<1x32x88xf32>
    %15 = arith.mulf %0, %14 : vector<1x32x88xf32>
    %cst_6 = arith.constant 2.000000e+00 : f32
    %16 = vector.broadcast %cst_6 : f32 to vector<1x32x88xf32>
    %17 = arith.addf %14, %16 : vector<1x32x88xf32>
    %18 = arith.divf %15, %17 : vector<1x32x88xf32>
    %19 = tpu.iota {dimensions = array<i32: 0>} : vector<24x1xi32>
    %c1_i32 = arith.constant 1 : i32
    %20 = vector.broadcast %c1_i32 : i32 to vector<24x1xi32>
    %21 = arith.cmpi sge, %19, %20 : vector<24x1xi32>
    %c16_i32 = arith.constant 16 : i32
    %22 = vector.broadcast %c16_i32 : i32 to vector<24x1xi32>
    %23 = arith.cmpi sle, %19, %22 : vector<24x1xi32>
    %24 = arith.andi %21, %23 : vector<24x1xi1>
    %25 = arith.extui %24 : vector<24x1xi1> to vector<24x1xi32>
    %26 = arith.sitofp %25 : vector<24x1xi32> to vector<24x1xf32>
    %27 = vector.shape_cast %26 : vector<24x1xf32> to vector<1x24x1xf32>
    %c0_7 = arith.constant 0 : index
    %c0_8 = arith.constant 0 : index
    %28 = vector.load %arg5[%c0_7, %c0_8] : memref<3x126xf32, #tpu.memory_space<vmem>>, vector<1x126xf32>
    %cst_9 = arith.constant 0.000000e+00 : f32
    %29 = vector.broadcast %cst_9 : f32 to vector<24x126xf32>
    %30 = vector.extract_strided_slice %2 {offsets = [0, 2, 0], sizes = [1, 24, 88], strides = [1, 1, 1]} : vector<1x32x88xf32> to vector<1x24x88xf32>
    %31 = vector.shape_cast %30 : vector<1x24x88xf32> to vector<24x88xf32>
    %c0_10 = arith.constant 0 : index
    %c0_11 = arith.constant 0 : index
    %c0_12 = arith.constant 0 : index
    %32 = vector.load %arg2[%c0_10, %c0_11, %c0_12] : memref<3x88x126xf32, #tpu.memory_space<vmem>>, vector<1x88x126xf32>
    %33 = vector.shape_cast %32 : vector<1x88x126xf32> to vector<88x126xf32>
    %cst_13 = arith.constant dense<0.000000e+00> : vector<24x126xf32>
    %34 = tpu.matmul %31, %33, %cst_13 {dimension_numbers = #tpu.dot_dimension_numbers<[1], [0], [0], [1], [0, 0, 1, 1], [], []>} : vector<24x88xf32>, vector<88x126xf32>, vector<24x126xf32> -> vector<24x126xf32>
    %35 = arith.addf %29, %34 : vector<24x126xf32>
    %36 = vector.extract_strided_slice %2 {offsets = [0, 3, 0], sizes = [1, 24, 88], strides = [1, 1, 1]} : vector<1x32x88xf32> to vector<1x24x88xf32>
    %37 = vector.shape_cast %36 : vector<1x24x88xf32> to vector<24x88xf32>
    %c1 = arith.constant 1 : index
    %c0_14 = arith.constant 0 : index
    %c0_15 = arith.constant 0 : index
    %38 = vector.load %arg2[%c1, %c0_14, %c0_15] : memref<3x88x126xf32, #tpu.memory_space<vmem>>, vector<1x88x126xf32>
    %39 = vector.shape_cast %38 : vector<1x88x126xf32> to vector<88x126xf32>
    %cst_16 = arith.constant dense<0.000000e+00> : vector<24x126xf32>
    %40 = tpu.matmul %37, %39, %cst_16 {dimension_numbers = #tpu.dot_dimension_numbers<[1], [0], [0], [1], [0, 0, 1, 1], [], []>} : vector<24x88xf32>, vector<88x126xf32>, vector<24x126xf32> -> vector<24x126xf32>
    %41 = arith.addf %35, %40 : vector<24x126xf32>
    %42 = vector.extract_strided_slice %2 {offsets = [0, 4, 0], sizes = [1, 24, 88], strides = [1, 1, 1]} : vector<1x32x88xf32> to vector<1x24x88xf32>
    %43 = vector.shape_cast %42 : vector<1x24x88xf32> to vector<24x88xf32>
    %c2 = arith.constant 2 : index
    %c0_17 = arith.constant 0 : index
    %c0_18 = arith.constant 0 : index
    %44 = vector.load %arg2[%c2, %c0_17, %c0_18] : memref<3x88x126xf32, #tpu.memory_space<vmem>>, vector<1x88x126xf32>
    %45 = vector.shape_cast %44 : vector<1x88x126xf32> to vector<88x126xf32>
    %cst_19 = arith.constant dense<0.000000e+00> : vector<24x126xf32>
    %46 = tpu.matmul %43, %45, %cst_19 {dimension_numbers = #tpu.dot_dimension_numbers<[1], [0], [0], [1], [0, 0, 1, 1], [], []>} : vector<24x88xf32>, vector<88x126xf32>, vector<24x126xf32> -> vector<24x126xf32>
    %47 = arith.addf %41, %46 : vector<24x126xf32>
    %48 = vector.broadcast %28 : vector<1x126xf32> to vector<24x126xf32>
    %49 = arith.addf %47, %48 : vector<24x126xf32>
    %50 = vector.shape_cast %49 : vector<24x126xf32> to vector<1x24x126xf32>
    %51 = vector.broadcast %27 : vector<1x24x1xf32> to vector<1x24x126xf32>
    %52 = arith.mulf %50, %51 : vector<1x24x126xf32>
    %c1_20 = arith.constant 1 : index
    %c0_21 = arith.constant 0 : index
    %53 = vector.load %arg5[%c1_20, %c0_21] : memref<3x126xf32, #tpu.memory_space<vmem>>, vector<1x126xf32>
    %cst_22 = arith.constant 0.000000e+00 : f32
    %54 = vector.broadcast %cst_22 : f32 to vector<24x126xf32>
    %55 = vector.extract_strided_slice %8 {offsets = [0, 1, 0], sizes = [1, 24, 88], strides = [1, 1, 1]} : vector<1x32x88xf32> to vector<1x24x88xf32>
    %56 = vector.shape_cast %55 : vector<1x24x88xf32> to vector<24x88xf32>
    %c0_23 = arith.constant 0 : index
    %c0_24 = arith.constant 0 : index
    %c0_25 = arith.constant 0 : index
    %57 = vector.load %arg3[%c0_23, %c0_24, %c0_25] : memref<5x88x126xf32, #tpu.memory_space<vmem>>, vector<1x88x126xf32>
    %58 = vector.shape_cast %57 : vector<1x88x126xf32> to vector<88x126xf32>
    %cst_26 = arith.constant dense<0.000000e+00> : vector<24x126xf32>
    %59 = tpu.matmul %56, %58, %cst_26 {dimension_numbers = #tpu.dot_dimension_numbers<[1], [0], [0], [1], [0, 0, 1, 1], [], []>} : vector<24x88xf32>, vector<88x126xf32>, vector<24x126xf32> -> vector<24x126xf32>
    %60 = arith.addf %54, %59 : vector<24x126xf32>
    %61 = vector.extract_strided_slice %8 {offsets = [0, 2, 0], sizes = [1, 24, 88], strides = [1, 1, 1]} : vector<1x32x88xf32> to vector<1x24x88xf32>
    %62 = vector.shape_cast %61 : vector<1x24x88xf32> to vector<24x88xf32>
    %c1_27 = arith.constant 1 : index
    %c0_28 = arith.constant 0 : index
    %c0_29 = arith.constant 0 : index
    %63 = vector.load %arg3[%c1_27, %c0_28, %c0_29] : memref<5x88x126xf32, #tpu.memory_space<vmem>>, vector<1x88x126xf32>
    %64 = vector.shape_cast %63 : vector<1x88x126xf32> to vector<88x126xf32>
    %cst_30 = arith.constant dense<0.000000e+00> : vector<24x126xf32>
    %65 = tpu.matmul %62, %64, %cst_30 {dimension_numbers = #tpu.dot_dimension_numbers<[1], [0], [0], [1], [0, 0, 1, 1], [], []>} : vector<24x88xf32>, vector<88x126xf32>, vector<24x126xf32> -> vector<24x126xf32>
    %66 = arith.addf %60, %65 : vector<24x126xf32>
    %67 = vector.extract_strided_slice %8 {offsets = [0, 3, 0], sizes = [1, 24, 88], strides = [1, 1, 1]} : vector<1x32x88xf32> to vector<1x24x88xf32>
    %68 = vector.shape_cast %67 : vector<1x24x88xf32> to vector<24x88xf32>
    %c2_31 = arith.constant 2 : index
    %c0_32 = arith.constant 0 : index
    %c0_33 = arith.constant 0 : index
    %69 = vector.load %arg3[%c2_31, %c0_32, %c0_33] : memref<5x88x126xf32, #tpu.memory_space<vmem>>, vector<1x88x126xf32>
    %70 = vector.shape_cast %69 : vector<1x88x126xf32> to vector<88x126xf32>
    %cst_34 = arith.constant dense<0.000000e+00> : vector<24x126xf32>
    %71 = tpu.matmul %68, %70, %cst_34 {dimension_numbers = #tpu.dot_dimension_numbers<[1], [0], [0], [1], [0, 0, 1, 1], [], []>} : vector<24x88xf32>, vector<88x126xf32>, vector<24x126xf32> -> vector<24x126xf32>
    %72 = arith.addf %66, %71 : vector<24x126xf32>
    %73 = vector.extract_strided_slice %8 {offsets = [0, 4, 0], sizes = [1, 24, 88], strides = [1, 1, 1]} : vector<1x32x88xf32> to vector<1x24x88xf32>
    %74 = vector.shape_cast %73 : vector<1x24x88xf32> to vector<24x88xf32>
    %c3 = arith.constant 3 : index
    %c0_35 = arith.constant 0 : index
    %c0_36 = arith.constant 0 : index
    %75 = vector.load %arg3[%c3, %c0_35, %c0_36] : memref<5x88x126xf32, #tpu.memory_space<vmem>>, vector<1x88x126xf32>
    %76 = vector.shape_cast %75 : vector<1x88x126xf32> to vector<88x126xf32>
    %cst_37 = arith.constant dense<0.000000e+00> : vector<24x126xf32>
    %77 = tpu.matmul %74, %76, %cst_37 {dimension_numbers = #tpu.dot_dimension_numbers<[1], [0], [0], [1], [0, 0, 1, 1], [], []>} : vector<24x88xf32>, vector<88x126xf32>, vector<24x126xf32> -> vector<24x126xf32>
    %78 = arith.addf %72, %77 : vector<24x126xf32>
    %79 = vector.extract_strided_slice %8 {offsets = [0, 5, 0], sizes = [1, 24, 88], strides = [1, 1, 1]} : vector<1x32x88xf32> to vector<1x24x88xf32>
    %80 = vector.shape_cast %79 : vector<1x24x88xf32> to vector<24x88xf32>
    %c4 = arith.constant 4 : index
    %c0_38 = arith.constant 0 : index
    %c0_39 = arith.constant 0 : index
    %81 = vector.load %arg3[%c4, %c0_38, %c0_39] : memref<5x88x126xf32, #tpu.memory_space<vmem>>, vector<1x88x126xf32>
    %82 = vector.shape_cast %81 : vector<1x88x126xf32> to vector<88x126xf32>
    %cst_40 = arith.constant dense<0.000000e+00> : vector<24x126xf32>
    %83 = tpu.matmul %80, %82, %cst_40 {dimension_numbers = #tpu.dot_dimension_numbers<[1], [0], [0], [1], [0, 0, 1, 1], [], []>} : vector<24x88xf32>, vector<88x126xf32>, vector<24x126xf32> -> vector<24x126xf32>
    %84 = arith.addf %78, %83 : vector<24x126xf32>
    %85 = vector.broadcast %53 : vector<1x126xf32> to vector<24x126xf32>
    %86 = arith.addf %84, %85 : vector<24x126xf32>
    %87 = vector.shape_cast %86 : vector<24x126xf32> to vector<1x24x126xf32>
    %88 = vector.broadcast %27 : vector<1x24x1xf32> to vector<1x24x126xf32>
    %89 = arith.mulf %87, %88 : vector<1x24x126xf32>
    %c2_41 = arith.constant 2 : index
    %c0_42 = arith.constant 0 : index
    %90 = vector.load %arg5[%c2_41, %c0_42] : memref<3x126xf32, #tpu.memory_space<vmem>>, vector<1x126xf32>
    %cst_43 = arith.constant 0.000000e+00 : f32
    %91 = vector.broadcast %cst_43 : f32 to vector<24x126xf32>
    %92 = vector.extract_strided_slice %18 {offsets = [0, 0, 0], sizes = [1, 24, 88], strides = [1, 1, 1]} : vector<1x32x88xf32> to vector<1x24x88xf32>
    %93 = vector.shape_cast %92 : vector<1x24x88xf32> to vector<24x88xf32>
    %c0_44 = arith.constant 0 : index
    %c0_45 = arith.constant 0 : index
    %c0_46 = arith.constant 0 : index
    %94 = vector.load %arg4[%c0_44, %c0_45, %c0_46] : memref<7x88x126xf32, #tpu.memory_space<vmem>>, vector<1x88x126xf32>
    %95 = vector.shape_cast %94 : vector<1x88x126xf32> to vector<88x126xf32>
    %cst_47 = arith.constant dense<0.000000e+00> : vector<24x126xf32>
    %96 = tpu.matmul %93, %95, %cst_47 {dimension_numbers = #tpu.dot_dimension_numbers<[1], [0], [0], [1], [0, 0, 1, 1], [], []>} : vector<24x88xf32>, vector<88x126xf32>, vector<24x126xf32> -> vector<24x126xf32>
    %97 = arith.addf %91, %96 : vector<24x126xf32>
    %98 = vector.extract_strided_slice %18 {offsets = [0, 1, 0], sizes = [1, 24, 88], strides = [1, 1, 1]} : vector<1x32x88xf32> to vector<1x24x88xf32>
    %99 = vector.shape_cast %98 : vector<1x24x88xf32> to vector<24x88xf32>
    %c1_48 = arith.constant 1 : index
    %c0_49 = arith.constant 0 : index
    %c0_50 = arith.constant 0 : index
    %100 = vector.load %arg4[%c1_48, %c0_49, %c0_50] : memref<7x88x126xf32, #tpu.memory_space<vmem>>, vector<1x88x126xf32>
    %101 = vector.shape_cast %100 : vector<1x88x126xf32> to vector<88x126xf32>
    %cst_51 = arith.constant dense<0.000000e+00> : vector<24x126xf32>
    %102 = tpu.matmul %99, %101, %cst_51 {dimension_numbers = #tpu.dot_dimension_numbers<[1], [0], [0], [1], [0, 0, 1, 1], [], []>} : vector<24x88xf32>, vector<88x126xf32>, vector<24x126xf32> -> vector<24x126xf32>
    %103 = arith.addf %97, %102 : vector<24x126xf32>
    %104 = vector.extract_strided_slice %18 {offsets = [0, 2, 0], sizes = [1, 24, 88], strides = [1, 1, 1]} : vector<1x32x88xf32> to vector<1x24x88xf32>
    %105 = vector.shape_cast %104 : vector<1x24x88xf32> to vector<24x88xf32>
    %c2_52 = arith.constant 2 : index
    %c0_53 = arith.constant 0 : index
    %c0_54 = arith.constant 0 : index
    %106 = vector.load %arg4[%c2_52, %c0_53, %c0_54] : memref<7x88x126xf32, #tpu.memory_space<vmem>>, vector<1x88x126xf32>
    %107 = vector.shape_cast %106 : vector<1x88x126xf32> to vector<88x126xf32>
    %cst_55 = arith.constant dense<0.000000e+00> : vector<24x126xf32>
    %108 = tpu.matmul %105, %107, %cst_55 {dimension_numbers = #tpu.dot_dimension_numbers<[1], [0], [0], [1], [0, 0, 1, 1], [], []>} : vector<24x88xf32>, vector<88x126xf32>, vector<24x126xf32> -> vector<24x126xf32>
    %109 = arith.addf %103, %108 : vector<24x126xf32>
    %110 = vector.extract_strided_slice %18 {offsets = [0, 3, 0], sizes = [1, 24, 88], strides = [1, 1, 1]} : vector<1x32x88xf32> to vector<1x24x88xf32>
    %111 = vector.shape_cast %110 : vector<1x24x88xf32> to vector<24x88xf32>
    %c3_56 = arith.constant 3 : index
    %c0_57 = arith.constant 0 : index
    %c0_58 = arith.constant 0 : index
    %112 = vector.load %arg4[%c3_56, %c0_57, %c0_58] : memref<7x88x126xf32, #tpu.memory_space<vmem>>, vector<1x88x126xf32>
    %113 = vector.shape_cast %112 : vector<1x88x126xf32> to vector<88x126xf32>
    %cst_59 = arith.constant dense<0.000000e+00> : vector<24x126xf32>
    %114 = tpu.matmul %111, %113, %cst_59 {dimension_numbers = #tpu.dot_dimension_numbers<[1], [0], [0], [1], [0, 0, 1, 1], [], []>} : vector<24x88xf32>, vector<88x126xf32>, vector<24x126xf32> -> vector<24x126xf32>
    %115 = arith.addf %109, %114 : vector<24x126xf32>
    %116 = vector.extract_strided_slice %18 {offsets = [0, 4, 0], sizes = [1, 24, 88], strides = [1, 1, 1]} : vector<1x32x88xf32> to vector<1x24x88xf32>
    %117 = vector.shape_cast %116 : vector<1x24x88xf32> to vector<24x88xf32>
    %c4_60 = arith.constant 4 : index
    %c0_61 = arith.constant 0 : index
    %c0_62 = arith.constant 0 : index
    %118 = vector.load %arg4[%c4_60, %c0_61, %c0_62] : memref<7x88x126xf32, #tpu.memory_space<vmem>>, vector<1x88x126xf32>
    %119 = vector.shape_cast %118 : vector<1x88x126xf32> to vector<88x126xf32>
    %cst_63 = arith.constant dense<0.000000e+00> : vector<24x126xf32>
    %120 = tpu.matmul %117, %119, %cst_63 {dimension_numbers = #tpu.dot_dimension_numbers<[1], [0], [0], [1], [0, 0, 1, 1], [], []>} : vector<24x88xf32>, vector<88x126xf32>, vector<24x126xf32> -> vector<24x126xf32>
    %121 = arith.addf %115, %120 : vector<24x126xf32>
    %122 = vector.extract_strided_slice %18 {offsets = [0, 5, 0], sizes = [1, 24, 88], strides = [1, 1, 1]} : vector<1x32x88xf32> to vector<1x24x88xf32>
    %123 = vector.shape_cast %122 : vector<1x24x88xf32> to vector<24x88xf32>
    %c5 = arith.constant 5 : index
    %c0_64 = arith.constant 0 : index
    %c0_65 = arith.constant 0 : index
    %124 = vector.load %arg4[%c5, %c0_64, %c0_65] : memref<7x88x126xf32, #tpu.memory_space<vmem>>, vector<1x88x126xf32>
    %125 = vector.shape_cast %124 : vector<1x88x126xf32> to vector<88x126xf32>
    %cst_66 = arith.constant dense<0.000000e+00> : vector<24x126xf32>
    %126 = tpu.matmul %123, %125, %cst_66 {dimension_numbers = #tpu.dot_dimension_numbers<[1], [0], [0], [1], [0, 0, 1, 1], [], []>} : vector<24x88xf32>, vector<88x126xf32>, vector<24x126xf32> -> vector<24x126xf32>
    %127 = arith.addf %121, %126 : vector<24x126xf32>
    %128 = vector.extract_strided_slice %18 {offsets = [0, 6, 0], sizes = [1, 24, 88], strides = [1, 1, 1]} : vector<1x32x88xf32> to vector<1x24x88xf32>
    %129 = vector.shape_cast %128 : vector<1x24x88xf32> to vector<24x88xf32>
    %c6 = arith.constant 6 : index
    %c0_67 = arith.constant 0 : index
    %c0_68 = arith.constant 0 : index
    %130 = vector.load %arg4[%c6, %c0_67, %c0_68] : memref<7x88x126xf32, #tpu.memory_space<vmem>>, vector<1x88x126xf32>
    %131 = vector.shape_cast %130 : vector<1x88x126xf32> to vector<88x126xf32>
    %cst_69 = arith.constant dense<0.000000e+00> : vector<24x126xf32>
    %132 = tpu.matmul %129, %131, %cst_69 {dimension_numbers = #tpu.dot_dimension_numbers<[1], [0], [0], [1], [0, 0, 1, 1], [], []>} : vector<24x88xf32>, vector<88x126xf32>, vector<24x126xf32> -> vector<24x126xf32>
    %133 = arith.addf %127, %132 : vector<24x126xf32>
    %134 = vector.broadcast %90 : vector<1x126xf32> to vector<24x126xf32>
    %135 = arith.addf %133, %134 : vector<24x126xf32>
    %136 = vector.shape_cast %135 : vector<24x126xf32> to vector<1x24x126xf32>
    %137 = vector.broadcast %27 : vector<1x24x1xf32> to vector<1x24x126xf32>
    %138 = arith.mulf %136, %137 : vector<1x24x126xf32>
    %cst_70 = arith.constant 0.000000e+00 : f32
    %139 = vector.broadcast %cst_70 : f32 to vector<16x48xf32>
    %140 = vector.extract_strided_slice %52 {offsets = [0, 0, 0], sizes = [1, 16, 126], strides = [1, 1, 1]} : vector<1x24x126xf32> to vector<1x16x126xf32>
    %141 = vector.shape_cast %140 : vector<1x16x126xf32> to vector<16x126xf32>
    %c0_71 = arith.constant 0 : index
    %c0_72 = arith.constant 0 : index
    %c0_73 = arith.constant 0 : index
    %c0_74 = arith.constant 0 : index
    %142 = vector.load %arg6[%c0_71, %c0_72, %c0_73, %c0_74] : memref<3x3x126x48xf32, #tpu.memory_space<vmem>>, vector<1x1x126x48xf32>
    %143 = vector.shape_cast %142 : vector<1x1x126x48xf32> to vector<126x48xf32>
    %cst_75 = arith.constant dense<0.000000e+00> : vector<16x48xf32>
    %144 = tpu.matmul %141, %143, %cst_75 {dimension_numbers = #tpu.dot_dimension_numbers<[1], [0], [0], [1], [0, 0, 1, 1], [], []>} : vector<16x126xf32>, vector<126x48xf32>, vector<16x48xf32> -> vector<16x48xf32>
    %145 = arith.addf %139, %144 : vector<16x48xf32>
    %146 = vector.extract_strided_slice %89 {offsets = [0, 0, 0], sizes = [1, 16, 126], strides = [1, 1, 1]} : vector<1x24x126xf32> to vector<1x16x126xf32>
    %147 = vector.shape_cast %146 : vector<1x16x126xf32> to vector<16x126xf32>
    %c1_76 = arith.constant 1 : index
    %c0_77 = arith.constant 0 : index
    %c0_78 = arith.constant 0 : index
    %c0_79 = arith.constant 0 : index
    %148 = vector.load %arg6[%c1_76, %c0_77, %c0_78, %c0_79] : memref<3x3x126x48xf32, #tpu.memory_space<vmem>>, vector<1x1x126x48xf32>
    %149 = vector.shape_cast %148 : vector<1x1x126x48xf32> to vector<126x48xf32>
    %cst_80 = arith.constant dense<0.000000e+00> : vector<16x48xf32>
    %150 = tpu.matmul %147, %149, %cst_80 {dimension_numbers = #tpu.dot_dimension_numbers<[1], [0], [0], [1], [0, 0, 1, 1], [], []>} : vector<16x126xf32>, vector<126x48xf32>, vector<16x48xf32> -> vector<16x48xf32>
    %151 = arith.addf %145, %150 : vector<16x48xf32>
    %152 = vector.extract_strided_slice %138 {offsets = [0, 0, 0], sizes = [1, 16, 126], strides = [1, 1, 1]} : vector<1x24x126xf32> to vector<1x16x126xf32>
    %153 = vector.shape_cast %152 : vector<1x16x126xf32> to vector<16x126xf32>
    %c2_81 = arith.constant 2 : index
    %c0_82 = arith.constant 0 : index
    %c0_83 = arith.constant 0 : index
    %c0_84 = arith.constant 0 : index
    %154 = vector.load %arg6[%c2_81, %c0_82, %c0_83, %c0_84] : memref<3x3x126x48xf32, #tpu.memory_space<vmem>>, vector<1x1x126x48xf32>
    %155 = vector.shape_cast %154 : vector<1x1x126x48xf32> to vector<126x48xf32>
    %cst_85 = arith.constant dense<0.000000e+00> : vector<16x48xf32>
    %156 = tpu.matmul %153, %155, %cst_85 {dimension_numbers = #tpu.dot_dimension_numbers<[1], [0], [0], [1], [0, 0, 1, 1], [], []>} : vector<16x126xf32>, vector<126x48xf32>, vector<16x48xf32> -> vector<16x48xf32>
    %157 = arith.addf %151, %156 : vector<16x48xf32>
    %158 = vector.extract_strided_slice %52 {offsets = [0, 1, 0], sizes = [1, 16, 126], strides = [1, 1, 1]} : vector<1x24x126xf32> to vector<1x16x126xf32>
    %159 = vector.shape_cast %158 : vector<1x16x126xf32> to vector<16x126xf32>
    %c0_86 = arith.constant 0 : index
    %c1_87 = arith.constant 1 : index
    %c0_88 = arith.constant 0 : index
    %c0_89 = arith.constant 0 : index
    %160 = vector.load %arg6[%c0_86, %c1_87, %c0_88, %c0_89] : memref<3x3x126x48xf32, #tpu.memory_space<vmem>>, vector<1x1x126x48xf32>
    %161 = vector.shape_cast %160 : vector<1x1x126x48xf32> to vector<126x48xf32>
    %cst_90 = arith.constant dense<0.000000e+00> : vector<16x48xf32>
    %162 = tpu.matmul %159, %161, %cst_90 {dimension_numbers = #tpu.dot_dimension_numbers<[1], [0], [0], [1], [0, 0, 1, 1], [], []>} : vector<16x126xf32>, vector<126x48xf32>, vector<16x48xf32> -> vector<16x48xf32>
    %163 = arith.addf %157, %162 : vector<16x48xf32>
    %164 = vector.extract_strided_slice %89 {offsets = [0, 1, 0], sizes = [1, 16, 126], strides = [1, 1, 1]} : vector<1x24x126xf32> to vector<1x16x126xf32>
    %165 = vector.shape_cast %164 : vector<1x16x126xf32> to vector<16x126xf32>
    %c1_91 = arith.constant 1 : index
    %c1_92 = arith.constant 1 : index
    %c0_93 = arith.constant 0 : index
    %c0_94 = arith.constant 0 : index
    %166 = vector.load %arg6[%c1_91, %c1_92, %c0_93, %c0_94] : memref<3x3x126x48xf32, #tpu.memory_space<vmem>>, vector<1x1x126x48xf32>
    %167 = vector.shape_cast %166 : vector<1x1x126x48xf32> to vector<126x48xf32>
    %cst_95 = arith.constant dense<0.000000e+00> : vector<16x48xf32>
    %168 = tpu.matmul %165, %167, %cst_95 {dimension_numbers = #tpu.dot_dimension_numbers<[1], [0], [0], [1], [0, 0, 1, 1], [], []>} : vector<16x126xf32>, vector<126x48xf32>, vector<16x48xf32> -> vector<16x48xf32>
    %169 = arith.addf %163, %168 : vector<16x48xf32>
    %170 = vector.extract_strided_slice %138 {offsets = [0, 1, 0], sizes = [1, 16, 126], strides = [1, 1, 1]} : vector<1x24x126xf32> to vector<1x16x126xf32>
    %171 = vector.shape_cast %170 : vector<1x16x126xf32> to vector<16x126xf32>
    %c2_96 = arith.constant 2 : index
    %c1_97 = arith.constant 1 : index
    %c0_98 = arith.constant 0 : index
    %c0_99 = arith.constant 0 : index
    %172 = vector.load %arg6[%c2_96, %c1_97, %c0_98, %c0_99] : memref<3x3x126x48xf32, #tpu.memory_space<vmem>>, vector<1x1x126x48xf32>
    %173 = vector.shape_cast %172 : vector<1x1x126x48xf32> to vector<126x48xf32>
    %cst_100 = arith.constant dense<0.000000e+00> : vector<16x48xf32>
    %174 = tpu.matmul %171, %173, %cst_100 {dimension_numbers = #tpu.dot_dimension_numbers<[1], [0], [0], [1], [0, 0, 1, 1], [], []>} : vector<16x126xf32>, vector<126x48xf32>, vector<16x48xf32> -> vector<16x48xf32>
    %175 = arith.addf %169, %174 : vector<16x48xf32>
    %176 = vector.extract_strided_slice %52 {offsets = [0, 2, 0], sizes = [1, 16, 126], strides = [1, 1, 1]} : vector<1x24x126xf32> to vector<1x16x126xf32>
    %177 = vector.shape_cast %176 : vector<1x16x126xf32> to vector<16x126xf32>
    %c0_101 = arith.constant 0 : index
    %c2_102 = arith.constant 2 : index
    %c0_103 = arith.constant 0 : index
    %c0_104 = arith.constant 0 : index
    %178 = vector.load %arg6[%c0_101, %c2_102, %c0_103, %c0_104] : memref<3x3x126x48xf32, #tpu.memory_space<vmem>>, vector<1x1x126x48xf32>
    %179 = vector.shape_cast %178 : vector<1x1x126x48xf32> to vector<126x48xf32>
    %cst_105 = arith.constant dense<0.000000e+00> : vector<16x48xf32>
    %180 = tpu.matmul %177, %179, %cst_105 {dimension_numbers = #tpu.dot_dimension_numbers<[1], [0], [0], [1], [0, 0, 1, 1], [], []>} : vector<16x126xf32>, vector<126x48xf32>, vector<16x48xf32> -> vector<16x48xf32>
    %181 = arith.addf %175, %180 : vector<16x48xf32>
    %182 = vector.extract_strided_slice %89 {offsets = [0, 2, 0], sizes = [1, 16, 126], strides = [1, 1, 1]} : vector<1x24x126xf32> to vector<1x16x126xf32>
    %183 = vector.shape_cast %182 : vector<1x16x126xf32> to vector<16x126xf32>
    %c1_106 = arith.constant 1 : index
    %c2_107 = arith.constant 2 : index
    %c0_108 = arith.constant 0 : index
    %c0_109 = arith.constant 0 : index
    %184 = vector.load %arg6[%c1_106, %c2_107, %c0_108, %c0_109] : memref<3x3x126x48xf32, #tpu.memory_space<vmem>>, vector<1x1x126x48xf32>
    %185 = vector.shape_cast %184 : vector<1x1x126x48xf32> to vector<126x48xf32>
    %cst_110 = arith.constant dense<0.000000e+00> : vector<16x48xf32>
    %186 = tpu.matmul %183, %185, %cst_110 {dimension_numbers = #tpu.dot_dimension_numbers<[1], [0], [0], [1], [0, 0, 1, 1], [], []>} : vector<16x126xf32>, vector<126x48xf32>, vector<16x48xf32> -> vector<16x48xf32>
    %187 = arith.addf %181, %186 : vector<16x48xf32>
    %188 = vector.extract_strided_slice %138 {offsets = [0, 2, 0], sizes = [1, 16, 126], strides = [1, 1, 1]} : vector<1x24x126xf32> to vector<1x16x126xf32>
    %189 = vector.shape_cast %188 : vector<1x16x126xf32> to vector<16x126xf32>
    %c2_111 = arith.constant 2 : index
    %c2_112 = arith.constant 2 : index
    %c0_113 = arith.constant 0 : index
    %c0_114 = arith.constant 0 : index
    %190 = vector.load %arg6[%c2_111, %c2_112, %c0_113, %c0_114] : memref<3x3x126x48xf32, #tpu.memory_space<vmem>>, vector<1x1x126x48xf32>
    %191 = vector.shape_cast %190 : vector<1x1x126x48xf32> to vector<126x48xf32>
    %cst_115 = arith.constant dense<0.000000e+00> : vector<16x48xf32>
    %192 = tpu.matmul %189, %191, %cst_115 {dimension_numbers = #tpu.dot_dimension_numbers<[1], [0], [0], [1], [0, 0, 1, 1], [], []>} : vector<16x126xf32>, vector<126x48xf32>, vector<16x48xf32> -> vector<16x48xf32>
    %193 = arith.addf %187, %192 : vector<16x48xf32>
    %c0_116 = arith.constant 0 : index
    %c0_117 = arith.constant 0 : index
    %194 = vector.load %arg7[%c0_116, %c0_117] : memref<1x48xf32, #tpu.memory_space<vmem>>, vector<1x48xf32>
    %195 = vector.broadcast %194 : vector<1x48xf32> to vector<16x48xf32>
    %196 = arith.addf %193, %195 : vector<16x48xf32>
    %197 = vector.shape_cast %196 : vector<16x48xf32> to vector<1x16x48xf32>
    %c0_118 = arith.constant 0 : index
    %c0_119 = arith.constant 0 : index
    %c0_120 = arith.constant 0 : index
    %198 = vector.load %arg8[%c0_118, %c0_119, %c0_120] : memref<1x16x48xf32, #tpu.memory_space<vmem>>, vector<1x16x48xf32>
    tpu.vector_store %arg8[%c0_118, %c0_119, %c0_120], %197 {strides = array<i32>} : memref<1x16x48xf32, #tpu.memory_space<vmem>>, vector<1x16x48xf32>,
    return
  }
  func.func @transform_0(%arg0: i32) -> (i32, i32, i32) {
    %c0_i32 = arith.constant 0 : i32
    %c0_i32_0 = arith.constant 0 : i32
    %c0_i32_1 = arith.constant 0 : i32
    return %arg0, %c0_i32, %c0_i32_0 : i32, i32, i32
  }
  func.func @transform_1(%arg0: i32) -> (i32, i32, i32) {
    %c0_i32 = arith.constant 0 : i32
    %c0_i32_0 = arith.constant 0 : i32
    %c0_i32_1 = arith.constant 0 : i32
    %c0_i32_2 = arith.constant 0 : i32
    return %c0_i32, %c0_i32_0, %c0_i32_1 : i32, i32, i32
  }
  func.func @transform_2(%arg0: i32) -> (i32, i32, i32) {
    %c0_i32 = arith.constant 0 : i32
    %c0_i32_0 = arith.constant 0 : i32
    %c0_i32_1 = arith.constant 0 : i32
    %c0_i32_2 = arith.constant 0 : i32
    return %c0_i32, %c0_i32_0, %c0_i32_1 : i32, i32, i32
  }
  func.func @transform_3(%arg0: i32) -> (i32, i32, i32) {
    %c0_i32 = arith.constant 0 : i32
    %c0_i32_0 = arith.constant 0 : i32
    %c0_i32_1 = arith.constant 0 : i32
    %c0_i32_2 = arith.constant 0 : i32
    return %c0_i32, %c0_i32_0, %c0_i32_1 : i32, i32, i32
  }
  func.func @transform_4(%arg0: i32) -> (i32, i32) {
    %c0_i32 = arith.constant 0 : i32
    %c0_i32_0 = arith.constant 0 : i32
    %c0_i32_1 = arith.constant 0 : i32
    return %c0_i32, %c0_i32_0 : i32, i32
  }
  func.func @transform_5(%arg0: i32) -> (i32, i32, i32, i32) {
    %c0_i32 = arith.constant 0 : i32
    %c0_i32_0 = arith.constant 0 : i32
    %c0_i32_1 = arith.constant 0 : i32
    %c0_i32_2 = arith.constant 0 : i32
    %c0_i32_3 = arith.constant 0 : i32
    return %c0_i32, %c0_i32_0, %c0_i32_1, %c0_i32_2 : i32, i32, i32, i32
  }
  func.func @transform_6(%arg0: i32) -> (i32, i32) {
    %c0_i32 = arith.constant 0 : i32
    %c0_i32_0 = arith.constant 0 : i32
    %c0_i32_1 = arith.constant 0 : i32
    return %c0_i32, %c0_i32_0 : i32, i32
  }
  func.func @transform_7(%arg0: i32) -> (i32, i32, i32) {
    %c0_i32 = arith.constant 0 : i32
    %c0_i32_0 = arith.constant 0 : i32
    %c0_i32_1 = arith.constant 0 : i32
    return %arg0, %c0_i32, %c0_i32_0 : i32, i32, i32
  }
}

</mosaic_0001>

<llo_original>
// kernel: actc_forward.1
$region0: #{actc_forward.1}
  #allocation0 [shape = 'u32[]', space=smem, size = 0x4, offset = 0x4, fixed_abs, tag = 'smem constant byte address 0x4 - core index']
  #allocation1 [shape = 'u32[144,128]{1,0:T(1,128)}', space=vmem, size = 0x12000, scoped, tag = 'internal scratch']
  %s0 = inlined_call_operand.vmem [shape: f32[2,32,88], index: 0, kind: input, shape index: {}]
  %s1 = inlined_call_operand.vmem [shape: f32[3,88,126], index: 1, kind: input, shape index: {}]
  %s2 = inlined_call_operand.vmem [shape: f32[5,88,126], index: 2, kind: input, shape index: {}]
  %s3 = inlined_call_operand.vmem [shape: f32[7,88,126], index: 3, kind: input, shape index: {}]
  %s4 = inlined_call_operand.vmem [shape: f32[3,126], index: 4, kind: input, shape index: {}]
  %s5 = inlined_call_operand.vmem [shape: f32[3,3,126,48], index: 5, kind: input, shape index: {}]
  %s6 = inlined_call_operand.vmem [shape: f32[1,48], index: 6, kind: input, shape index: {}]
  %s7 = inlined_call_operand.vmem [shape: f32[2,16,48], index: 7, kind: output, shape index: {}]
  %s8 = sld [smem:[#allocation0]]
  $region61: #{actc_forward.1} parent=0
    _
  %s10 = ssub.s32 1, %s8
  %s11 = scalar_select 0, %s10, %s8
  loop: start=0, step=1, limit=4
  $region2: #{actc_forward.1} parent=0 // loop_pre_header
    _
  $region3: #{actc_forward.1} parent=0 // loop_header
    %s13 = sphi 0, %s17
    %p14 = scmp.ge.s32.totalorder %s13, 4
    %s23 = sphi 0, %s25
    %s26 = sphi 0, %s23
    %s27 = sphi 0, %s26
    %s43 = sphi 0, %s27
    %s47 = sphi 0, %s47
    %s49 = sphi 0, %s47
    %s50 = sphi 0, %s49
    %s64 = sphi 0, %s50
    %s68 = sphi 0, %s68
    %s70 = sphi 0, %s68
    %s71 = sphi 0, %s70
    %s85 = sphi 0, %s71
    %s89 = sphi 0, %s89
    %s91 = sphi 0, %s89
    %s92 = sphi 0, %s91
    %s106 = sphi 0, %s92
    %s110 = sphi 0, %s110
    %s112 = sphi 0, %s110
    %s113 = sphi 0, %s112
    %s127 = sphi 0, %s113
    %s131 = sphi 0, %s131
    %s133 = sphi 0, %s131
    %s134 = sphi 0, %s133
    %s148 = sphi 0, %s134
    %s152 = sphi 0, %s152
    %s154 = sphi 0, %s152
    %s155 = sphi 0, %s154
    %s169 = sphi 0, %s155
    %s175 = sphi 0, %s177
    %s178 = sphi 0, %s175
    %s179 = sphi 0, %s178
    %s195 = sphi 0, %s179
  $region4: #{actc_forward.1} parent=0 // loop_header_branch
    %16 = sbr.rel (%p14) target = $region8
  $region5: #{actc_forward.1} parent=0 // loop_body
    %s18 = ssub.s32 %s13, 1
    %s19 = ssub.s32 %s13, 2
    %s20 = sadd.s32 %s13, 1
    %s21 = ssub.s32 %s13, %s20
    %p22 = scmp.eq.s32.totalorder %s21, 0
    %s24 = sadd.s32 %s23, 1
    %s25 = scalar_select %p22, %s23, %s24
    %p28 = pneg %p22
    %p29 = scmp.eq.s32.totalorder %s13, 1
    %p30 = por %p28, %p29
    %p31 = scmp.ne.s32.totalorder %s23, %s26
    %p32 = scmp.eq.s32.totalorder %s13, 0
    %p33 = por %p31, %p32
    %p34 = scmp.ne.s32.totalorder %s23, %s26
    %p35 = scmp.eq.s32.totalorder %s18, 1
    %p36 = por %p34, %p35
    %p37 = scmp.ne.s32.totalorder %s26, %s27
    %p38 = scmp.eq.s32.totalorder %s18, 0
    %p39 = por %p37, %p38
    %p40 = scmp.ne.s32.totalorder %s26, %s27
    %p41 = scmp.eq.s32.totalorder %s19, 1
    %p42 = por %p40, %p41
    %p44 = scmp.ne.s32.totalorder %s27, %s43
    %p45 = scmp.eq.s32.totalorder %s19, 0
    %p46 = por %p44, %p45
    %s48 = sadd.s32 %s47, 1
    %p51 = scmp.eq.s32.totalorder %s13, 1
    %p52 = scmp.ne.s32.totalorder %s47, %s49
    %p53 = scmp.eq.s32.totalorder %s13, 0
    %p54 = por %p52, %p53
    %p55 = scmp.ne.s32.totalorder %s47, %s49
    %p56 = scmp.eq.s32.totalorder %s18, 1
    %p57 = por %p55, %p56
    %p58 = scmp.ne.s32.totalorder %s49, %s50
    %p59 = scmp.eq.s32.totalorder %s18, 0
    %p60 = por %p58, %p59
    %p61 = scmp.ne.s32.totalorder %s49, %s50
    %p62 = scmp.eq.s32.totalorder %s19, 1
    %p63 = por %p61, %p62
    %p65 = scmp.ne.s32.totalorder %s50, %s64
    %p66 = scmp.eq.s32.totalorder %s19, 0
    %p67 = por %p65, %p66
    %s69 = sadd.s32 %s68, 1
    %p72 = scmp.eq.s32.totalorder %s13, 1
    %p73 = scmp.ne.s32.totalorder %s68, %s70
    %p74 = scmp.eq.s32.totalorder %s13, 0
    %p75 = por %p73, %p74
    %p76 = scmp.ne.s32.totalorder %s68, %s70
    %p77 = scmp.eq.s32.totalorder %s18, 1
    %p78 = por %p76, %p77
    %p79 = scmp.ne.s32.totalorder %s70, %s71
    %p80 = scmp.eq.s32.totalorder %s18, 0
    %p81 = por %p79, %p80
    %p82 = scmp.ne.s32.totalorder %s70, %s71
    %p83 = scmp.eq.s32.totalorder %s19, 1
    %p84 = por %p82, %p83
    %p86 = scmp.ne.s32.totalorder %s71, %s85
    %p87 = scmp.eq.s32.totalorder %s19, 0
    %p88 = por %p86, %p87
    %s90 = sadd.s32 %s89, 1
    %p93 = scmp.eq.s32.totalorder %s13, 1
    %p94 = scmp.ne.s32.totalorder %s89, %s91
    %p95 = scmp.eq.s32.totalorder %s13, 0
    %p96 = por %p94, %p95
    %p97 = scmp.ne.s32.totalorder %s89, %s91
    %p98 = scmp.eq.s32.totalorder %s18, 1
    %p99 = por %p97, %p98
    %p100 = scmp.ne.s32.totalorder %s91, %s92
    %p101 = scmp.eq.s32.totalorder %s18, 0
    %p102 = por %p100, %p101
    %p103 = scmp.ne.s32.totalorder %s91, %s92
    %p104 = scmp.eq.s32.totalorder %s19, 1
    %p105 = por %p103, %p104
    %p107 = scmp.ne.s32.totalorder %s92, %s106
    %p108 = scmp.eq.s32.totalorder %s19, 0
    %p109 = por %p107, %p108
    %s111 = sadd.s32 %s110, 1
    %p114 = scmp.eq.s32.totalorder %s13, 1
    %p115 = scmp.ne.s32.totalorder %s110, %s112
    %p116 = scmp.eq.s32.totalorder %s13, 0
    %p117 = por %p115, %p116
    %p118 = scmp.ne.s32.totalorder %s110, %s112
    %p119 = scmp.eq.s32.totalorder %s18, 1
    %p120 = por %p118, %p119
    %p121 = scmp.ne.s32.totalorder %s112, %s113
    %p122 = scmp.eq.s32.totalorder %s18, 0
    %p123 = por %p121, %p122
    %p124 = scmp.ne.s32.totalorder %s112, %s113
    %p125 = scmp.eq.s32.totalorder %s19, 1
    %p126 = por %p124, %p125
    %p128 = scmp.ne.s32.totalorder %s113, %s127
    %p129 = scmp.eq.s32.totalorder %s19, 0
    %p130 = por %p128, %p129
    %s132 = sadd.s32 %s131, 1
    %p135 = scmp.eq.s32.totalorder %s13, 1
    %p136 = scmp.ne.s32.totalorder %s131, %s133
    %p137 = scmp.eq.s32.totalorder %s13, 0
    %p138 = por %p136, %p137
    %p139 = scmp.ne.s32.totalorder %s131, %s133
    %p140 = scmp.eq.s32.totalorder %s18, 1
    %p141 = por %p139, %p140
    %p142 = scmp.ne.s32.totalorder %s133, %s134
    %p143 = scmp.eq.s32.totalorder %s18, 0
    %p144 = por %p142, %p143
    %p145 = scmp.ne.s32.totalorder %s133, %s134
    %p146 = scmp.eq.s32.totalorder %s19, 1
    %p147 = por %p145, %p146
    %p149 = scmp.ne.s32.totalorder %s134, %s148
    %p150 = scmp.eq.s32.totalorder %s19, 0
    %p151 = por %p149, %p150
    %s153 = sadd.s32 %s152, 1
    %p156 = scmp.eq.s32.totalorder %s13, 1
    %p157 = scmp.ne.s32.totalorder %s152, %s154
    %p158 = scmp.eq.s32.totalorder %s13, 0
    %p159 = por %p157, %p158
    %p160 = scmp.ne.s32.totalorder %s152, %s154
    %p161 = scmp.eq.s32.totalorder %s18, 1
    %p162 = por %p160, %p161
    %p163 = scmp.ne.s32.totalorder %s154, %s155
    %p164 = scmp.eq.s32.totalorder %s18, 0
    %p165 = por %p163, %p164
    %p166 = scmp.ne.s32.totalorder %s154, %s155
    %p167 = scmp.eq.s32.totalorder %s19, 1
    %p168 = por %p166, %p167
    %p170 = scmp.ne.s32.totalorder %s155, %s169
    %p171 = scmp.eq.s32.totalorder %s19, 0
    %p172 = por %p170, %p171
    %s173 = ssub.s32 %s13, %s20
    %p174 = scmp.eq.s32.totalorder %s173, 0
    %s176 = sadd.s32 %s175, 1
    %s177 = scalar_select %p174, %s175, %s176
    %p180 = pneg %p174
    %p181 = scmp.eq.s32.totalorder %s13, 1
    %p182 = por %p180, %p181
    %p183 = scmp.ne.s32.totalorder %s175, %s178
    %p184 = scmp.eq.s32.totalorder %s13, 0
    %p185 = por %p183, %p184
    %p186 = scmp.ne.s32.totalorder %s175, %s178
    %p187 = scmp.eq.s32.totalorder %s18, 1
    %p188 = por %p186, %p187
    %p189 = scmp.ne.s32.totalorder %s178, %s179
    %p190 = scmp.eq.s32.totalorder %s18, 0
    %p191 = por %p189, %p190
    %p192 = scmp.ne.s32.totalorder %s178, %s179
    %p193 = scmp.eq.s32.totalorder %s19, 1
    %p194 = por %p192, %p193
    %p196 = scmp.ne.s32.totalorder %s179, %s195
    %p197 = scmp.eq.s32.totalorder %s19, 0
    %p198 = por %p196, %p197
    %p199 = scmp.le.s32.totalorder 1, %s13
    %p200 = scmp.lt.s32.totalorder %s13, 3
    %p201 = pnand %p199, %p200
    %p202 = pneg %p201
    // Predicated region
    $region9: #{actc_forward.1} parent=5 // pred_check
      _
    $region10: #{actc_forward.1} parent=5 // pred_check_branch
      %204 = sbr.rel (%p201) target = $region12
    $region11: #{actc_forward.1} parent=5 // pred_region
      %s205 = ssub.s32 %s13, 1
      // Predicated region
      $region13: #{actc_forward.1} parent=11 // pred_check
        %p206 = pneg %p60
      $region14: #{actc_forward.1} parent=11 // pred_check_branch
        %208 = sbr.rel (%p206) target = $region16
      $region15: #{actc_forward.1} parent=11 // pred_region
        _
      $region16: #{actc_forward.1} parent=11 // pred_fallthru
        _
      // Predicated region
      $region17: #{actc_forward.1} parent=11 // pred_check
        %p209 = pneg %p81
      $region18: #{actc_forward.1} parent=11 // pred_check_branch
        %211 = sbr.rel (%p209) target = $region20
      $region19: #{actc_forward.1} parent=11 // pred_region
        _
      $region20: #{actc_forward.1} parent=11 // pred_fallthru
        _
      // Predicated region
      $region21: #{actc_forward.1} parent=11 // pred_check
        %p212 = pneg %p102
      $region22: #{actc_forward.1} parent=11 // pred_check_branch
        %214 = sbr.rel (%p212) target = $region24
      $region23: #{actc_forward.1} parent=11 // pred_region
        _
      $region24: #{actc_forward.1} parent=11 // pred_fallthru
        _
      // Predicated region
      $region25: #{actc_forward.1} parent=11 // pred_check
        %p215 = pneg %p123
      $region26: #{actc_forward.1} parent=11 // pred_check_branch
        %217 = sbr.rel (%p215) target = $region28
      $region27: #{actc_forward.1} parent=11 // pred_region
        _
      $region28: #{actc_forward.1} parent=11 // pred_fallthru
        _
      // Predicated region
      $region29: #{actc_forward.1} parent=11 // pred_check
        %p218 = pneg %p144
      $region30: #{actc_forward.1} parent=11 // pred_check_branch
        %220 = sbr.rel (%p218) target = $region32
      $region31: #{actc_forward.1} parent=11 // pred_region
        _
      $region32: #{actc_forward.1} parent=11 // pred_fallthru
        _
      // Predicated region
      $region33: #{actc_forward.1} parent=11 // pred_check
        %p221 = pneg %p165
      $region34: #{actc_forward.1} parent=11 // pred_check_branch
        %223 = sbr.rel (%p221) target = $region36
      $region35: #{actc_forward.1} parent=11 // pred_region
        _
      $region36: #{actc_forward.1} parent=11 // pred_fallthru
        _
    $region12: #{actc_forward.1} parent=5 // pred_fallthru
      _
    %p224 = scmp.lt.s32.totalorder %s13, 2
    // Predicated region
    $region37: #{actc_forward.1} parent=5 // pred_check
      %p225 = pneg %p224
    $region38: #{actc_forward.1} parent=5 // pred_check_branch
      %227 = sbr.rel (%p225) target = $region40
    $region39: #{actc_forward.1} parent=5 // pred_region
      // Predicated region
      $region41: #{actc_forward.1} parent=39 // pred_check
        %p228 = pneg %p33
      $region42: #{actc_forward.1} parent=39 // pred_check_branch
        %230 = sbr.rel (%p228) target = $region44
      $region43: #{actc_forward.1} parent=39 // pred_region
        %p231 = scmp.lt.s32.totalorder %s13, 1
        %s232 = scalar_select %p231, %s13, 1
        %s233 = smul.addr %s232, 4
        %s234 = smul.addr %s233, 8
        %s235 = scalar_lea.vmem %s0, %s234
      $region44: #{actc_forward.1} parent=39 // pred_fallthru
        _
    $region40: #{actc_forward.1} parent=5 // pred_fallthru
      _
    %p236 = scmp.le.s32.totalorder 1, %s13
    %p237 = scmp.lt.s32.totalorder %s13, 3
    %p238 = pnand %p236, %p237
    %p239 = pneg %p238
    // Predicated region
    $region45: #{actc_forward.1} parent=5 // pred_check
      _
    $region46: #{actc_forward.1} parent=5 // pred_check_branch
      %241 = sbr.rel (%p238) target = $region48
    $region47: #{actc_forward.1} parent=5 // pred_region
      %s242 = ssub.s32 %s13, 1
      %p243 = scmp.lt.s32.totalorder %s18, 1
      %s244 = scalar_select %p243, %s18, 1
      %s245 = smul.addr %s244, 4
      %s246 = smul.addr %s245, 8
      %s247 = scalar_lea.vmem %s0, %s246
      %p248 = pneg %p39
      %p249 = pneg %p36
      %p250 = pneg %p60
      %p251 = pneg %p57
      %p252 = pneg %p81
      %p253 = pneg %p78
      %p254 = pneg %p102
      %p255 = pneg %p99
      %p256 = pneg %p123
      %p257 = pneg %p120
      %p258 = pneg %p144
      %p259 = pneg %p141
      %p260 = pneg %p165
      %p261 = pneg %p162
      %p262 = pneg %p191
      %p263 = pneg %p188
      %p264 = scmp.lt.s32.totalorder %s18, 1
      %s265 = scalar_select %p264, %s18, 1
      %s266 = smul.addr %s265, 2
      %s267 = smul.addr %s266, 8
      %s268 = scalar_lea.vmem %s7, %s267
      %p269 = scmp.lt.s32.totalorder %s18, 1
      %s270 = scalar_select %p269, %s18, 1
      %s271 = smul.addr %s270, 4
      %s272 = smul.addr %s271, 8
      %s273 = scalar_lea.vmem %s0, %s272
      %p274 = scmp.lt.s32.totalorder %s18, 1
      %s275 = scalar_select %p274, %s18, 1
      %s276 = smul.addr %s275, 2
      %s277 = smul.addr %s276, 8
      %s278 = scalar_lea.vmem %s7, %s277
      %v279 = vld [vmem:[%s273] sm:$0xff]
      %v280 = vld [vmem:[%s273 + $0x8] sm:$0xff]
      %v281 = vld [vmem:[%s273 + $0x10] sm:$0xff]
      %v282 = vld [vmem:[%s273 + $0x18] sm:$0xff]
      %v283 = vmax.f32 %v279, 0.0
      %v284 = vmax.f32 %v280, 0.0
      %v285 = vmax.f32 %v281, 0.0
      %v286 = vmax.f32 %v282, 0.0
      %v287 = vsub.f32 0.0, %v279
      %v288 = vsub.f32 0.0, %v280
      %v289 = vsub.f32 0.0, %v281
      %v290 = vsub.f32 0.0, %v282
      %v291 = vmul.f32 %v287, 1.442695
      %v292 = vpow.pop %v291
      %v293 = vmul.f32 %v288, 1.442695
      %v294 = vpow.pop %v293
      %v295 = vmul.f32 %v289, 1.442695
      %v296 = vpow.pop %v295
      %v297 = vmul.f32 %v290, 1.442695
      %v298 = vpow.pop %v297
      %v299 = vadd.f32 %v292, 1.0
      %v300 = vadd.f32 %v294, 1.0
      %v301 = vadd.f32 %v296, 1.0
      %v302 = vadd.f32 %v298, 1.0
      %v303 = vrcp.pop %v299
      %v304 = vmul.f32 %v279, %v303
      %v305 = vrcp.pop %v300
      %v306 = vmul.f32 %v280, %v305
      %v307 = vrcp.pop %v301
      %v308 = vmul.f32 %v281, %v307
      %v309 = vrcp.pop %v302
      %v310 = vmul.f32 %v282, %v309
      %v311 = vmin.f32 %v279, 20.0
      %v312 = vmin.f32 %v280, 20.0
      %v313 = vmin.f32 %v281, 20.0
      %v314 = vmin.f32 %v282, 20.0
      %v315 = vmul.f32 %v311, 1.442695
      %v316 = vpow.pop %v315
      %v317 = vmul.f32 %v312, 1.442695
      %v318 = vpow.pop %v317
      %v319 = vmul.f32 %v313, 1.442695
      %v320 = vpow.pop %v319
      %v321 = vmul.f32 %v314, 1.442695
      %v322 = vpow.pop %v321
      %v323 = vadd.f32 %v316, 2.0
      %v324 = vadd.f32 %v318, 2.0
      %v325 = vadd.f32 %v320, 2.0
      %v326 = vadd.f32 %v322, 2.0
      %v327 = vmul.f32 %v316, %v323
      %v328 = vmul.f32 %v318, %v324
      %v329 = vmul.f32 %v320, %v325
      %v330 = vmul.f32 %v322, %v326
      %v331 = vmul.f32 %v279, %v327
      %v332 = vmul.f32 %v280, %v328
      %v333 = vmul.f32 %v281, %v329
      %v334 = vmul.f32 %v282, %v330
      %v335 = vadd.f32 %v327, 2.0
      %v336 = vadd.f32 %v328, 2.0
      %v337 = vadd.f32 %v329, 2.0
      %v338 = vadd.f32 %v330, 2.0
      %v339 = vrcp.pop %v335
      %v340 = vmul.f32 %v331, %v339
      %v341 = vrcp.pop %v336
      %v342 = vmul.f32 %v332, %v341
      %v343 = vrcp.pop %v337
      %v344 = vmul.f32 %v333, %v343
      %v345 = vrcp.pop %v338
      %v346 = vmul.f32 %v334, %v345
      %v347 = vlaneseq
      %v348 = vshrl.u32 %v347, 7
      %v349 = vadd.s32 %v348, 8
      %v350 = vadd.s32 %v348, 16
      %vm351 = vcmp.ge.s32.totalorder %v348, 1
      %vm352 = vcmp.ge.s32.totalorder %v349, 1
      %vm353 = vcmp.ge.s32.totalorder %v350, 1
      %vm354 = vcmp.le.s32.totalorder %v348, 16
      %vm355 = vcmp.le.s32.totalorder %v349, 16
      %vm356 = vcmp.le.s32.totalorder %v350, 16
      %vm357 = vmand %vm351, %vm354
      %vm358 = vmand %vm352, %vm355
      %vm359 = vmand %vm353, %vm356
      %v360 = vsel %vm357, 1, 0
      %v361 = vsel %vm358, 1, 0
      %v362 = vsel %vm359, 1, 0
      %v363 = vcvt.s32.f32 %v360
      %v364 = vcvt.s32.f32 %v361
      %v365 = vcvt.s32.f32 %v362
      %v366 = vld [vmem:[%s4] sm:$0x1]
      %v367 = vld [vmem:[%s1] sm:$0xff]
      %v368 = vld [vmem:[%s1 + $0x8] sm:$0xff]
      %v369 = vld [vmem:[%s1 + $0x10] sm:$0xff]
      %v370 = vld [vmem:[%s1 + $0x18] sm:$0xff]
      %v371 = vld [vmem:[%s1 + $0x20] sm:$0xff]
      %v372 = vld [vmem:[%s1 + $0x28] sm:$0xff]
      %v373 = vld [vmem:[%s1 + $0x30] sm:$0xff]
      %v374 = vld [vmem:[%s1 + $0x38] sm:$0xff]
      %v375 = vld [vmem:[%s1 + $0x40] sm:$0xff]
      %v376 = vld [vmem:[%s1 + $0x48] sm:$0xff]
      %v377 = vld [vmem:[%s1 + $0x50] sm:$0xff]
      %s378 = scalar_lea.vmem %s1, 88
      %v379 = vld [vmem:[%s378] sm:$0xff]
      %v380 = vld [vmem:[%s378 + $0x8] sm:$0xff]
      %v381 = vld [vmem:[%s378 + $0x10] sm:$0xff]
      %v382 = vld [vmem:[%s378 + $0x18] sm:$0xff]
      %v383 = vld [vmem:[%s378 + $0x20] sm:$0xff]
      %v384 = vld [vmem:[%s378 + $0x28] sm:$0xff]
      %v385 = vld [vmem:[%s378 + $0x30] sm:$0xff]
      %v386 = vld [vmem:[%s378 + $0x38] sm:$0xff]
      %v387 = vld [vmem:[%s378 + $0x40] sm:$0xff]
      %v388 = vld [vmem:[%s378 + $0x48] sm:$0xff]
      %v389 = vld [vmem:[%s378 + $0x50] sm:$0xff]
      %vm394 = vcmask 1044480
      %v395 = vrot.slane %v283, 3
      %v396 = vrot.slane %v284, 3
      %v397 = vsel %vm394, %v395, %v396
      %v398 = vrot.slane %v285, 3
      %v399 = vsel %vm394, %v396, %v398
      %v400 = vrot.slane %v286, 3
      %v401 = vsel %vm394, %v398, %v400
      %vm402 = vcmask 719872
      %v403 = vsel %vm402, %v397, 0
      %v405 = vsel %vm402, %v399, 0
      %v407 = vsel %vm402, %v401, 0
      %409 = vmatprep.subr.mxu0 0.0
      %410 = vmatpush1.msra.mxu0 0.0
      %411 = vmatprep.subr.mxu0 0.0
      %412 = vmatpush1.msra.mxu0 0.0
      %413 = vmatprep.subr.mxu0 0.0
      %414 = vmatpush1.msra.mxu0 0.0
      %415 = vmatprep.subr.mxu0 0.0
      %416 = vmatpush1.msra.mxu0 0.0
      %417 = vmatprep.subr.mxu0 0.0
      %418 = vmatpush1.msra.mxu0 0.0
      %419 = vmatprep.subr.mxu0 0.0
      %420 = vmatpush1.msra.mxu0 %v389
      %421 = vmatprep.subr.mxu0 0.0
      %422 = vmatpush1.msra.mxu0 %v388
      %423 = vmatprep.subr.mxu0 0.0
      %424 = vmatpush1.msra.mxu0 %v387
      %425 = vmatprep.subr.mxu0 0.0
      %426 = vmatpush1.msra.mxu0 %v386
      %427 = vmatprep.subr.mxu0 0.0
      %428 = vmatpush1.msra.mxu0 %v385
      %429 = vmatprep.subr.mxu0 0.0
      %430 = vmatpush1.msra.mxu0 %v384
      %431 = vmatprep.subr.mxu0 0.0
      %432 = vmatpush1.msra.mxu0 %v383
      %433 = vmatprep.subr.mxu0 0.0
      %434 = vmatpush1.msra.mxu0 %v382
      %435 = vmatprep.subr.mxu0 0.0
      %436 = vmatpush1.msra.mxu0 %v381
      %437 = vmatprep.subr.mxu0 0.0
      %438 = vmatpush1.msra.mxu0 %v380
      %439 = vmatprep.subr.mxu0 0.0
      %440 = vmatpush1.msra.mxu0 %v379
      %441 = vmatprep.subr.mxu0 0.0
      %442 = vmatpush2.msra.mxu0 0.0
      %443 = vmatprep.subr.mxu0 0.0
      %444 = vmatpush2.msra.mxu0 0.0
      %445 = vmatprep.subr.mxu0 0.0
      %446 = vmatpush2.msra.mxu0 0.0
      %447 = vmatprep.subr.mxu0 0.0
      %448 = vmatpush2.msra.mxu0 0.0
      %449 = vmatprep.subr.mxu0 0.0
      %450 = vmatpush2.msra.mxu0 0.0
      %451 = vmatprep.subr.mxu0 0.0
      %452 = vmatpush2.msra.mxu0 0.0
      %453 = vmatprep.subr.mxu0 0.0
      %454 = vmatpush2.msra.mxu0 0.0
      %455 = vmatprep.subr.mxu0 0.0
      %456 = vmatpush2.msra.mxu0 0.0
      %457 = vmatprep.subr.mxu0 0.0
      %458 = vmatpush2.msra.mxu0 0.0
      %459 = vmatprep.subr.mxu0 0.0
      %460 = vmatpush2.msra.mxu0 0.0
      %461 = vmatprep.subr.mxu0 0.0
      %462 = vmatpush2.msra.mxu0 0.0
      %463 = vmatprep.subr.mxu0 0.0
      %464 = vmatpush2.msra.mxu0 0.0
      %465 = vmatprep.subr.mxu0 0.0
      %466 = vmatpush2.msra.mxu0 0.0
      %467 = vmatprep.subr.mxu0 0.0
      %468 = vmatpush2.msra.mxu0 0.0
      %469 = vmatprep.subr.mxu0 0.0
      %470 = vmatpush2.msra.mxu0 0.0
      %471 = vmatprep.subr.mxu0 0.0
      %472 = vmatpush2.msra.mxu0 0.0
      %473 = vmatprep.mubr.f32.mxu0 0.0
      %474 = vmatmul.mubr.f32.gmra.mxu0 %v403
      %v475 = vpop.f32.mrf.mxu0
      %v476 = vadd.f32 0.0, %v475
      %v477 = vpop.f32.mrf.mxu0
      %478 = vmatprep.mubr.f32.mxu0 0.0
      %479 = vmatmul.mubr.f32.gmra.mxu0 %v405
      %v480 = vpop.f32.mrf.mxu0
      %v481 = vadd.f32 0.0, %v480
      %v482 = vpop.f32.mrf.mxu0
      %483 = vmatprep.mubr.f32.mxu0 0.0
      %484 = vmatmul.mubr.f32.gmra.mxu0 %v407
      %v485 = vpop.f32.mrf.mxu0
      %v486 = vadd.f32 0.0, %v485
      %v487 = vpop.f32.mrf.mxu0
      %488 = vdwg.mxu0
      %vm489 = vcmask 1045504
      %v490 = vrot.slane %v283, 2
      %v491 = vrot.slane %v284, 2
      %v492 = vsel %vm489, %v490, %v491
      %v493 = vrot.slane %v285, 2
      %v494 = vsel %vm489, %v491, %v493
      %v495 = vrot.slane %v286, 2
      %v496 = vsel %vm489, %v493, %v495
      %v497 = vsel %vm402, %v492, 0
      %v499 = vsel %vm402, %v494, 0
      %v501 = vsel %vm402, %v496, 0
      %503 = vmatprep.subr.mxu0 0.0
      %504 = vmatpush1.msra.mxu0 0.0
      %505 = vmatprep.subr.mxu0 0.0
      %506 = vmatpush1.msra.mxu0 0.0
      %507 = vmatprep.subr.mxu0 0.0
      %508 = vmatpush1.msra.mxu0 0.0
      %509 = vmatprep.subr.mxu0 0.0
      %510 = vmatpush1.msra.mxu0 0.0
      %511 = vmatprep.subr.mxu0 0.0
      %512 = vmatpush1.msra.mxu0 0.0
      %513 = vmatprep.subr.mxu0 0.0
      %514 = vmatpush1.msra.mxu0 %v377
      %515 = vmatprep.subr.mxu0 0.0
      %516 = vmatpush1.msra.mxu0 %v376
      %517 = vmatprep.subr.mxu0 0.0
      %518 = vmatpush1.msra.mxu0 %v375
      %519 = vmatprep.subr.mxu0 0.0
      %520 = vmatpush1.msra.mxu0 %v374
      %521 = vmatprep.subr.mxu0 0.0
      %522 = vmatpush1.msra.mxu0 %v373
      %523 = vmatprep.subr.mxu0 0.0
      %524 = vmatpush1.msra.mxu0 %v372
      %525 = vmatprep.subr.mxu0 0.0
      %526 = vmatpush1.msra.mxu0 %v371
      %527 = vmatprep.subr.mxu0 0.0
      %528 = vmatpush1.msra.mxu0 %v370
      %529 = vmatprep.subr.mxu0 0.0
      %530 = vmatpush1.msra.mxu0 %v369
      %531 = vmatprep.subr.mxu0 0.0
      %532 = vmatpush1.msra.mxu0 %v368
      %533 = vmatprep.subr.mxu0 0.0
      %534 = vmatpush1.msra.mxu0 %v367
      %535 = vmatprep.subr.mxu0 0.0
      %536 = vmatpush2.msra.mxu0 0.0
      %537 = vmatprep.subr.mxu0 0.0
      %538 = vmatpush2.msra.mxu0 0.0
      %539 = vmatprep.subr.mxu0 0.0
      %540 = vmatpush2.msra.mxu0 0.0
      %541 = vmatprep.subr.mxu0 0.0
      %542 = vmatpush2.msra.mxu0 0.0
      %543 = vmatprep.subr.mxu0 0.0
      %544 = vmatpush2.msra.mxu0 0.0
      %545 = vmatprep.subr.mxu0 0.0
      %546 = vmatpush2.msra.mxu0 0.0
      %547 = vmatprep.subr.mxu0 0.0
      %548 = vmatpush2.msra.mxu0 0.0
      %549 = vmatprep.subr.mxu0 0.0
      %550 = vmatpush2.msra.mxu0 0.0
      %551 = vmatprep.subr.mxu0 0.0
      %552 = vmatpush2.msra.mxu0 0.0
      %553 = vmatprep.subr.mxu0 0.0
      %554 = vmatpush2.msra.mxu0 0.0
      %555 = vmatprep.subr.mxu0 0.0
      %556 = vmatpush2.msra.mxu0 0.0
      %557 = vmatprep.subr.mxu0 0.0
      %558 = vmatpush2.msra.mxu0 0.0
      %559 = vmatprep.subr.mxu0 0.0
      %560 = vmatpush2.msra.mxu0 0.0
      %561 = vmatprep.subr.mxu0 0.0
      %562 = vmatpush2.msra.mxu0 0.0
      %563 = vmatprep.subr.mxu0 0.0
      %564 = vmatpush2.msra.mxu0 0.0
      %565 = vmatprep.subr.mxu0 0.0
      %566 = vmatpush2.msra.mxu0 0.0
      %567 = vmatprep.mubr.f32.mxu0 0.0
      %568 = vmatmul.mubr.f32.gmra.mxu0 %v497
      %v569 = vpop.f32.mrf.mxu0
      %v570 = vadd.f32 %v476, %v569
      %v571 = vpop.f32.mrf.mxu0
      %572 = vmatprep.mubr.f32.mxu0 0.0
      %573 = vmatmul.mubr.f32.gmra.mxu0 %v499
      %v574 = vpop.f32.mrf.mxu0
      %v575 = vadd.f32 %v481, %v574
      %v576 = vpop.f32.mrf.mxu0
      %577 = vmatprep.mubr.f32.mxu0 0.0
      %578 = vmatmul.mubr.f32.gmra.mxu0 %v501
      %v579 = vpop.f32.mrf.mxu0
      %v580 = vadd.f32 %v486, %v579
      %v581 = vpop.f32.mrf.mxu0
      %582 = vdwg.mxu0
      %s583 = scalar_lea.vmem %s1, 176
      %v584 = vld [vmem:[%s583] sm:$0xff]
      %v585 = vld [vmem:[%s583 + $0x8] sm:$0xff]
      %v586 = vld [vmem:[%s583 + $0x10] sm:$0xff]
      %v587 = vld [vmem:[%s583 + $0x18] sm:$0xff]
      %v588 = vld [vmem:[%s583 + $0x20] sm:$0xff]
      %v589 = vld [vmem:[%s583 + $0x28] sm:$0xff]
      %v590 = vld [vmem:[%s583 + $0x30] sm:$0xff]
      %v591 = vld [vmem:[%s583 + $0x38] sm:$0xff]
      %v592 = vld [vmem:[%s583 + $0x40] sm:$0xff]
      %v593 = vld [vmem:[%s583 + $0x48] sm:$0xff]
      %v594 = vld [vmem:[%s583 + $0x50] sm:$0xff]
      %vm595 = vcmask 1043456
      %v596 = vrot.slane %v283, 4
      %v597 = vrot.slane %v284, 4
      %v598 = vsel %vm595, %v596, %v597
      %v599 = vrot.slane %v285, 4
      %v600 = vsel %vm595, %v597, %v599
      %v601 = vrot.slane %v286, 4
      %v602 = vsel %vm595, %v599, %v601
      %v603 = vsel %vm402, %v598, 0
      %v605 = vsel %vm402, %v600, 0
      %v607 = vsel %vm402, %v602, 0
      %609 = vmatprep.subr.mxu0 0.0
      %610 = vmatpush1.msra.mxu0 0.0
      %611 = vmatprep.subr.mxu0 0.0
      %612 = vmatpush1.msra.mxu0 0.0
      %613 = vmatprep.subr.mxu0 0.0
      %614 = vmatpush1.msra.mxu0 0.0
      %615 = vmatprep.subr.mxu0 0.0
      %616 = vmatpush1.msra.mxu0 0.0
      %617 = vmatprep.subr.mxu0 0.0
      %618 = vmatpush1.msra.mxu0 0.0
      %619 = vmatprep.subr.mxu0 0.0
      %620 = vmatpush1.msra.mxu0 %v594
      %621 = vmatprep.subr.mxu0 0.0
      %622 = vmatpush1.msra.mxu0 %v593
      %623 = vmatprep.subr.mxu0 0.0
      %624 = vmatpush1.msra.mxu0 %v592
      %625 = vmatprep.subr.mxu0 0.0
      %626 = vmatpush1.msra.mxu0 %v591
      %627 = vmatprep.subr.mxu0 0.0
      %628 = vmatpush1.msra.mxu0 %v590
      %629 = vmatprep.subr.mxu0 0.0
      %630 = vmatpush1.msra.mxu0 %v589
      %631 = vmatprep.subr.mxu0 0.0
      %632 = vmatpush1.msra.mxu0 %v588
      %633 = vmatprep.subr.mxu0 0.0
      %634 = vmatpush1.msra.mxu0 %v587
      %635 = vmatprep.subr.mxu0 0.0
      %636 = vmatpush1.msra.mxu0 %v586
      %637 = vmatprep.subr.mxu0 0.0
      %638 = vmatpush1.msra.mxu0 %v585
      %639 = vmatprep.subr.mxu0 0.0
      %640 = vmatpush1.msra.mxu0 %v584
      %641 = vmatprep.subr.mxu0 0.0
      %642 = vmatpush2.msra.mxu0 0.0
      %643 = vmatprep.subr.mxu0 0.0
      %644 = vmatpush2.msra.mxu0 0.0
      %645 = vmatprep.subr.mxu0 0.0
      %646 = vmatpush2.msra.mxu0 0.0
      %647 = vmatprep.subr.mxu0 0.0
      %648 = vmatpush2.msra.mxu0 0.0
      %649 = vmatprep.subr.mxu0 0.0
      %650 = vmatpush2.msra.mxu0 0.0
      %651 = vmatprep.subr.mxu0 0.0
      %652 = vmatpush2.msra.mxu0 0.0
      %653 = vmatprep.subr.mxu0 0.0
      %654 = vmatpush2.msra.mxu0 0.0
      %655 = vmatprep.subr.mxu0 0.0
      %656 = vmatpush2.msra.mxu0 0.0
      %657 = vmatprep.subr.mxu0 0.0
      %658 = vmatpush2.msra.mxu0 0.0
      %659 = vmatprep.subr.mxu0 0.0
      %660 = vmatpush2.msra.mxu0 0.0
      %661 = vmatprep.subr.mxu0 0.0
      %662 = vmatpush2.msra.mxu0 0.0
      %663 = vmatprep.subr.mxu0 0.0
      %664 = vmatpush2.msra.mxu0 0.0
      %665 = vmatprep.subr.mxu0 0.0
      %666 = vmatpush2.msra.mxu0 0.0
      %667 = vmatprep.subr.mxu0 0.0
      %668 = vmatpush2.msra.mxu0 0.0
      %669 = vmatprep.subr.mxu0 0.0
      %670 = vmatpush2.msra.mxu0 0.0
      %671 = vmatprep.subr.mxu0 0.0
      %672 = vmatpush2.msra.mxu0 0.0
      %673 = vmatprep.mubr.f32.mxu0 0.0
      %674 = vmatmul.mubr.f32.gmra.mxu0 %v603
      %v675 = vpop.f32.mrf.mxu0
      %v676 = vadd.f32 0.0, %v675
      %v677 = vpop.f32.mrf.mxu0
      %678 = vmatprep.mubr.f32.mxu0 0.0
      %679 = vmatmul.mubr.f32.gmra.mxu0 %v605
      %v680 = vpop.f32.mrf.mxu0
      %v681 = vadd.f32 0.0, %v680
      %v682 = vpop.f32.mrf.mxu0
      %683 = vmatprep.mubr.f32.mxu0 0.0
      %684 = vmatmul.mubr.f32.gmra.mxu0 %v607
      %v685 = vpop.f32.mrf.mxu0
      %v686 = vadd.f32 0.0, %v685
      %v687 = vpop.f32.mrf.mxu0
      %688 = vdwg.mxu0
      %v689 = vadd.f32 %v570, %v676
      %v690 = vadd.f32 %v575, %v681
      %v691 = vadd.f32 %v580, %v686
      %v692 = vlaneseq
      %v693 = vshrl.u32 %v692, 7
      %v694 = vsub.s32 0, %v693
      %v695 = vrot.slane %v366, %v694
      %v696 = vadd.f32 %v689, %v695
      %v697 = vadd.f32 %v690, %v695
      %v698 = vadd.f32 %v691, %v695
      %v699 = vmul.f32 %v696, %v363
      %v700 = vmul.f32 %v697, %v364
      %v701 = vmul.f32 %v698, %v365
      %v702 = vld [vmem:[%s4 + $0x1] sm:$0x1]
      %v703 = vld [vmem:[%s2] sm:$0xff]
      %v704 = vld [vmem:[%s2 + $0x8] sm:$0xff]
      %v705 = vld [vmem:[%s2 + $0x10] sm:$0xff]
      %v706 = vld [vmem:[%s2 + $0x18] sm:$0xff]
      %v707 = vld [vmem:[%s2 + $0x20] sm:$0xff]
      %v708 = vld [vmem:[%s2 + $0x28] sm:$0xff]
      %v709 = vld [vmem:[%s2 + $0x30] sm:$0xff]
      %v710 = vld [vmem:[%s2 + $0x38] sm:$0xff]
      %v711 = vld [vmem:[%s2 + $0x40] sm:$0xff]
      %v712 = vld [vmem:[%s2 + $0x48] sm:$0xff]
      %v713 = vld [vmem:[%s2 + $0x50] sm:$0xff]
      %s714 = scalar_lea.vmem %s2, 88
      %v715 = vld [vmem:[%s714] sm:$0xff]
      %v716 = vld [vmem:[%s714 + $0x8] sm:$0xff]
      %v717 = vld [vmem:[%s714 + $0x10] sm:$0xff]
      %v718 = vld [vmem:[%s714 + $0x18] sm:$0xff]
      %v719 = vld [vmem:[%s714 + $0x20] sm:$0xff]
      %v720 = vld [vmem:[%s714 + $0x28] sm:$0xff]
      %v721 = vld [vmem:[%s714 + $0x30] sm:$0xff]
      %v722 = vld [vmem:[%s714 + $0x38] sm:$0xff]
      %v723 = vld [vmem:[%s714 + $0x40] sm:$0xff]
      %v724 = vld [vmem:[%s714 + $0x48] sm:$0xff]
      %v725 = vld [vmem:[%s714 + $0x50] sm:$0xff]
      %v730 = vrot.slane %v304, 2
      %v731 = vrot.slane %v306, 2
      %v732 = vsel %vm489, %v730, %v731
      %v733 = vrot.slane %v308, 2
      %v734 = vsel %vm489, %v731, %v733
      %v735 = vrot.slane %v310, 2
      %v736 = vsel %vm489, %v733, %v735
      %v737 = vsel %vm402, %v732, 0
      %v739 = vsel %vm402, %v734, 0
      %v741 = vsel %vm402, %v736, 0
      %743 = vmatprep.subr.mxu0 0.0
      %744 = vmatpush1.msra.mxu0 0.0
      %745 = vmatprep.subr.mxu0 0.0
      %746 = vmatpush1.msra.mxu0 0.0
      %747 = vmatprep.subr.mxu0 0.0
      %748 = vmatpush1.msra.mxu0 0.0
      %749 = vmatprep.subr.mxu0 0.0
      %750 = vmatpush1.msra.mxu0 0.0
      %751 = vmatprep.subr.mxu0 0.0
      %752 = vmatpush1.msra.mxu0 0.0
      %753 = vmatprep.subr.mxu0 0.0
      %754 = vmatpush1.msra.mxu0 %v725
      %755 = vmatprep.subr.mxu0 0.0
      %756 = vmatpush1.msra.mxu0 %v724
      %757 = vmatprep.subr.mxu0 0.0
      %758 = vmatpush1.msra.mxu0 %v723
      %759 = vmatprep.subr.mxu0 0.0
      %760 = vmatpush1.msra.mxu0 %v722
      %761 = vmatprep.subr.mxu0 0.0
      %762 = vmatpush1.msra.mxu0 %v721
      %763 = vmatprep.subr.mxu0 0.0
      %764 = vmatpush1.msra.mxu0 %v720
      %765 = vmatprep.subr.mxu0 0.0
      %766 = vmatpush1.msra.mxu0 %v719
      %767 = vmatprep.subr.mxu0 0.0
      %768 = vmatpush1.msra.mxu0 %v718
      %769 = vmatprep.subr.mxu0 0.0
      %770 = vmatpush1.msra.mxu0 %v717
      %771 = vmatprep.subr.mxu0 0.0
      %772 = vmatpush1.msra.mxu0 %v716
      %773 = vmatprep.subr.mxu0 0.0
      %774 = vmatpush1.msra.mxu0 %v715
      %775 = vmatprep.subr.mxu0 0.0
      %776 = vmatpush2.msra.mxu0 0.0
      %777 = vmatprep.subr.mxu0 0.0
      %778 = vmatpush2.msra.mxu0 0.0
      %779 = vmatprep.subr.mxu0 0.0
      %780 = vmatpush2.msra.mxu0 0.0
      %781 = vmatprep.subr.mxu0 0.0
      %782 = vmatpush2.msra.mxu0 0.0
      %783 = vmatprep.subr.mxu0 0.0
      %784 = vmatpush2.msra.mxu0 0.0
      %785 = vmatprep.subr.mxu0 0.0
      %786 = vmatpush2.msra.mxu0 0.0
      %787 = vmatprep.subr.mxu0 0.0
      %788 = vmatpush2.msra.mxu0 0.0
      %789 = vmatprep.subr.mxu0 0.0
      %790 = vmatpush2.msra.mxu0 0.0
      %791 = vmatprep.subr.mxu0 0.0
      %792 = vmatpush2.msra.mxu0 0.0
      %793 = vmatprep.subr.mxu0 0.0
      %794 = vmatpush2.msra.mxu0 0.0
      %795 = vmatprep.subr.mxu0 0.0
      %796 = vmatpush2.msra.mxu0 0.0
      %797 = vmatprep.subr.mxu0 0.0
      %798 = vmatpush2.msra.mxu0 0.0
      %799 = vmatprep.subr.mxu0 0.0
      %800 = vmatpush2.msra.mxu0 0.0
      %801 = vmatprep.subr.mxu0 0.0
      %802 = vmatpush2.msra.mxu0 0.0
      %803 = vmatprep.subr.mxu0 0.0
      %804 = vmatpush2.msra.mxu0 0.0
      %805 = vmatprep.subr.mxu0 0.0
      %806 = vmatpush2.msra.mxu0 0.0
      %807 = vmatprep.mubr.f32.mxu0 0.0
      %808 = vmatmul.mubr.f32.gmra.mxu0 %v737
      %v809 = vpop.f32.mrf.mxu0
      %v810 = vadd.f32 0.0, %v809
      %v811 = vpop.f32.mrf.mxu0
      %812 = vmatprep.mubr.f32.mxu0 0.0
      %813 = vmatmul.mubr.f32.gmra.mxu0 %v739
      %v814 = vpop.f32.mrf.mxu0
      %v815 = vadd.f32 0.0, %v814
      %v816 = vpop.f32.mrf.mxu0
      %817 = vmatprep.mubr.f32.mxu0 0.0
      %818 = vmatmul.mubr.f32.gmra.mxu0 %v741
      %v819 = vpop.f32.mrf.mxu0
      %v820 = vadd.f32 0.0, %v819
      %v821 = vpop.f32.mrf.mxu0
      %822 = vdwg.mxu0
      %vm823 = vcmask 1046528
      %v824 = vrot.slane %v304, 1
      %v825 = vrot.slane %v306, 1
      %v826 = vsel %vm823, %v824, %v825
      %v827 = vrot.slane %v308, 1
      %v828 = vsel %vm823, %v825, %v827
      %v829 = vrot.slane %v310, 1
      %v830 = vsel %vm823, %v827, %v829
      %v831 = vsel %vm402, %v826, 0
      %v833 = vsel %vm402, %v828, 0
      %v835 = vsel %vm402, %v830, 0
      %837 = vmatprep.subr.mxu0 0.0
      %838 = vmatpush1.msra.mxu0 0.0
      %839 = vmatprep.subr.mxu0 0.0
      %840 = vmatpush1.msra.mxu0 0.0
      %841 = vmatprep.subr.mxu0 0.0
      %842 = vmatpush1.msra.mxu0 0.0
      %843 = vmatprep.subr.mxu0 0.0
      %844 = vmatpush1.msra.mxu0 0.0
      %845 = vmatprep.subr.mxu0 0.0
      %846 = vmatpush1.msra.mxu0 0.0
      %847 = vmatprep.subr.mxu0 0.0
      %848 = vmatpush1.msra.mxu0 %v713
      %849 = vmatprep.subr.mxu0 0.0
      %850 = vmatpush1.msra.mxu0 %v712
      %851 = vmatprep.subr.mxu0 0.0
      %852 = vmatpush1.msra.mxu0 %v711
      %853 = vmatprep.subr.mxu0 0.0
      %854 = vmatpush1.msra.mxu0 %v710
      %855 = vmatprep.subr.mxu0 0.0
      %856 = vmatpush1.msra.mxu0 %v709
      %857 = vmatprep.subr.mxu0 0.0
      %858 = vmatpush1.msra.mxu0 %v708
      %859 = vmatprep.subr.mxu0 0.0
      %860 = vmatpush1.msra.mxu0 %v707
      %861 = vmatprep.subr.mxu0 0.0
      %862 = vmatpush1.msra.mxu0 %v706
      %863 = vmatprep.subr.mxu0 0.0
      %864 = vmatpush1.msra.mxu0 %v705
      %865 = vmatprep.subr.mxu0 0.0
      %866 = vmatpush1.msra.mxu0 %v704
      %867 = vmatprep.subr.mxu0 0.0
      %868 = vmatpush1.msra.mxu0 %v703
      %869 = vmatprep.subr.mxu0 0.0
      %870 = vmatpush2.msra.mxu0 0.0
      %871 = vmatprep.subr.mxu0 0.0
      %872 = vmatpush2.msra.mxu0 0.0
      %873 = vmatprep.subr.mxu0 0.0
      %874 = vmatpush2.msra.mxu0 0.0
      %875 = vmatprep.subr.mxu0 0.0
      %876 = vmatpush2.msra.mxu0 0.0
      %877 = vmatprep.subr.mxu0 0.0
      %878 = vmatpush2.msra.mxu0 0.0
      %879 = vmatprep.subr.mxu0 0.0
      %880 = vmatpush2.msra.mxu0 0.0
      %881 = vmatprep.subr.mxu0 0.0
      %882 = vmatpush2.msra.mxu0 0.0
      %883 = vmatprep.subr.mxu0 0.0
      %884 = vmatpush2.msra.mxu0 0.0
      %885 = vmatprep.subr.mxu0 0.0
      %886 = vmatpush2.msra.mxu0 0.0
      %887 = vmatprep.subr.mxu0 0.0
      %888 = vmatpush2.msra.mxu0 0.0
      %889 = vmatprep.subr.mxu0 0.0
      %890 = vmatpush2.msra.mxu0 0.0
      %891 = vmatprep.subr.mxu0 0.0
      %892 = vmatpush2.msra.mxu0 0.0
      %893 = vmatprep.subr.mxu0 0.0
      %894 = vmatpush2.msra.mxu0 0.0
      %895 = vmatprep.subr.mxu0 0.0
      %896 = vmatpush2.msra.mxu0 0.0
      %897 = vmatprep.subr.mxu0 0.0
      %898 = vmatpush2.msra.mxu0 0.0
      %899 = vmatprep.subr.mxu0 0.0
      %900 = vmatpush2.msra.mxu0 0.0
      %901 = vmatprep.mubr.f32.mxu0 0.0
      %902 = vmatmul.mubr.f32.gmra.mxu0 %v831
      %v903 = vpop.f32.mrf.mxu0
      %v904 = vadd.f32 %v810, %v903
      %v905 = vpop.f32.mrf.mxu0
      %906 = vmatprep.mubr.f32.mxu0 0.0
      %907 = vmatmul.mubr.f32.gmra.mxu0 %v833
      %v908 = vpop.f32.mrf.mxu0
      %v909 = vadd.f32 %v815, %v908
      %v910 = vpop.f32.mrf.mxu0
      %911 = vmatprep.mubr.f32.mxu0 0.0
      %912 = vmatmul.mubr.f32.gmra.mxu0 %v835
      %v913 = vpop.f32.mrf.mxu0
      %v914 = vadd.f32 %v820, %v913
      %v915 = vpop.f32.mrf.mxu0
      %916 = vdwg.mxu0
      %s917 = scalar_lea.vmem %s2, 176
      %v918 = vld [vmem:[%s917] sm:$0xff]
      %v919 = vld [vmem:[%s917 + $0x8] sm:$0xff]
      %v920 = vld [vmem:[%s917 + $0x10] sm:$0xff]
      %v921 = vld [vmem:[%s917 + $0x18] sm:$0xff]
      %v922 = vld [vmem:[%s917 + $0x20] sm:$0xff]
      %v923 = vld [vmem:[%s917 + $0x28] sm:$0xff]
      %v924 = vld [vmem:[%s917 + $0x30] sm:$0xff]
      %v925 = vld [vmem:[%s917 + $0x38] sm:$0xff]
      %v926 = vld [vmem:[%s917 + $0x40] sm:$0xff]
      %v927 = vld [vmem:[%s917 + $0x48] sm:$0xff]
      %v928 = vld [vmem:[%s917 + $0x50] sm:$0xff]
      %v929 = vrot.slane %v304, 3
      %v930 = vrot.slane %v306, 3
      %v931 = vsel %vm394, %v929, %v930
      %v932 = vrot.slane %v308, 3
      %v933 = vsel %vm394, %v930, %v932
      %v934 = vrot.slane %v310, 3
      %v935 = vsel %vm394, %v932, %v934
      %v936 = vsel %vm402, %v931, 0
      %v938 = vsel %vm402, %v933, 0
      %v940 = vsel %vm402, %v935, 0
      %942 = vmatprep.subr.mxu0 0.0
      %943 = vmatpush1.msra.mxu0 0.0
      %944 = vmatprep.subr.mxu0 0.0
      %945 = vmatpush1.msra.mxu0 0.0
      %946 = vmatprep.subr.mxu0 0.0
      %947 = vmatpush1.msra.mxu0 0.0
      %948 = vmatprep.subr.mxu0 0.0
      %949 = vmatpush1.msra.mxu0 0.0
      %950 = vmatprep.subr.mxu0 0.0
      %951 = vmatpush1.msra.mxu0 0.0
      %952 = vmatprep.subr.mxu0 0.0
      %953 = vmatpush1.msra.mxu0 %v928
      %954 = vmatprep.subr.mxu0 0.0
      %955 = vmatpush1.msra.mxu0 %v927
      %956 = vmatprep.subr.mxu0 0.0
      %957 = vmatpush1.msra.mxu0 %v926
      %958 = vmatprep.subr.mxu0 0.0
      %959 = vmatpush1.msra.mxu0 %v925
      %960 = vmatprep.subr.mxu0 0.0
      %961 = vmatpush1.msra.mxu0 %v924
      %962 = vmatprep.subr.mxu0 0.0
      %963 = vmatpush1.msra.mxu0 %v923
      %964 = vmatprep.subr.mxu0 0.0
      %965 = vmatpush1.msra.mxu0 %v922
      %966 = vmatprep.subr.mxu0 0.0
      %967 = vmatpush1.msra.mxu0 %v921
      %968 = vmatprep.subr.mxu0 0.0
      %969 = vmatpush1.msra.mxu0 %v920
      %970 = vmatprep.subr.mxu0 0.0
      %971 = vmatpush1.msra.mxu0 %v919
      %972 = vmatprep.subr.mxu0 0.0
      %973 = vmatpush1.msra.mxu0 %v918
      %974 = vmatprep.subr.mxu0 0.0
      %975 = vmatpush2.msra.mxu0 0.0
      %976 = vmatprep.subr.mxu0 0.0
      %977 = vmatpush2.msra.mxu0 0.0
      %978 = vmatprep.subr.mxu0 0.0
      %979 = vmatpush2.msra.mxu0 0.0
      %980 = vmatprep.subr.mxu0 0.0
      %981 = vmatpush2.msra.mxu0 0.0
      %982 = vmatprep.subr.mxu0 0.0
      %983 = vmatpush2.msra.mxu0 0.0
      %984 = vmatprep.subr.mxu0 0.0
      %985 = vmatpush2.msra.mxu0 0.0
      %986 = vmatprep.subr.mxu0 0.0
      %987 = vmatpush2.msra.mxu0 0.0
      %988 = vmatprep.subr.mxu0 0.0
      %989 = vmatpush2.msra.mxu0 0.0
      %990 = vmatprep.subr.mxu0 0.0
      %991 = vmatpush2.msra.mxu0 0.0
      %992 = vmatprep.subr.mxu0 0.0
      %993 = vmatpush2.msra.mxu0 0.0
      %994 = vmatprep.subr.mxu0 0.0
      %995 = vmatpush2.msra.mxu0 0.0
      %996 = vmatprep.subr.mxu0 0.0
      %997 = vmatpush2.msra.mxu0 0.0
      %998 = vmatprep.subr.mxu0 0.0
      %999 = vmatpush2.msra.mxu0 0.0
      %1000 = vmatprep.subr.mxu0 0.0
      %1001 = vmatpush2.msra.mxu0 0.0
      %1002 = vmatprep.subr.mxu0 0.0
      %1003 = vmatpush2.msra.mxu0 0.0
      %1004 = vmatprep.subr.mxu0 0.0
      %1005 = vmatpush2.msra.mxu0 0.0
      %1006 = vmatprep.mubr.f32.mxu0 0.0
      %1007 = vmatmul.mubr.f32.gmra.mxu0 %v936
      %v1008 = vpop.f32.mrf.mxu0
      %v1009 = vadd.f32 0.0, %v1008
      %v1010 = vpop.f32.mrf.mxu0
      %1011 = vmatprep.mubr.f32.mxu0 0.0
      %1012 = vmatmul.mubr.f32.gmra.mxu0 %v938
      %v1013 = vpop.f32.mrf.mxu0
      %v1014 = vadd.f32 0.0, %v1013
      %v1015 = vpop.f32.mrf.mxu0
      %1016 = vmatprep.mubr.f32.mxu0 0.0
      %1017 = vmatmul.mubr.f32.gmra.mxu0 %v940
      %v1018 = vpop.f32.mrf.mxu0
      %v1019 = vadd.f32 0.0, %v1018
      %v1020 = vpop.f32.mrf.mxu0
      %1021 = vdwg.mxu0
      %v1022 = vadd.f32 %v904, %v1009
      %v1023 = vadd.f32 %v909, %v1014
      %v1024 = vadd.f32 %v914, %v1019
      %s1025 = scalar_lea.vmem %s2, 264
      %v1026 = vld [vmem:[%s1025] sm:$0xff]
      %v1027 = vld [vmem:[%s1025 + $0x8] sm:$0xff]
      %v1028 = vld [vmem:[%s1025 + $0x10] sm:$0xff]
      %v1029 = vld [vmem:[%s1025 + $0x18] sm:$0xff]
      %v1030 = vld [vmem:[%s1025 + $0x20] sm:$0xff]
      %v1031 = vld [vmem:[%s1025 + $0x28] sm:$0xff]
      %v1032 = vld [vmem:[%s1025 + $0x30] sm:$0xff]
      %v1033 = vld [vmem:[%s1025 + $0x38] sm:$0xff]
      %v1034 = vld [vmem:[%s1025 + $0x40] sm:$0xff]
      %v1035 = vld [vmem:[%s1025 + $0x48] sm:$0xff]
      %v1036 = vld [vmem:[%s1025 + $0x50] sm:$0xff]
      %v1037 = vrot.slane %v304, 4
      %v1038 = vrot.slane %v306, 4
      %v1039 = vsel %vm595, %v1037, %v1038
      %v1040 = vrot.slane %v308, 4
      %v1041 = vsel %vm595, %v1038, %v1040
      %v1042 = vrot.slane %v310, 4
      %v1043 = vsel %vm595, %v1040, %v1042
      %v1044 = vsel %vm402, %v1039, 0
      %v1046 = vsel %vm402, %v1041, 0
      %v1048 = vsel %vm402, %v1043, 0
      %1050 = vmatprep.subr.mxu0 0.0
      %1051 = vmatpush1.msra.mxu0 0.0
      %1052 = vmatprep.subr.mxu0 0.0
      %1053 = vmatpush1.msra.mxu0 0.0
      %1054 = vmatprep.subr.mxu0 0.0
      %1055 = vmatpush1.msra.mxu0 0.0
      %1056 = vmatprep.subr.mxu0 0.0
      %1057 = vmatpush1.msra.mxu0 0.0
      %1058 = vmatprep.subr.mxu0 0.0
      %1059 = vmatpush1.msra.mxu0 0.0
      %1060 = vmatprep.subr.mxu0 0.0
      %1061 = vmatpush1.msra.mxu0 %v1036
      %1062 = vmatprep.subr.mxu0 0.0
      %1063 = vmatpush1.msra.mxu0 %v1035
      %1064 = vmatprep.subr.mxu0 0.0
      %1065 = vmatpush1.msra.mxu0 %v1034
      %1066 = vmatprep.subr.mxu0 0.0
      %1067 = vmatpush1.msra.mxu0 %v1033
      %1068 = vmatprep.subr.mxu0 0.0
      %1069 = vmatpush1.msra.mxu0 %v1032
      %1070 = vmatprep.subr.mxu0 0.0
      %1071 = vmatpush1.msra.mxu0 %v1031
      %1072 = vmatprep.subr.mxu0 0.0
      %1073 = vmatpush1.msra.mxu0 %v1030
      %1074 = vmatprep.subr.mxu0 0.0
      %1075 = vmatpush1.msra.mxu0 %v1029
      %1076 = vmatprep.subr.mxu0 0.0
      %1077 = vmatpush1.msra.mxu0 %v1028
      %1078 = vmatprep.subr.mxu0 0.0
      %1079 = vmatpush1.msra.mxu0 %v1027
      %1080 = vmatprep.subr.mxu0 0.0
      %1081 = vmatpush1.msra.mxu0 %v1026
      %1082 = vmatprep.subr.mxu0 0.0
      %1083 = vmatpush2.msra.mxu0 0.0
      %1084 = vmatprep.subr.mxu0 0.0
      %1085 = vmatpush2.msra.mxu0 0.0
      %1086 = vmatprep.subr.mxu0 0.0
      %1087 = vmatpush2.msra.mxu0 0.0
      %1088 = vmatprep.subr.mxu0 0.0
      %1089 = vmatpush2.msra.mxu0 0.0
      %1090 = vmatprep.subr.mxu0 0.0
      %1091 = vmatpush2.msra.mxu0 0.0
      %1092 = vmatprep.subr.mxu0 0.0
      %1093 = vmatpush2.msra.mxu0 0.0
      %1094 = vmatprep.subr.mxu0 0.0
      %1095 = vmatpush2.msra.mxu0 0.0
      %1096 = vmatprep.subr.mxu0 0.0
      %1097 = vmatpush2.msra.mxu0 0.0
      %1098 = vmatprep.subr.mxu0 0.0
      %1099 = vmatpush2.msra.mxu0 0.0
      %1100 = vmatprep.subr.mxu0 0.0
      %1101 = vmatpush2.msra.mxu0 0.0
      %1102 = vmatprep.subr.mxu0 0.0
      %1103 = vmatpush2.msra.mxu0 0.0
      %1104 = vmatprep.subr.mxu0 0.0
      %1105 = vmatpush2.msra.mxu0 0.0
      %1106 = vmatprep.subr.mxu0 0.0
      %1107 = vmatpush2.msra.mxu0 0.0
      %1108 = vmatprep.subr.mxu0 0.0
      %1109 = vmatpush2.msra.mxu0 0.0
      %1110 = vmatprep.subr.mxu0 0.0
      %1111 = vmatpush2.msra.mxu0 0.0
      %1112 = vmatprep.subr.mxu0 0.0
      %1113 = vmatpush2.msra.mxu0 0.0
      %1114 = vmatprep.mubr.f32.mxu0 0.0
      %1115 = vmatmul.mubr.f32.gmra.mxu0 %v1044
      %v1116 = vpop.f32.mrf.mxu0
      %v1117 = vadd.f32 0.0, %v1116
      %v1118 = vpop.f32.mrf.mxu0
      %1119 = vmatprep.mubr.f32.mxu0 0.0
      %1120 = vmatmul.mubr.f32.gmra.mxu0 %v1046
      %v1121 = vpop.f32.mrf.mxu0
      %v1122 = vadd.f32 0.0, %v1121
      %v1123 = vpop.f32.mrf.mxu0
      %1124 = vmatprep.mubr.f32.mxu0 0.0
      %1125 = vmatmul.mubr.f32.gmra.mxu0 %v1048
      %v1126 = vpop.f32.mrf.mxu0
      %v1127 = vadd.f32 0.0, %v1126
      %v1128 = vpop.f32.mrf.mxu0
      %1129 = vdwg.mxu0
      %v1130 = vadd.f32 %v1022, %v1117
      %v1131 = vadd.f32 %v1023, %v1122
      %v1132 = vadd.f32 %v1024, %v1127
      %s1133 = scalar_lea.vmem %s2, 352
      %v1134 = vld [vmem:[%s1133] sm:$0xff]
      %v1135 = vld [vmem:[%s1133 + $0x8] sm:$0xff]
      %v1136 = vld [vmem:[%s1133 + $0x10] sm:$0xff]
      %v1137 = vld [vmem:[%s1133 + $0x18] sm:$0xff]
      %v1138 = vld [vmem:[%s1133 + $0x20] sm:$0xff]
      %v1139 = vld [vmem:[%s1133 + $0x28] sm:$0xff]
      %v1140 = vld [vmem:[%s1133 + $0x30] sm:$0xff]
      %v1141 = vld [vmem:[%s1133 + $0x38] sm:$0xff]
      %v1142 = vld [vmem:[%s1133 + $0x40] sm:$0xff]
      %v1143 = vld [vmem:[%s1133 + $0x48] sm:$0xff]
      %v1144 = vld [vmem:[%s1133 + $0x50] sm:$0xff]
      %vm1145 = vcmask 1042432
      %v1146 = vrot.slane %v304, 5
      %v1147 = vrot.slane %v306, 5
      %v1148 = vsel %vm1145, %v1146, %v1147
      %v1149 = vrot.slane %v308, 5
      %v1150 = vsel %vm1145, %v1147, %v1149
      %v1151 = vrot.slane %v310, 5
      %v1152 = vsel %vm1145, %v1149, %v1151
      %v1153 = vsel %vm402, %v1148, 0
      %v1155 = vsel %vm402, %v1150, 0
      %v1157 = vsel %vm402, %v1152, 0
      %1159 = vmatprep.subr.mxu0 0.0
      %1160 = vmatpush1.msra.mxu0 0.0
      %1161 = vmatprep.subr.mxu0 0.0
      %1162 = vmatpush1.msra.mxu0 0.0
      %1163 = vmatprep.subr.mxu0 0.0
      %1164 = vmatpush1.msra.mxu0 0.0
      %1165 = vmatprep.subr.mxu0 0.0
      %1166 = vmatpush1.msra.mxu0 0.0
      %1167 = vmatprep.subr.mxu0 0.0
      %1168 = vmatpush1.msra.mxu0 0.0
      %1169 = vmatprep.subr.mxu0 0.0
      %1170 = vmatpush1.msra.mxu0 %v1144
      %1171 = vmatprep.subr.mxu0 0.0
      %1172 = vmatpush1.msra.mxu0 %v1143
      %1173 = vmatprep.subr.mxu0 0.0
      %1174 = vmatpush1.msra.mxu0 %v1142
      %1175 = vmatprep.subr.mxu0 0.0
      %1176 = vmatpush1.msra.mxu0 %v1141
      %1177 = vmatprep.subr.mxu0 0.0
      %1178 = vmatpush1.msra.mxu0 %v1140
      %1179 = vmatprep.subr.mxu0 0.0
      %1180 = vmatpush1.msra.mxu0 %v1139
      %1181 = vmatprep.subr.mxu0 0.0
      %1182 = vmatpush1.msra.mxu0 %v1138
      %1183 = vmatprep.subr.mxu0 0.0
      %1184 = vmatpush1.msra.mxu0 %v1137
      %1185 = vmatprep.subr.mxu0 0.0
      %1186 = vmatpush1.msra.mxu0 %v1136
      %1187 = vmatprep.subr.mxu0 0.0
      %1188 = vmatpush1.msra.mxu0 %v1135
      %1189 = vmatprep.subr.mxu0 0.0
      %1190 = vmatpush1.msra.mxu0 %v1134
      %1191 = vmatprep.subr.mxu0 0.0
      %1192 = vmatpush2.msra.mxu0 0.0
      %1193 = vmatprep.subr.mxu0 0.0
      %1194 = vmatpush2.msra.mxu0 0.0
      %1195 = vmatprep.subr.mxu0 0.0
      %1196 = vmatpush2.msra.mxu0 0.0
      %1197 = vmatprep.subr.mxu0 0.0
      %1198 = vmatpush2.msra.mxu0 0.0
      %1199 = vmatprep.subr.mxu0 0.0
      %1200 = vmatpush2.msra.mxu0 0.0
      %1201 = vmatprep.subr.mxu0 0.0
      %1202 = vmatpush2.msra.mxu0 0.0
      %1203 = vmatprep.subr.mxu0 0.0
      %1204 = vmatpush2.msra.mxu0 0.0
      %1205 = vmatprep.subr.mxu0 0.0
      %1206 = vmatpush2.msra.mxu0 0.0
      %1207 = vmatprep.subr.mxu0 0.0
      %1208 = vmatpush2.msra.mxu0 0.0
      %1209 = vmatprep.subr.mxu0 0.0
      %1210 = vmatpush2.msra.mxu0 0.0
      %1211 = vmatprep.subr.mxu0 0.0
      %1212 = vmatpush2.msra.mxu0 0.0
      %1213 = vmatprep.subr.mxu0 0.0
      %1214 = vmatpush2.msra.mxu0 0.0
      %1215 = vmatprep.subr.mxu0 0.0
      %1216 = vmatpush2.msra.mxu0 0.0
      %1217 = vmatprep.subr.mxu0 0.0
      %1218 = vmatpush2.msra.mxu0 0.0
      %1219 = vmatprep.subr.mxu0 0.0
      %1220 = vmatpush2.msra.mxu0 0.0
      %1221 = vmatprep.subr.mxu0 0.0
      %1222 = vmatpush2.msra.mxu0 0.0
      %1223 = vmatprep.mubr.f32.mxu0 0.0
      %1224 = vmatmul.mubr.f32.gmra.mxu0 %v1153
      %v1225 = vpop.f32.mrf.mxu0
      %v1226 = vadd.f32 0.0, %v1225
      %v1227 = vpop.f32.mrf.mxu0
      %1228 = vmatprep.mubr.f32.mxu0 0.0
      %1229 = vmatmul.mubr.f32.gmra.mxu0 %v1155
      %v1230 = vpop.f32.mrf.mxu0
      %v1231 = vadd.f32 0.0, %v1230
      %v1232 = vpop.f32.mrf.mxu0
      %1233 = vmatprep.mubr.f32.mxu0 0.0
      %1234 = vmatmul.mubr.f32.gmra.mxu0 %v1157
      %v1235 = vpop.f32.mrf.mxu0
      %v1236 = vadd.f32 0.0, %v1235
      %v1237 = vpop.f32.mrf.mxu0
      %1238 = vdwg.mxu0
      %v1239 = vadd.f32 %v1130, %v1226
      %v1240 = vadd.f32 %v1131, %v1231
      %v1241 = vadd.f32 %v1132, %v1236
      %v1242 = vlaneseq
      %v1243 = vshrl.u32 %v1242, 7
      %v1244 = vsub.s32 0, %v1243
      %v1245 = vrot.slane %v702, %v1244
      %v1246 = vadd.f32 %v1239, %v1245
      %v1247 = vadd.f32 %v1240, %v1245
      %v1248 = vadd.f32 %v1241, %v1245
      %v1249 = vmul.f32 %v1246, %v363
      %v1250 = vmul.f32 %v1247, %v364
      %v1251 = vmul.f32 %v1248, %v365
      %v1252 = vld [vmem:[%s4 + $0x2] sm:$0x1]
      %v1253 = vld [vmem:[%s3] sm:$0xff]
      %v1254 = vld [vmem:[%s3 + $0x8] sm:$0xff]
      %v1255 = vld [vmem:[%s3 + $0x10] sm:$0xff]
      %v1256 = vld [vmem:[%s3 + $0x18] sm:$0xff]
      %v1257 = vld [vmem:[%s3 + $0x20] sm:$0xff]
      %v1258 = vld [vmem:[%s3 + $0x28] sm:$0xff]
      %v1259 = vld [vmem:[%s3 + $0x30] sm:$0xff]
      %v1260 = vld [vmem:[%s3 + $0x38] sm:$0xff]
      %v1261 = vld [vmem:[%s3 + $0x40] sm:$0xff]
      %v1262 = vld [vmem:[%s3 + $0x48] sm:$0xff]
      %v1263 = vld [vmem:[%s3 + $0x50] sm:$0xff]
      %s1264 = scalar_lea.vmem %s3, 88
      %v1265 = vld [vmem:[%s1264] sm:$0xff]
      %v1266 = vld [vmem:[%s1264 + $0x8] sm:$0xff]
      %v1267 = vld [vmem:[%s1264 + $0x10] sm:$0xff]
      %v1268 = vld [vmem:[%s1264 + $0x18] sm:$0xff]
      %v1269 = vld [vmem:[%s1264 + $0x20] sm:$0xff]
      %v1270 = vld [vmem:[%s1264 + $0x28] sm:$0xff]
      %v1271 = vld [vmem:[%s1264 + $0x30] sm:$0xff]
      %v1272 = vld [vmem:[%s1264 + $0x38] sm:$0xff]
      %v1273 = vld [vmem:[%s1264 + $0x40] sm:$0xff]
      %v1274 = vld [vmem:[%s1264 + $0x48] sm:$0xff]
      %v1275 = vld [vmem:[%s1264 + $0x50] sm:$0xff]
      %v1280 = vrot.slane %v340, 1
      %v1281 = vrot.slane %v342, 1
      %v1282 = vsel %vm823, %v1280, %v1281
      %v1283 = vrot.slane %v344, 1
      %v1284 = vsel %vm823, %v1281, %v1283
      %v1285 = vrot.slane %v346, 1
      %v1286 = vsel %vm823, %v1283, %v1285
      %v1287 = vsel %vm402, %v1282, 0
      %v1289 = vsel %vm402, %v1284, 0
      %v1291 = vsel %vm402, %v1286, 0
      %1293 = vmatprep.subr.mxu0 0.0
      %1294 = vmatpush1.msra.mxu0 0.0
      %1295 = vmatprep.subr.mxu0 0.0
      %1296 = vmatpush1.msra.mxu0 0.0
      %1297 = vmatprep.subr.mxu0 0.0
      %1298 = vmatpush1.msra.mxu0 0.0
      %1299 = vmatprep.subr.mxu0 0.0
      %1300 = vmatpush1.msra.mxu0 0.0
      %1301 = vmatprep.subr.mxu0 0.0
      %1302 = vmatpush1.msra.mxu0 0.0
      %1303 = vmatprep.subr.mxu0 0.0
      %1304 = vmatpush1.msra.mxu0 %v1275
      %1305 = vmatprep.subr.mxu0 0.0
      %1306 = vmatpush1.msra.mxu0 %v1274
      %1307 = vmatprep.subr.mxu0 0.0
      %1308 = vmatpush1.msra.mxu0 %v1273
      %1309 = vmatprep.subr.mxu0 0.0
      %1310 = vmatpush1.msra.mxu0 %v1272
      %1311 = vmatprep.subr.mxu0 0.0
      %1312 = vmatpush1.msra.mxu0 %v1271
      %1313 = vmatprep.subr.mxu0 0.0
      %1314 = vmatpush1.msra.mxu0 %v1270
      %1315 = vmatprep.subr.mxu0 0.0
      %1316 = vmatpush1.msra.mxu0 %v1269
      %1317 = vmatprep.subr.mxu0 0.0
      %1318 = vmatpush1.msra.mxu0 %v1268
      %1319 = vmatprep.subr.mxu0 0.0
      %1320 = vmatpush1.msra.mxu0 %v1267
      %1321 = vmatprep.subr.mxu0 0.0
      %1322 = vmatpush1.msra.mxu0 %v1266
      %1323 = vmatprep.subr.mxu0 0.0
      %1324 = vmatpush1.msra.mxu0 %v1265
      %1325 = vmatprep.subr.mxu0 0.0
      %1326 = vmatpush2.msra.mxu0 0.0
      %1327 = vmatprep.subr.mxu0 0.0
      %1328 = vmatpush2.msra.mxu0 0.0
      %1329 = vmatprep.subr.mxu0 0.0
      %1330 = vmatpush2.msra.mxu0 0.0
      %1331 = vmatprep.subr.mxu0 0.0
      %1332 = vmatpush2.msra.mxu0 0.0
      %1333 = vmatprep.subr.mxu0 0.0
      %1334 = vmatpush2.msra.mxu0 0.0
      %1335 = vmatprep.subr.mxu0 0.0
      %1336 = vmatpush2.msra.mxu0 0.0
      %1337 = vmatprep.subr.mxu0 0.0
      %1338 = vmatpush2.msra.mxu0 0.0
      %1339 = vmatprep.subr.mxu0 0.0
      %1340 = vmatpush2.msra.mxu0 0.0
      %1341 = vmatprep.subr.mxu0 0.0
      %1342 = vmatpush2.msra.mxu0 0.0
      %1343 = vmatprep.subr.mxu0 0.0
      %1344 = vmatpush2.msra.mxu0 0.0
      %1345 = vmatprep.subr.mxu0 0.0
      %1346 = vmatpush2.msra.mxu0 0.0
      %1347 = vmatprep.subr.mxu0 0.0
      %1348 = vmatpush2.msra.mxu0 0.0
      %1349 = vmatprep.subr.mxu0 0.0
      %1350 = vmatpush2.msra.mxu0 0.0
      %1351 = vmatprep.subr.mxu0 0.0
      %1352 = vmatpush2.msra.mxu0 0.0
      %1353 = vmatprep.subr.mxu0 0.0
      %1354 = vmatpush2.msra.mxu0 0.0
      %1355 = vmatprep.subr.mxu0 0.0
      %1356 = vmatpush2.msra.mxu0 0.0
      %1357 = vmatprep.mubr.f32.mxu0 0.0
      %1358 = vmatmul.mubr.f32.gmra.mxu0 %v1287
      %v1359 = vpop.f32.mrf.mxu0
      %v1360 = vadd.f32 0.0, %v1359
      %v1361 = vpop.f32.mrf.mxu0
      %1362 = vmatprep.mubr.f32.mxu0 0.0
      %1363 = vmatmul.mubr.f32.gmra.mxu0 %v1289
      %v1364 = vpop.f32.mrf.mxu0
      %v1365 = vadd.f32 0.0, %v1364
      %v1366 = vpop.f32.mrf.mxu0
      %1367 = vmatprep.mubr.f32.mxu0 0.0
      %1368 = vmatmul.mubr.f32.gmra.mxu0 %v1291
      %v1369 = vpop.f32.mrf.mxu0
      %v1370 = vadd.f32 0.0, %v1369
      %v1371 = vpop.f32.mrf.mxu0
      %1372 = vdwg.mxu0
      %v1373 = vsel %vm402, %v340, 0
      %v1375 = vsel %vm402, %v342, 0
      %v1377 = vsel %vm402, %v344, 0
      %1379 = vmatprep.subr.mxu0 0.0
      %1380 = vmatpush1.msra.mxu0 0.0
      %1381 = vmatprep.subr.mxu0 0.0
      %1382 = vmatpush1.msra.mxu0 0.0
      %1383 = vmatprep.subr.mxu0 0.0
      %1384 = vmatpush1.msra.mxu0 0.0
      %1385 = vmatprep.subr.mxu0 0.0
      %1386 = vmatpush1.msra.mxu0 0.0
      %1387 = vmatprep.subr.mxu0 0.0
      %1388 = vmatpush1.msra.mxu0 0.0
      %1389 = vmatprep.subr.mxu0 0.0
      %1390 = vmatpush1.msra.mxu0 %v1263
      %1391 = vmatprep.subr.mxu0 0.0
      %1392 = vmatpush1.msra.mxu0 %v1262
      %1393 = vmatprep.subr.mxu0 0.0
      %1394 = vmatpush1.msra.mxu0 %v1261
      %1395 = vmatprep.subr.mxu0 0.0
      %1396 = vmatpush1.msra.mxu0 %v1260
      %1397 = vmatprep.subr.mxu0 0.0
      %1398 = vmatpush1.msra.mxu0 %v1259
      %1399 = vmatprep.subr.mxu0 0.0
      %1400 = vmatpush1.msra.mxu0 %v1258
      %1401 = vmatprep.subr.mxu0 0.0
      %1402 = vmatpush1.msra.mxu0 %v1257
      %1403 = vmatprep.subr.mxu0 0.0
      %1404 = vmatpush1.msra.mxu0 %v1256
      %1405 = vmatprep.subr.mxu0 0.0
      %1406 = vmatpush1.msra.mxu0 %v1255
      %1407 = vmatprep.subr.mxu0 0.0
      %1408 = vmatpush1.msra.mxu0 %v1254
      %1409 = vmatprep.subr.mxu0 0.0
      %1410 = vmatpush1.msra.mxu0 %v1253
      %1411 = vmatprep.subr.mxu0 0.0
      %1412 = vmatpush2.msra.mxu0 0.0
      %1413 = vmatprep.subr.mxu0 0.0
      %1414 = vmatpush2.msra.mxu0 0.0
      %1415 = vmatprep.subr.mxu0 0.0
      %1416 = vmatpush2.msra.mxu0 0.0
      %1417 = vmatprep.subr.mxu0 0.0
      %1418 = vmatpush2.msra.mxu0 0.0
      %1419 = vmatprep.subr.mxu0 0.0
      %1420 = vmatpush2.msra.mxu0 0.0
      %1421 = vmatprep.subr.mxu0 0.0
      %1422 = vmatpush2.msra.mxu0 0.0
      %1423 = vmatprep.subr.mxu0 0.0
      %1424 = vmatpush2.msra.mxu0 0.0
      %1425 = vmatprep.subr.mxu0 0.0
      %1426 = vmatpush2.msra.mxu0 0.0
      %1427 = vmatprep.subr.mxu0 0.0
      %1428 = vmatpush2.msra.mxu0 0.0
      %1429 = vmatprep.subr.mxu0 0.0
      %1430 = vmatpush2.msra.mxu0 0.0
      %1431 = vmatprep.subr.mxu0 0.0
      %1432 = vmatpush2.msra.mxu0 0.0
      %1433 = vmatprep.subr.mxu0 0.0
      %1434 = vmatpush2.msra.mxu0 0.0
      %1435 = vmatprep.subr.mxu0 0.0
      %1436 = vmatpush2.msra.mxu0 0.0
      %1437 = vmatprep.subr.mxu0 0.0
      %1438 = vmatpush2.msra.mxu0 0.0
      %1439 = vmatprep.subr.mxu0 0.0
      %1440 = vmatpush2.msra.mxu0 0.0
      %1441 = vmatprep.subr.mxu0 0.0
      %1442 = vmatpush2.msra.mxu0 0.0
      %1443 = vmatprep.mubr.f32.mxu0 0.0
      %1444 = vmatmul.mubr.f32.gmra.mxu0 %v1373
      %v1445 = vpop.f32.mrf.mxu0
      %v1446 = vadd.f32 %v1360, %v1445
      %v1447 = vpop.f32.mrf.mxu0
      %1448 = vmatprep.mubr.f32.mxu0 0.0
      %1449 = vmatmul.mubr.f32.gmra.mxu0 %v1375
      %v1450 = vpop.f32.mrf.mxu0
      %v1451 = vadd.f32 %v1365, %v1450
      %v1452 = vpop.f32.mrf.mxu0
      %1453 = vmatprep.mubr.f32.mxu0 0.0
      %1454 = vmatmul.mubr.f32.gmra.mxu0 %v1377
      %v1455 = vpop.f32.mrf.mxu0
      %v1456 = vadd.f32 %v1370, %v1455
      %v1457 = vpop.f32.mrf.mxu0
      %1458 = vdwg.mxu0
      %s1459 = scalar_lea.vmem %s3, 176
      %v1460 = vld [vmem:[%s1459] sm:$0xff]
      %v1461 = vld [vmem:[%s1459 + $0x8] sm:$0xff]
      %v1462 = vld [vmem:[%s1459 + $0x10] sm:$0xff]
      %v1463 = vld [vmem:[%s1459 + $0x18] sm:$0xff]
      %v1464 = vld [vmem:[%s1459 + $0x20] sm:$0xff]
      %v1465 = vld [vmem:[%s1459 + $0x28] sm:$0xff]
      %v1466 = vld [vmem:[%s1459 + $0x30] sm:$0xff]
      %v1467 = vld [vmem:[%s1459 + $0x38] sm:$0xff]
      %v1468 = vld [vmem:[%s1459 + $0x40] sm:$0xff]
      %v1469 = vld [vmem:[%s1459 + $0x48] sm:$0xff]
      %v1470 = vld [vmem:[%s1459 + $0x50] sm:$0xff]
      %v1471 = vrot.slane %v340, 2
      %v1472 = vrot.slane %v342, 2
      %v1473 = vsel %vm489, %v1471, %v1472
      %v1474 = vrot.slane %v344, 2
      %v1475 = vsel %vm489, %v1472, %v1474
      %v1476 = vrot.slane %v346, 2
      %v1477 = vsel %vm489, %v1474, %v1476
      %v1478 = vsel %vm402, %v1473, 0
      %v1480 = vsel %vm402, %v1475, 0
      %v1482 = vsel %vm402, %v1477, 0
      %1484 = vmatprep.subr.mxu0 0.0
      %1485 = vmatpush1.msra.mxu0 0.0
      %1486 = vmatprep.subr.mxu0 0.0
      %1487 = vmatpush1.msra.mxu0 0.0
      %1488 = vmatprep.subr.mxu0 0.0
      %1489 = vmatpush1.msra.mxu0 0.0
      %1490 = vmatprep.subr.mxu0 0.0
      %1491 = vmatpush1.msra.mxu0 0.0
      %1492 = vmatprep.subr.mxu0 0.0
      %1493 = vmatpush1.msra.mxu0 0.0
      %1494 = vmatprep.subr.mxu0 0.0
      %1495 = vmatpush1.msra.mxu0 %v1470
      %1496 = vmatprep.subr.mxu0 0.0
      %1497 = vmatpush1.msra.mxu0 %v1469
      %1498 = vmatprep.subr.mxu0 0.0
      %1499 = vmatpush1.msra.mxu0 %v1468
      %1500 = vmatprep.subr.mxu0 0.0
      %1501 = vmatpush1.msra.mxu0 %v1467
      %1502 = vmatprep.subr.mxu0 0.0
      %1503 = vmatpush1.msra.mxu0 %v1466
      %1504 = vmatprep.subr.mxu0 0.0
      %1505 = vmatpush1.msra.mxu0 %v1465
      %1506 = vmatprep.subr.mxu0 0.0
      %1507 = vmatpush1.msra.mxu0 %v1464
      %1508 = vmatprep.subr.mxu0 0.0
      %1509 = vmatpush1.msra.mxu0 %v1463
      %1510 = vmatprep.subr.mxu0 0.0
      %1511 = vmatpush1.msra.mxu0 %v1462
      %1512 = vmatprep.subr.mxu0 0.0
      %1513 = vmatpush1.msra.mxu0 %v1461
      %1514 = vmatprep.subr.mxu0 0.0
      %1515 = vmatpush1.msra.mxu0 %v1460
      %1516 = vmatprep.subr.mxu0 0.0
      %1517 = vmatpush2.msra.mxu0 0.0
      %1518 = vmatprep.subr.mxu0 0.0
      %1519 = vmatpush2.msra.mxu0 0.0
      %1520 = vmatprep.subr.mxu0 0.0
      %1521 = vmatpush2.msra.mxu0 0.0
      %1522 = vmatprep.subr.mxu0 0.0
      %1523 = vmatpush2.msra.mxu0 0.0
      %1524 = vmatprep.subr.mxu0 0.0
      %1525 = vmatpush2.msra.mxu0 0.0
      %1526 = vmatprep.subr.mxu0 0.0
      %1527 = vmatpush2.msra.mxu0 0.0
      %1528 = vmatprep.subr.mxu0 0.0
      %1529 = vmatpush2.msra.mxu0 0.0
      %1530 = vmatprep.subr.mxu0 0.0
      %1531 = vmatpush2.msra.mxu0 0.0
      %1532 = vmatprep.subr.mxu0 0.0
      %1533 = vmatpush2.msra.mxu0 0.0
      %1534 = vmatprep.subr.mxu0 0.0
      %1535 = vmatpush2.msra.mxu0 0.0
      %1536 = vmatprep.subr.mxu0 0.0
      %1537 = vmatpush2.msra.mxu0 0.0
      %1538 = vmatprep.subr.mxu0 0.0
      %1539 = vmatpush2.msra.mxu0 0.0
      %1540 = vmatprep.subr.mxu0 0.0
      %1541 = vmatpush2.msra.mxu0 0.0
      %1542 = vmatprep.subr.mxu0 0.0
      %1543 = vmatpush2.msra.mxu0 0.0
      %1544 = vmatprep.subr.mxu0 0.0
      %1545 = vmatpush2.msra.mxu0 0.0
      %1546 = vmatprep.subr.mxu0 0.0
      %1547 = vmatpush2.msra.mxu0 0.0
      %1548 = vmatprep.mubr.f32.mxu0 0.0
      %1549 = vmatmul.mubr.f32.gmra.mxu0 %v1478
      %v1550 = vpop.f32.mrf.mxu0
      %v1551 = vadd.f32 0.0, %v1550
      %v1552 = vpop.f32.mrf.mxu0
      %1553 = vmatprep.mubr.f32.mxu0 0.0
      %1554 = vmatmul.mubr.f32.gmra.mxu0 %v1480
      %v1555 = vpop.f32.mrf.mxu0
      %v1556 = vadd.f32 0.0, %v1555
      %v1557 = vpop.f32.mrf.mxu0
      %1558 = vmatprep.mubr.f32.mxu0 0.0
      %1559 = vmatmul.mubr.f32.gmra.mxu0 %v1482
      %v1560 = vpop.f32.mrf.mxu0
      %v1561 = vadd.f32 0.0, %v1560
      %v1562 = vpop.f32.mrf.mxu0
      %1563 = vdwg.mxu0
      %v1564 = vadd.f32 %v1446, %v1551
      %v1565 = vadd.f32 %v1451, %v1556
      %v1566 = vadd.f32 %v1456, %v1561
      %s1567 = scalar_lea.vmem %s3, 264
      %v1568 = vld [vmem:[%s1567] sm:$0xff]
      %v1569 = vld [vmem:[%s1567 + $0x8] sm:$0xff]
      %v1570 = vld [vmem:[%s1567 + $0x10] sm:$0xff]
      %v1571 = vld [vmem:[%s1567 + $0x18] sm:$0xff]
      %v1572 = vld [vmem:[%s1567 + $0x20] sm:$0xff]
      %v1573 = vld [vmem:[%s1567 + $0x28] sm:$0xff]
      %v1574 = vld [vmem:[%s1567 + $0x30] sm:$0xff]
      %v1575 = vld [vmem:[%s1567 + $0x38] sm:$0xff]
      %v1576 = vld [vmem:[%s1567 + $0x40] sm:$0xff]
      %v1577 = vld [vmem:[%s1567 + $0x48] sm:$0xff]
      %v1578 = vld [vmem:[%s1567 + $0x50] sm:$0xff]
      %v1579 = vrot.slane %v340, 3
      %v1580 = vrot.slane %v342, 3
      %v1581 = vsel %vm394, %v1579, %v1580
      %v1582 = vrot.slane %v344, 3
      %v1583 = vsel %vm394, %v1580, %v1582
      %v1584 = vrot.slane %v346, 3
      %v1585 = vsel %vm394, %v1582, %v1584
      %v1586 = vsel %vm402, %v1581, 0
      %v1588 = vsel %vm402, %v1583, 0
      %v1590 = vsel %vm402, %v1585, 0
      %1592 = vmatprep.subr.mxu0 0.0
      %1593 = vmatpush1.msra.mxu0 0.0
      %1594 = vmatprep.subr.mxu0 0.0
      %1595 = vmatpush1.msra.mxu0 0.0
      %1596 = vmatprep.subr.mxu0 0.0
      %1597 = vmatpush1.msra.mxu0 0.0
      %1598 = vmatprep.subr.mxu0 0.0
      %1599 = vmatpush1.msra.mxu0 0.0
      %1600 = vmatprep.subr.mxu0 0.0
      %1601 = vmatpush1.msra.mxu0 0.0
      %1602 = vmatprep.subr.mxu0 0.0
      %1603 = vmatpush1.msra.mxu0 %v1578
      %1604 = vmatprep.subr.mxu0 0.0
      %1605 = vmatpush1.msra.mxu0 %v1577
      %1606 = vmatprep.subr.mxu0 0.0
      %1607 = vmatpush1.msra.mxu0 %v1576
      %1608 = vmatprep.subr.mxu0 0.0
      %1609 = vmatpush1.msra.mxu0 %v1575
      %1610 = vmatprep.subr.mxu0 0.0
      %1611 = vmatpush1.msra.mxu0 %v1574
      %1612 = vmatprep.subr.mxu0 0.0
      %1613 = vmatpush1.msra.mxu0 %v1573
      %1614 = vmatprep.subr.mxu0 0.0
      %1615 = vmatpush1.msra.mxu0 %v1572
      %1616 = vmatprep.subr.mxu0 0.0
      %1617 = vmatpush1.msra.mxu0 %v1571
      %1618 = vmatprep.subr.mxu0 0.0
      %1619 = vmatpush1.msra.mxu0 %v1570
      %1620 = vmatprep.subr.mxu0 0.0
      %1621 = vmatpush1.msra.mxu0 %v1569
      %1622 = vmatprep.subr.mxu0 0.0
      %1623 = vmatpush1.msra.mxu0 %v1568
      %1624 = vmatprep.subr.mxu0 0.0
      %1625 = vmatpush2.msra.mxu0 0.0
      %1626 = vmatprep.subr.mxu0 0.0
      %1627 = vmatpush2.msra.mxu0 0.0
      %1628 = vmatprep.subr.mxu0 0.0
      %1629 = vmatpush2.msra.mxu0 0.0
      %1630 = vmatprep.subr.mxu0 0.0
      %1631 = vmatpush2.msra.mxu0 0.0
      %1632 = vmatprep.subr.mxu0 0.0
      %1633 = vmatpush2.msra.mxu0 0.0
      %1634 = vmatprep.subr.mxu0 0.0
      %1635 = vmatpush2.msra.mxu0 0.0
      %1636 = vmatprep.subr.mxu0 0.0
      %1637 = vmatpush2.msra.mxu0 0.0
      %1638 = vmatprep.subr.mxu0 0.0
      %1639 = vmatpush2.msra.mxu0 0.0
      %1640 = vmatprep.subr.mxu0 0.0
      %1641 = vmatpush2.msra.mxu0 0.0
      %1642 = vmatprep.subr.mxu0 0.0
      %1643 = vmatpush2.msra.mxu0 0.0
      %1644 = vmatprep.subr.mxu0 0.0
      %1645 = vmatpush2.msra.mxu0 0.0
      %1646 = vmatprep.subr.mxu0 0.0
      %1647 = vmatpush2.msra.mxu0 0.0
      %1648 = vmatprep.subr.mxu0 0.0
      %1649 = vmatpush2.msra.mxu0 0.0
      %1650 = vmatprep.subr.mxu0 0.0
      %1651 = vmatpush2.msra.mxu0 0.0
      %1652 = vmatprep.subr.mxu0 0.0
      %1653 = vmatpush2.msra.mxu0 0.0
      %1654 = vmatprep.subr.mxu0 0.0
      %1655 = vmatpush2.msra.mxu0 0.0
      %1656 = vmatprep.mubr.f32.mxu0 0.0
      %1657 = vmatmul.mubr.f32.gmra.mxu0 %v1586
      %v1658 = vpop.f32.mrf.mxu0
      %v1659 = vadd.f32 0.0, %v1658
      %v1660 = vpop.f32.mrf.mxu0
      %1661 = vmatprep.mubr.f32.mxu0 0.0
      %1662 = vmatmul.mubr.f32.gmra.mxu0 %v1588
      %v1663 = vpop.f32.mrf.mxu0
      %v1664 = vadd.f32 0.0, %v1663
      %v1665 = vpop.f32.mrf.mxu0
      %1666 = vmatprep.mubr.f32.mxu0 0.0
      %1667 = vmatmul.mubr.f32.gmra.mxu0 %v1590
      %v1668 = vpop.f32.mrf.mxu0
      %v1669 = vadd.f32 0.0, %v1668
      %v1670 = vpop.f32.mrf.mxu0
      %1671 = vdwg.mxu0
      %v1672 = vadd.f32 %v1564, %v1659
      %v1673 = vadd.f32 %v1565, %v1664
      %v1674 = vadd.f32 %v1566, %v1669
      %s1675 = scalar_lea.vmem %s3, 352
      %v1676 = vld [vmem:[%s1675] sm:$0xff]
      %v1677 = vld [vmem:[%s1675 + $0x8] sm:$0xff]
      %v1678 = vld [vmem:[%s1675 + $0x10] sm:$0xff]
      %v1679 = vld [vmem:[%s1675 + $0x18] sm:$0xff]
      %v1680 = vld [vmem:[%s1675 + $0x20] sm:$0xff]
      %v1681 = vld [vmem:[%s1675 + $0x28] sm:$0xff]
      %v1682 = vld [vmem:[%s1675 + $0x30] sm:$0xff]
      %v1683 = vld [vmem:[%s1675 + $0x38] sm:$0xff]
      %v1684 = vld [vmem:[%s1675 + $0x40] sm:$0xff]
      %v1685 = vld [vmem:[%s1675 + $0x48] sm:$0xff]
      %v1686 = vld [vmem:[%s1675 + $0x50] sm:$0xff]
      %v1687 = vrot.slane %v340, 4
      %v1688 = vrot.slane %v342, 4
      %v1689 = vsel %vm595, %v1687, %v1688
      %v1690 = vrot.slane %v344, 4
      %v1691 = vsel %vm595, %v1688, %v1690
      %v1692 = vrot.slane %v346, 4
      %v1693 = vsel %vm595, %v1690, %v1692
      %v1694 = vsel %vm402, %v1689, 0
      %v1696 = vsel %vm402, %v1691, 0
      %v1698 = vsel %vm402, %v1693, 0
      %1700 = vmatprep.subr.mxu0 0.0
      %1701 = vmatpush1.msra.mxu0 0.0
      %1702 = vmatprep.subr.mxu0 0.0
      %1703 = vmatpush1.msra.mxu0 0.0
      %1704 = vmatprep.subr.mxu0 0.0
      %1705 = vmatpush1.msra.mxu0 0.0
      %1706 = vmatprep.subr.mxu0 0.0
      %1707 = vmatpush1.msra.mxu0 0.0
      %1708 = vmatprep.subr.mxu0 0.0
      %1709 = vmatpush1.msra.mxu0 0.0
      %1710 = vmatprep.subr.mxu0 0.0
      %1711 = vmatpush1.msra.mxu0 %v1686
      %1712 = vmatprep.subr.mxu0 0.0
      %1713 = vmatpush1.msra.mxu0 %v1685
      %1714 = vmatprep.subr.mxu0 0.0
      %1715 = vmatpush1.msra.mxu0 %v1684
      %1716 = vmatprep.subr.mxu0 0.0
      %1717 = vmatpush1.msra.mxu0 %v1683
      %1718 = vmatprep.subr.mxu0 0.0
      %1719 = vmatpush1.msra.mxu0 %v1682
      %1720 = vmatprep.subr.mxu0 0.0
      %1721 = vmatpush1.msra.mxu0 %v1681
      %1722 = vmatprep.subr.mxu0 0.0
      %1723 = vmatpush1.msra.mxu0 %v1680
      %1724 = vmatprep.subr.mxu0 0.0
      %1725 = vmatpush1.msra.mxu0 %v1679
      %1726 = vmatprep.subr.mxu0 0.0
      %1727 = vmatpush1.msra.mxu0 %v1678
      %1728 = vmatprep.subr.mxu0 0.0
      %1729 = vmatpush1.msra.mxu0 %v1677
      %1730 = vmatprep.subr.mxu0 0.0
      %1731 = vmatpush1.msra.mxu0 %v1676
      %1732 = vmatprep.subr.mxu0 0.0
      %1733 = vmatpush2.msra.mxu0 0.0
      %1734 = vmatprep.subr.mxu0 0.0
      %1735 = vmatpush2.msra.mxu0 0.0
      %1736 = vmatprep.subr.mxu0 0.0
      %1737 = vmatpush2.msra.mxu0 0.0
      %1738 = vmatprep.subr.mxu0 0.0
      %1739 = vmatpush2.msra.mxu0 0.0
      %1740 = vmatprep.subr.mxu0 0.0
      %1741 = vmatpush2.msra.mxu0 0.0
      %1742 = vmatprep.subr.mxu0 0.0
      %1743 = vmatpush2.msra.mxu0 0.0
      %1744 = vmatprep.subr.mxu0 0.0
      %1745 = vmatpush2.msra.mxu0 0.0
      %1746 = vmatprep.subr.mxu0 0.0
      %1747 = vmatpush2.msra.mxu0 0.0
      %1748 = vmatprep.subr.mxu0 0.0
      %1749 = vmatpush2.msra.mxu0 0.0
      %1750 = vmatprep.subr.mxu0 0.0
      %1751 = vmatpush2.msra.mxu0 0.0
      %1752 = vmatprep.subr.mxu0 0.0
      %1753 = vmatpush2.msra.mxu0 0.0
      %1754 = vmatprep.subr.mxu0 0.0
      %1755 = vmatpush2.msra.mxu0 0.0
      %1756 = vmatprep.subr.mxu0 0.0
      %1757 = vmatpush2.msra.mxu0 0.0
      %1758 = vmatprep.subr.mxu0 0.0
      %1759 = vmatpush2.msra.mxu0 0.0
      %1760 = vmatprep.subr.mxu0 0.0
      %1761 = vmatpush2.msra.mxu0 0.0
      %1762 = vmatprep.subr.mxu0 0.0
      %1763 = vmatpush2.msra.mxu0 0.0
      %1764 = vmatprep.mubr.f32.mxu0 0.0
      %1765 = vmatmul.mubr.f32.gmra.mxu0 %v1694
      %v1766 = vpop.f32.mrf.mxu0
      %v1767 = vadd.f32 0.0, %v1766
      %v1768 = vpop.f32.mrf.mxu0
      %1769 = vmatprep.mubr.f32.mxu0 0.0
      %1770 = vmatmul.mubr.f32.gmra.mxu0 %v1696
      %v1771 = vpop.f32.mrf.mxu0
      %v1772 = vadd.f32 0.0, %v1771
      %v1773 = vpop.f32.mrf.mxu0
      %1774 = vmatprep.mubr.f32.mxu0 0.0
      %1775 = vmatmul.mubr.f32.gmra.mxu0 %v1698
      %v1776 = vpop.f32.mrf.mxu0
      %v1777 = vadd.f32 0.0, %v1776
      %v1778 = vpop.f32.mrf.mxu0
      %1779 = vdwg.mxu0
      %v1780 = vadd.f32 %v1672, %v1767
      %v1781 = vadd.f32 %v1673, %v1772
      %v1782 = vadd.f32 %v1674, %v1777
      %s1783 = scalar_lea.vmem %s3, 440
      %v1784 = vld [vmem:[%s1783] sm:$0xff]
      %v1785 = vld [vmem:[%s1783 + $0x8] sm:$0xff]
      %v1786 = vld [vmem:[%s1783 + $0x10] sm:$0xff]
      %v1787 = vld [vmem:[%s1783 + $0x18] sm:$0xff]
      %v1788 = vld [vmem:[%s1783 + $0x20] sm:$0xff]
      %v1789 = vld [vmem:[%s1783 + $0x28] sm:$0xff]
      %v1790 = vld [vmem:[%s1783 + $0x30] sm:$0xff]
      %v1791 = vld [vmem:[%s1783 + $0x38] sm:$0xff]
      %v1792 = vld [vmem:[%s1783 + $0x40] sm:$0xff]
      %v1793 = vld [vmem:[%s1783 + $0x48] sm:$0xff]
      %v1794 = vld [vmem:[%s1783 + $0x50] sm:$0xff]
      %v1795 = vrot.slane %v340, 5
      %v1796 = vrot.slane %v342, 5
      %v1797 = vsel %vm1145, %v1795, %v1796
      %v1798 = vrot.slane %v344, 5
      %v1799 = vsel %vm1145, %v1796, %v1798
      %v1800 = vrot.slane %v346, 5
      %v1801 = vsel %vm1145, %v1798, %v1800
      %v1802 = vsel %vm402, %v1797, 0
      %v1804 = vsel %vm402, %v1799, 0
      %v1806 = vsel %vm402, %v1801, 0
      %1808 = vmatprep.subr.mxu0 0.0
      %1809 = vmatpush1.msra.mxu0 0.0
      %1810 = vmatprep.subr.mxu0 0.0
      %1811 = vmatpush1.msra.mxu0 0.0
      %1812 = vmatprep.subr.mxu0 0.0
      %1813 = vmatpush1.msra.mxu0 0.0
      %1814 = vmatprep.subr.mxu0 0.0
      %1815 = vmatpush1.msra.mxu0 0.0
      %1816 = vmatprep.subr.mxu0 0.0
      %1817 = vmatpush1.msra.mxu0 0.0
      %1818 = vmatprep.subr.mxu0 0.0
      %1819 = vmatpush1.msra.mxu0 %v1794
      %1820 = vmatprep.subr.mxu0 0.0
      %1821 = vmatpush1.msra.mxu0 %v1793
      %1822 = vmatprep.subr.mxu0 0.0
      %1823 = vmatpush1.msra.mxu0 %v1792
      %1824 = vmatprep.subr.mxu0 0.0
      %1825 = vmatpush1.msra.mxu0 %v1791
      %1826 = vmatprep.subr.mxu0 0.0
      %1827 = vmatpush1.msra.mxu0 %v1790
      %1828 = vmatprep.subr.mxu0 0.0
      %1829 = vmatpush1.msra.mxu0 %v1789
      %1830 = vmatprep.subr.mxu0 0.0
      %1831 = vmatpush1.msra.mxu0 %v1788
      %1832 = vmatprep.subr.mxu0 0.0
      %1833 = vmatpush1.msra.mxu0 %v1787
      %1834 = vmatprep.subr.mxu0 0.0
      %1835 = vmatpush1.msra.mxu0 %v1786
      %1836 = vmatprep.subr.mxu0 0.0
      %1837 = vmatpush1.msra.mxu0 %v1785
      %1838 = vmatprep.subr.mxu0 0.0
      %1839 = vmatpush1.msra.mxu0 %v1784
      %1840 = vmatprep.subr.mxu0 0.0
      %1841 = vmatpush2.msra.mxu0 0.0
      %1842 = vmatprep.subr.mxu0 0.0
      %1843 = vmatpush2.msra.mxu0 0.0
      %1844 = vmatprep.subr.mxu0 0.0
      %1845 = vmatpush2.msra.mxu0 0.0
      %1846 = vmatprep.subr.mxu0 0.0
      %1847 = vmatpush2.msra.mxu0 0.0
      %1848 = vmatprep.subr.mxu0 0.0
      %1849 = vmatpush2.msra.mxu0 0.0
      %1850 = vmatprep.subr.mxu0 0.0
      %1851 = vmatpush2.msra.mxu0 0.0
      %1852 = vmatprep.subr.mxu0 0.0
      %1853 = vmatpush2.msra.mxu0 0.0
      %1854 = vmatprep.subr.mxu0 0.0
      %1855 = vmatpush2.msra.mxu0 0.0
      %1856 = vmatprep.subr.mxu0 0.0
      %1857 = vmatpush2.msra.mxu0 0.0
      %1858 = vmatprep.subr.mxu0 0.0
      %1859 = vmatpush2.msra.mxu0 0.0
      %1860 = vmatprep.subr.mxu0 0.0
      %1861 = vmatpush2.msra.mxu0 0.0
      %1862 = vmatprep.subr.mxu0 0.0
      %1863 = vmatpush2.msra.mxu0 0.0
      %1864 = vmatprep.subr.mxu0 0.0
      %1865 = vmatpush2.msra.mxu0 0.0
      %1866 = vmatprep.subr.mxu0 0.0
      %1867 = vmatpush2.msra.mxu0 0.0
      %1868 = vmatprep.subr.mxu0 0.0
      %1869 = vmatpush2.msra.mxu0 0.0
      %1870 = vmatprep.subr.mxu0 0.0
      %1871 = vmatpush2.msra.mxu0 0.0
      %1872 = vmatprep.mubr.f32.mxu0 0.0
      %1873 = vmatmul.mubr.f32.gmra.mxu0 %v1802
      %v1874 = vpop.f32.mrf.mxu0
      %v1875 = vadd.f32 0.0, %v1874
      %v1876 = vpop.f32.mrf.mxu0
      %1877 = vmatprep.mubr.f32.mxu0 0.0
      %1878 = vmatmul.mubr.f32.gmra.mxu0 %v1804
      %v1879 = vpop.f32.mrf.mxu0
      %v1880 = vadd.f32 0.0, %v1879
      %v1881 = vpop.f32.mrf.mxu0
      %1882 = vmatprep.mubr.f32.mxu0 0.0
      %1883 = vmatmul.mubr.f32.gmra.mxu0 %v1806
      %v1884 = vpop.f32.mrf.mxu0
      %v1885 = vadd.f32 0.0, %v1884
      %v1886 = vpop.f32.mrf.mxu0
      %1887 = vdwg.mxu0
      %v1888 = vadd.f32 %v1780, %v1875
      %v1889 = vadd.f32 %v1781, %v1880
      %v1890 = vadd.f32 %v1782, %v1885
      %s1891 = scalar_lea.vmem %s3, 528
      %v1892 = vld [vmem:[%s1891] sm:$0xff]
      %v1893 = vld [vmem:[%s1891 + $0x8] sm:$0xff]
      %v1894 = vld [vmem:[%s1891 + $0x10] sm:$0xff]
      %v1895 = vld [vmem:[%s1891 + $0x18] sm:$0xff]
      %v1896 = vld [vmem:[%s1891 + $0x20] sm:$0xff]
      %v1897 = vld [vmem:[%s1891 + $0x28] sm:$0xff]
      %v1898 = vld [vmem:[%s1891 + $0x30] sm:$0xff]
      %v1899 = vld [vmem:[%s1891 + $0x38] sm:$0xff]
      %v1900 = vld [vmem:[%s1891 + $0x40] sm:$0xff]
      %v1901 = vld [vmem:[%s1891 + $0x48] sm:$0xff]
      %v1902 = vld [vmem:[%s1891 + $0x50] sm:$0xff]
      %vm1903 = vcmask 1041408
      %v1904 = vrot.slane %v340, 6
      %v1905 = vrot.slane %v342, 6
      %v1906 = vsel %vm1903, %v1904, %v1905
      %v1907 = vrot.slane %v344, 6
      %v1908 = vsel %vm1903, %v1905, %v1907
      %v1909 = vrot.slane %v346, 6
      %v1910 = vsel %vm1903, %v1907, %v1909
      %v1911 = vsel %vm402, %v1906, 0
      %v1913 = vsel %vm402, %v1908, 0
      %v1915 = vsel %vm402, %v1910, 0
      %1917 = vmatprep.subr.mxu0 0.0
      %1918 = vmatpush1.msra.mxu0 0.0
      %1919 = vmatprep.subr.mxu0 0.0
      %1920 = vmatpush1.msra.mxu0 0.0
      %1921 = vmatprep.subr.mxu0 0.0
      %1922 = vmatpush1.msra.mxu0 0.0
      %1923 = vmatprep.subr.mxu0 0.0
      %1924 = vmatpush1.msra.mxu0 0.0
      %1925 = vmatprep.subr.mxu0 0.0
      %1926 = vmatpush1.msra.mxu0 0.0
      %1927 = vmatprep.subr.mxu0 0.0
      %1928 = vmatpush1.msra.mxu0 %v1902
      %1929 = vmatprep.subr.mxu0 0.0
      %1930 = vmatpush1.msra.mxu0 %v1901
      %1931 = vmatprep.subr.mxu0 0.0
      %1932 = vmatpush1.msra.mxu0 %v1900
      %1933 = vmatprep.subr.mxu0 0.0
      %1934 = vmatpush1.msra.mxu0 %v1899
      %1935 = vmatprep.subr.mxu0 0.0
      %1936 = vmatpush1.msra.mxu0 %v1898
      %1937 = vmatprep.subr.mxu0 0.0
      %1938 = vmatpush1.msra.mxu0 %v1897
      %1939 = vmatprep.subr.mxu0 0.0
      %1940 = vmatpush1.msra.mxu0 %v1896
      %1941 = vmatprep.subr.mxu0 0.0
      %1942 = vmatpush1.msra.mxu0 %v1895
      %1943 = vmatprep.subr.mxu0 0.0
      %1944 = vmatpush1.msra.mxu0 %v1894
      %1945 = vmatprep.subr.mxu0 0.0
      %1946 = vmatpush1.msra.mxu0 %v1893
      %1947 = vmatprep.subr.mxu0 0.0
      %1948 = vmatpush1.msra.mxu0 %v1892
      %1949 = vmatprep.subr.mxu0 0.0
      %1950 = vmatpush2.msra.mxu0 0.0
      %1951 = vmatprep.subr.mxu0 0.0
      %1952 = vmatpush2.msra.mxu0 0.0
      %1953 = vmatprep.subr.mxu0 0.0
      %1954 = vmatpush2.msra.mxu0 0.0
      %1955 = vmatprep.subr.mxu0 0.0
      %1956 = vmatpush2.msra.mxu0 0.0
      %1957 = vmatprep.subr.mxu0 0.0
      %1958 = vmatpush2.msra.mxu0 0.0
      %1959 = vmatprep.subr.mxu0 0.0
      %1960 = vmatpush2.msra.mxu0 0.0
      %1961 = vmatprep.subr.mxu0 0.0
      %1962 = vmatpush2.msra.mxu0 0.0
      %1963 = vmatprep.subr.mxu0 0.0
      %1964 = vmatpush2.msra.mxu0 0.0
      %1965 = vmatprep.subr.mxu0 0.0
      %1966 = vmatpush2.msra.mxu0 0.0
      %1967 = vmatprep.subr.mxu0 0.0
      %1968 = vmatpush2.msra.mxu0 0.0
      %1969 = vmatprep.subr.mxu0 0.0
      %1970 = vmatpush2.msra.mxu0 0.0
      %1971 = vmatprep.subr.mxu0 0.0
      %1972 = vmatpush2.msra.mxu0 0.0
      %1973 = vmatprep.subr.mxu0 0.0
      %1974 = vmatpush2.msra.mxu0 0.0
      %1975 = vmatprep.subr.mxu0 0.0
      %1976 = vmatpush2.msra.mxu0 0.0
      %1977 = vmatprep.subr.mxu0 0.0
      %1978 = vmatpush2.msra.mxu0 0.0
      %1979 = vmatprep.subr.mxu0 0.0
      %1980 = vmatpush2.msra.mxu0 0.0
      %1981 = vmatprep.mubr.f32.mxu0 0.0
      %1982 = vmatmul.mubr.f32.gmra.mxu0 %v1911
      %v1983 = vpop.f32.mrf.mxu0
      %v1984 = vadd.f32 0.0, %v1983
      %v1985 = vpop.f32.mrf.mxu0
      %1986 = vmatprep.mubr.f32.mxu0 0.0
      %1987 = vmatmul.mubr.f32.gmra.mxu0 %v1913
      %v1988 = vpop.f32.mrf.mxu0
      %v1989 = vadd.f32 0.0, %v1988
      %v1990 = vpop.f32.mrf.mxu0
      %1991 = vmatprep.mubr.f32.mxu0 0.0
      %1992 = vmatmul.mubr.f32.gmra.mxu0 %v1915
      %v1993 = vpop.f32.mrf.mxu0
      %v1994 = vadd.f32 0.0, %v1993
      %v1995 = vpop.f32.mrf.mxu0
      %1996 = vdwg.mxu0
      %v1997 = vadd.f32 %v1888, %v1984
      %v1998 = vadd.f32 %v1889, %v1989
      %v1999 = vadd.f32 %v1890, %v1994
      %v2000 = vlaneseq
      %v2001 = vshrl.u32 %v2000, 7
      %v2002 = vsub.s32 0, %v2001
      %v2003 = vrot.slane %v1252, %v2002
      %v2004 = vadd.f32 %v1997, %v2003
      %v2005 = vadd.f32 %v1998, %v2003
      %v2006 = vadd.f32 %v1999, %v2003
      %v2007 = vmul.f32 %v2004, %v363
      %v2008 = vmul.f32 %v2005, %v364
      %v2009 = vmul.f32 %v2006, %v365
      %v2010 = vld [vmem:[%s5] sm:$0xff]
      %v2011 = vld [vmem:[%s5 + $0x8] sm:$0xff]
      %v2012 = vld [vmem:[%s5 + $0x10] sm:$0xff]
      %v2013 = vld [vmem:[%s5 + $0x18] sm:$0xff]
      %v2014 = vld [vmem:[%s5 + $0x20] sm:$0xff]
      %v2015 = vld [vmem:[%s5 + $0x28] sm:$0xff]
      %v2016 = vld [vmem:[%s5 + $0x30] sm:$0xff]
      %v2017 = vld [vmem:[%s5 + $0x38] sm:$0xff]
      %v2018 = vld [vmem:[%s5 + $0x40] sm:$0xff]
      %v2019 = vld [vmem:[%s5 + $0x48] sm:$0xff]
      %v2020 = vld [vmem:[%s5 + $0x50] sm:$0xff]
      %v2021 = vld [vmem:[%s5 + $0x58] sm:$0xff]
      %v2022 = vld [vmem:[%s5 + $0x60] sm:$0xff]
      %v2023 = vld [vmem:[%s5 + $0x68] sm:$0xff]
      %v2024 = vld [vmem:[%s5 + $0x70] sm:$0xff]
      %v2025 = vld [vmem:[%s5 + $0x78] sm:$0x3f]
      %s2026 = scalar_lea.vmem %s5, 384
      %v2027 = vld [vmem:[%s2026] sm:$0xff]
      %v2028 = vld [vmem:[%s2026 + $0x8] sm:$0xff]
      %v2029 = vld [vmem:[%s2026 + $0x10] sm:$0xff]
      %v2030 = vld [vmem:[%s2026 + $0x18] sm:$0xff]
      %v2031 = vld [vmem:[%s2026 + $0x20] sm:$0xff]
      %v2032 = vld [vmem:[%s2026 + $0x28] sm:$0xff]
      %v2033 = vld [vmem:[%s2026 + $0x30] sm:$0xff]
      %v2034 = vld [vmem:[%s2026 + $0x38] sm:$0xff]
      %v2035 = vld [vmem:[%s2026 + $0x40] sm:$0xff]
      %v2036 = vld [vmem:[%s2026 + $0x48] sm:$0xff]
      %v2037 = vld [vmem:[%s2026 + $0x50] sm:$0xff]
      %v2038 = vld [vmem:[%s2026 + $0x58] sm:$0xff]
      %v2039 = vld [vmem:[%s2026 + $0x60] sm:$0xff]
      %v2040 = vld [vmem:[%s2026 + $0x68] sm:$0xff]
      %v2041 = vld [vmem:[%s2026 + $0x70] sm:$0xff]
      %v2042 = vld [vmem:[%s2026 + $0x78] sm:$0x3f]
      %vm2043 = vcmask 1031168
      %v2045 = vsel %vm2043, %v1249, 0
      %v2048 = vsel %vm2043, %v1250, 0
      %v2051 = vsel %vm489, %v2042, 0
      %2053 = vmatprep.subr.mxu0 0.0
      %2054 = vmatpush1.msra.mxu0 %v2051
      %2055 = vmatprep.subr.mxu0 0.0
      %2056 = vmatpush1.msra.mxu0 %v2041
      %2057 = vmatprep.subr.mxu0 0.0
      %2058 = vmatpush1.msra.mxu0 %v2040
      %2059 = vmatprep.subr.mxu0 0.0
      %2060 = vmatpush1.msra.mxu0 %v2039
      %2061 = vmatprep.subr.mxu0 0.0
      %2062 = vmatpush1.msra.mxu0 %v2038
      %2063 = vmatprep.subr.mxu0 0.0
      %2064 = vmatpush1.msra.mxu0 %v2037
      %2065 = vmatprep.subr.mxu0 0.0
      %2066 = vmatpush1.msra.mxu0 %v2036
      %2067 = vmatprep.subr.mxu0 0.0
      %2068 = vmatpush1.msra.mxu0 %v2035
      %2069 = vmatprep.subr.mxu0 0.0
      %2070 = vmatpush1.msra.mxu0 %v2034
      %2071 = vmatprep.subr.mxu0 0.0
      %2072 = vmatpush1.msra.mxu0 %v2033
      %2073 = vmatprep.subr.mxu0 0.0
      %2074 = vmatpush1.msra.mxu0 %v2032
      %2075 = vmatprep.subr.mxu0 0.0
      %2076 = vmatpush1.msra.mxu0 %v2031
      %2077 = vmatprep.subr.mxu0 0.0
      %2078 = vmatpush1.msra.mxu0 %v2030
      %2079 = vmatprep.subr.mxu0 0.0
      %2080 = vmatpush1.msra.mxu0 %v2029
      %2081 = vmatprep.subr.mxu0 0.0
      %2082 = vmatpush1.msra.mxu0 %v2028
      %2083 = vmatprep.subr.mxu0 0.0
      %2084 = vmatpush1.msra.mxu0 %v2027
      %2085 = vmatprep.subr.mxu0 0.0
      %2086 = vmatpush2.msra.mxu0 0.0
      %2087 = vmatprep.subr.mxu0 0.0
      %2088 = vmatpush2.msra.mxu0 0.0
      %2089 = vmatprep.subr.mxu0 0.0
      %2090 = vmatpush2.msra.mxu0 0.0
      %2091 = vmatprep.subr.mxu0 0.0
      %2092 = vmatpush2.msra.mxu0 0.0
      %2093 = vmatprep.subr.mxu0 0.0
      %2094 = vmatpush2.msra.mxu0 0.0
      %2095 = vmatprep.subr.mxu0 0.0
      %2096 = vmatpush2.msra.mxu0 0.0
      %2097 = vmatprep.subr.mxu0 0.0
      %2098 = vmatpush2.msra.mxu0 0.0
      %2099 = vmatprep.subr.mxu0 0.0
      %2100 = vmatpush2.msra.mxu0 0.0
      %2101 = vmatprep.subr.mxu0 0.0
      %2102 = vmatpush2.msra.mxu0 0.0
      %2103 = vmatprep.subr.mxu0 0.0
      %2104 = vmatpush2.msra.mxu0 0.0
      %2105 = vmatprep.subr.mxu0 0.0
      %2106 = vmatpush2.msra.mxu0 0.0
      %2107 = vmatprep.subr.mxu0 0.0
      %2108 = vmatpush2.msra.mxu0 0.0
      %2109 = vmatprep.subr.mxu0 0.0
      %2110 = vmatpush2.msra.mxu0 0.0
      %2111 = vmatprep.subr.mxu0 0.0
      %2112 = vmatpush2.msra.mxu0 0.0
      %2113 = vmatprep.subr.mxu0 0.0
      %2114 = vmatpush2.msra.mxu0 0.0
      %2115 = vmatprep.subr.mxu0 0.0
      %2116 = vmatpush2.msra.mxu0 0.0
      %2117 = vmatprep.mubr.f32.mxu0 0.0
      %2118 = vmatmul.mubr.f32.gmra.mxu0 %v2045
      %v2119 = vpop.f32.mrf.mxu0
      %v2120 = vadd.f32 0.0, %v2119
      %v2121 = vpop.f32.mrf.mxu0
      %2122 = vmatprep.mubr.f32.mxu0 0.0
      %2123 = vmatmul.mubr.f32.gmra.mxu0 %v2048
      %v2124 = vpop.f32.mrf.mxu0
      %v2125 = vadd.f32 0.0, %v2124
      %v2126 = vpop.f32.mrf.mxu0
      %2127 = vdwg.mxu0
      %v2129 = vsel %vm2043, %v699, 0
      %v2132 = vsel %vm2043, %v700, 0
      %v2135 = vsel %vm489, %v2025, 0
      %2137 = vmatprep.subr.mxu0 0.0
      %2138 = vmatpush1.msra.mxu0 %v2135
      %2139 = vmatprep.subr.mxu0 0.0
      %2140 = vmatpush1.msra.mxu0 %v2024
      %2141 = vmatprep.subr.mxu0 0.0
      %2142 = vmatpush1.msra.mxu0 %v2023
      %2143 = vmatprep.subr.mxu0 0.0
      %2144 = vmatpush1.msra.mxu0 %v2022
      %2145 = vmatprep.subr.mxu0 0.0
      %2146 = vmatpush1.msra.mxu0 %v2021
      %2147 = vmatprep.subr.mxu0 0.0
      %2148 = vmatpush1.msra.mxu0 %v2020
      %2149 = vmatprep.subr.mxu0 0.0
      %2150 = vmatpush1.msra.mxu0 %v2019
      %2151 = vmatprep.subr.mxu0 0.0
      %2152 = vmatpush1.msra.mxu0 %v2018
      %2153 = vmatprep.subr.mxu0 0.0
      %2154 = vmatpush1.msra.mxu0 %v2017
      %2155 = vmatprep.subr.mxu0 0.0
      %2156 = vmatpush1.msra.mxu0 %v2016
      %2157 = vmatprep.subr.mxu0 0.0
      %2158 = vmatpush1.msra.mxu0 %v2015
      %2159 = vmatprep.subr.mxu0 0.0
      %2160 = vmatpush1.msra.mxu0 %v2014
      %2161 = vmatprep.subr.mxu0 0.0
      %2162 = vmatpush1.msra.mxu0 %v2013
      %2163 = vmatprep.subr.mxu0 0.0
      %2164 = vmatpush1.msra.mxu0 %v2012
      %2165 = vmatprep.subr.mxu0 0.0
      %2166 = vmatpush1.msra.mxu0 %v2011
      %2167 = vmatprep.subr.mxu0 0.0
      %2168 = vmatpush1.msra.mxu0 %v2010
      %2169 = vmatprep.subr.mxu0 0.0
      %2170 = vmatpush2.msra.mxu0 0.0
      %2171 = vmatprep.subr.mxu0 0.0
      %2172 = vmatpush2.msra.mxu0 0.0
      %2173 = vmatprep.subr.mxu0 0.0
      %2174 = vmatpush2.msra.mxu0 0.0
      %2175 = vmatprep.subr.mxu0 0.0
      %2176 = vmatpush2.msra.mxu0 0.0
      %2177 = vmatprep.subr.mxu0 0.0
      %2178 = vmatpush2.msra.mxu0 0.0
      %2179 = vmatprep.subr.mxu0 0.0
      %2180 = vmatpush2.msra.mxu0 0.0
      %2181 = vmatprep.subr.mxu0 0.0
      %2182 = vmatpush2.msra.mxu0 0.0
      %2183 = vmatprep.subr.mxu0 0.0
      %2184 = vmatpush2.msra.mxu0 0.0
      %2185 = vmatprep.subr.mxu0 0.0
      %2186 = vmatpush2.msra.mxu0 0.0
      %2187 = vmatprep.subr.mxu0 0.0
      %2188 = vmatpush2.msra.mxu0 0.0
      %2189 = vmatprep.subr.mxu0 0.0
      %2190 = vmatpush2.msra.mxu0 0.0
      %2191 = vmatprep.subr.mxu0 0.0
      %2192 = vmatpush2.msra.mxu0 0.0
      %2193 = vmatprep.subr.mxu0 0.0
      %2194 = vmatpush2.msra.mxu0 0.0
      %2195 = vmatprep.subr.mxu0 0.0
      %2196 = vmatpush2.msra.mxu0 0.0
      %2197 = vmatprep.subr.mxu0 0.0
      %2198 = vmatpush2.msra.mxu0 0.0
      %2199 = vmatprep.subr.mxu0 0.0
      %2200 = vmatpush2.msra.mxu0 0.0
      %2201 = vmatprep.mubr.f32.mxu0 0.0
      %2202 = vmatmul.mubr.f32.gmra.mxu0 %v2129
      %v2203 = vpop.f32.mrf.mxu0
      %v2204 = vadd.f32 %v2120, %v2203
      %v2205 = vpop.f32.mrf.mxu0
      %2206 = vmatprep.mubr.f32.mxu0 0.0
      %2207 = vmatmul.mubr.f32.gmra.mxu0 %v2132
      %v2208 = vpop.f32.mrf.mxu0
      %v2209 = vadd.f32 %v2125, %v2208
      %v2210 = vpop.f32.mrf.mxu0
      %2211 = vdwg.mxu0
      %s2212 = scalar_lea.vmem %s5, 768
      %v2213 = vld [vmem:[%s2212] sm:$0xff]
      %v2214 = vld [vmem:[%s2212 + $0x8] sm:$0xff]
      %v2215 = vld [vmem:[%s2212 + $0x10] sm:$0xff]
      %v2216 = vld [vmem:[%s2212 + $0x18] sm:$0xff]
      %v2217 = vld [vmem:[%s2212 + $0x20] sm:$0xff]
      %v2218 = vld [vmem:[%s2212 + $0x28] sm:$0xff]
      %v2219 = vld [vmem:[%s2212 + $0x30] sm:$0xff]
      %v2220 = vld [vmem:[%s2212 + $0x38] sm:$0xff]
      %v2221 = vld [vmem:[%s2212 + $0x40] sm:$0xff]
      %v2222 = vld [vmem:[%s2212 + $0x48] sm:$0xff]
      %v2223 = vld [vmem:[%s2212 + $0x50] sm:$0xff]
      %v2224 = vld [vmem:[%s2212 + $0x58] sm:$0xff]
      %v2225 = vld [vmem:[%s2212 + $0x60] sm:$0xff]
      %v2226 = vld [vmem:[%s2212 + $0x68] sm:$0xff]
      %v2227 = vld [vmem:[%s2212 + $0x70] sm:$0xff]
      %v2228 = vld [vmem:[%s2212 + $0x78] sm:$0x3f]
      %v2230 = vsel %vm2043, %v2007, 0
      %v2233 = vsel %vm2043, %v2008, 0
      %v2236 = vsel %vm489, %v2228, 0
      %2238 = vmatprep.subr.mxu0 0.0
      %2239 = vmatpush1.msra.mxu0 %v2236
      %2240 = vmatprep.subr.mxu0 0.0
      %2241 = vmatpush1.msra.mxu0 %v2227
      %2242 = vmatprep.subr.mxu0 0.0
      %2243 = vmatpush1.msra.mxu0 %v2226
      %2244 = vmatprep.subr.mxu0 0.0
      %2245 = vmatpush1.msra.mxu0 %v2225
      %2246 = vmatprep.subr.mxu0 0.0
      %2247 = vmatpush1.msra.mxu0 %v2224
      %2248 = vmatprep.subr.mxu0 0.0
      %2249 = vmatpush1.msra.mxu0 %v2223
      %2250 = vmatprep.subr.mxu0 0.0
      %2251 = vmatpush1.msra.mxu0 %v2222
      %2252 = vmatprep.subr.mxu0 0.0
      %2253 = vmatpush1.msra.mxu0 %v2221
      %2254 = vmatprep.subr.mxu0 0.0
      %2255 = vmatpush1.msra.mxu0 %v2220
      %2256 = vmatprep.subr.mxu0 0.0
      %2257 = vmatpush1.msra.mxu0 %v2219
      %2258 = vmatprep.subr.mxu0 0.0
      %2259 = vmatpush1.msra.mxu0 %v2218
      %2260 = vmatprep.subr.mxu0 0.0
      %2261 = vmatpush1.msra.mxu0 %v2217
      %2262 = vmatprep.subr.mxu0 0.0
      %2263 = vmatpush1.msra.mxu0 %v2216
      %2264 = vmatprep.subr.mxu0 0.0
      %2265 = vmatpush1.msra.mxu0 %v2215
      %2266 = vmatprep.subr.mxu0 0.0
      %2267 = vmatpush1.msra.mxu0 %v2214
      %2268 = vmatprep.subr.mxu0 0.0
      %2269 = vmatpush1.msra.mxu0 %v2213
      %2270 = vmatprep.subr.mxu0 0.0
      %2271 = vmatpush2.msra.mxu0 0.0
      %2272 = vmatprep.subr.mxu0 0.0
      %2273 = vmatpush2.msra.mxu0 0.0
      %2274 = vmatprep.subr.mxu0 0.0
      %2275 = vmatpush2.msra.mxu0 0.0
      %2276 = vmatprep.subr.mxu0 0.0
      %2277 = vmatpush2.msra.mxu0 0.0
      %2278 = vmatprep.subr.mxu0 0.0
      %2279 = vmatpush2.msra.mxu0 0.0
      %2280 = vmatprep.subr.mxu0 0.0
      %2281 = vmatpush2.msra.mxu0 0.0
      %2282 = vmatprep.subr.mxu0 0.0
      %2283 = vmatpush2.msra.mxu0 0.0
      %2284 = vmatprep.subr.mxu0 0.0
      %2285 = vmatpush2.msra.mxu0 0.0
      %2286 = vmatprep.subr.mxu0 0.0
      %2287 = vmatpush2.msra.mxu0 0.0
      %2288 = vmatprep.subr.mxu0 0.0
      %2289 = vmatpush2.msra.mxu0 0.0
      %2290 = vmatprep.subr.mxu0 0.0
      %2291 = vmatpush2.msra.mxu0 0.0
      %2292 = vmatprep.subr.mxu0 0.0
      %2293 = vmatpush2.msra.mxu0 0.0
      %2294 = vmatprep.subr.mxu0 0.0
      %2295 = vmatpush2.msra.mxu0 0.0
      %2296 = vmatprep.subr.mxu0 0.0
      %2297 = vmatpush2.msra.mxu0 0.0
      %2298 = vmatprep.subr.mxu0 0.0
      %2299 = vmatpush2.msra.mxu0 0.0
      %2300 = vmatprep.subr.mxu0 0.0
      %2301 = vmatpush2.msra.mxu0 0.0
      %2302 = vmatprep.mubr.f32.mxu0 0.0
      %2303 = vmatmul.mubr.f32.gmra.mxu0 %v2230
      %v2304 = vpop.f32.mrf.mxu0
      %v2305 = vadd.f32 0.0, %v2304
      %v2306 = vpop.f32.mrf.mxu0
      %2307 = vmatprep.mubr.f32.mxu0 0.0
      %2308 = vmatmul.mubr.f32.gmra.mxu0 %v2233
      %v2309 = vpop.f32.mrf.mxu0
      %v2310 = vadd.f32 0.0, %v2309
      %v2311 = vpop.f32.mrf.mxu0
      %2312 = vdwg.mxu0
      %v2313 = vadd.f32 %v2204, %v2305
      %v2314 = vadd.f32 %v2209, %v2310
      %s2315 = scalar_lea.vmem %s5, 128
      %v2316 = vld [vmem:[%s2315] sm:$0xff]
      %v2317 = vld [vmem:[%s2315 + $0x8] sm:$0xff]
      %v2318 = vld [vmem:[%s2315 + $0x10] sm:$0xff]
      %v2319 = vld [vmem:[%s2315 + $0x18] sm:$0xff]
      %v2320 = vld [vmem:[%s2315 + $0x20] sm:$0xff]
      %v2321 = vld [vmem:[%s2315 + $0x28] sm:$0xff]
      %v2322 = vld [vmem:[%s2315 + $0x30] sm:$0xff]
      %v2323 = vld [vmem:[%s2315 + $0x38] sm:$0xff]
      %v2324 = vld [vmem:[%s2315 + $0x40] sm:$0xff]
      %v2325 = vld [vmem:[%s2315 + $0x48] sm:$0xff]
      %v2326 = vld [vmem:[%s2315 + $0x50] sm:$0xff]
      %v2327 = vld [vmem:[%s2315 + $0x58] sm:$0xff]
      %v2328 = vld [vmem:[%s2315 + $0x60] sm:$0xff]
      %v2329 = vld [vmem:[%s2315 + $0x68] sm:$0xff]
      %v2330 = vld [vmem:[%s2315 + $0x70] sm:$0xff]
      %v2331 = vld [vmem:[%s2315 + $0x78] sm:$0x3f]
      %v2333 = vrot.slane %v699, 1
      %v2334 = vrot.slane %v700, 1
      %v2335 = vsel %vm823, %v2333, %v2334
      %v2336 = vrot.slane %v701, 1
      %v2337 = vsel %vm823, %v2334, %v2336
      %v2338 = vsel %vm2043, %v2335, 0
      %v2340 = vsel %vm2043, %v2337, 0
      %v2343 = vsel %vm489, %v2331, 0
      %2345 = vmatprep.subr.mxu0 0.0
      %2346 = vmatpush1.msra.mxu0 %v2343
      %2347 = vmatprep.subr.mxu0 0.0
      %2348 = vmatpush1.msra.mxu0 %v2330
      %2349 = vmatprep.subr.mxu0 0.0
      %2350 = vmatpush1.msra.mxu0 %v2329
      %2351 = vmatprep.subr.mxu0 0.0
      %2352 = vmatpush1.msra.mxu0 %v2328
      %2353 = vmatprep.subr.mxu0 0.0
      %2354 = vmatpush1.msra.mxu0 %v2327
      %2355 = vmatprep.subr.mxu0 0.0
      %2356 = vmatpush1.msra.mxu0 %v2326
      %2357 = vmatprep.subr.mxu0 0.0
      %2358 = vmatpush1.msra.mxu0 %v2325
      %2359 = vmatprep.subr.mxu0 0.0
      %2360 = vmatpush1.msra.mxu0 %v2324
      %2361 = vmatprep.subr.mxu0 0.0
      %2362 = vmatpush1.msra.mxu0 %v2323
      %2363 = vmatprep.subr.mxu0 0.0
      %2364 = vmatpush1.msra.mxu0 %v2322
      %2365 = vmatprep.subr.mxu0 0.0
      %2366 = vmatpush1.msra.mxu0 %v2321
      %2367 = vmatprep.subr.mxu0 0.0
      %2368 = vmatpush1.msra.mxu0 %v2320
      %2369 = vmatprep.subr.mxu0 0.0
      %2370 = vmatpush1.msra.mxu0 %v2319
      %2371 = vmatprep.subr.mxu0 0.0
      %2372 = vmatpush1.msra.mxu0 %v2318
      %2373 = vmatprep.subr.mxu0 0.0
      %2374 = vmatpush1.msra.mxu0 %v2317
      %2375 = vmatprep.subr.mxu0 0.0
      %2376 = vmatpush1.msra.mxu0 %v2316
      %2377 = vmatprep.subr.mxu0 0.0
      %2378 = vmatpush2.msra.mxu0 0.0
      %2379 = vmatprep.subr.mxu0 0.0
      %2380 = vmatpush2.msra.mxu0 0.0
      %2381 = vmatprep.subr.mxu0 0.0
      %2382 = vmatpush2.msra.mxu0 0.0
      %2383 = vmatprep.subr.mxu0 0.0
      %2384 = vmatpush2.msra.mxu0 0.0
      %2385 = vmatprep.subr.mxu0 0.0
      %2386 = vmatpush2.msra.mxu0 0.0
      %2387 = vmatprep.subr.mxu0 0.0
      %2388 = vmatpush2.msra.mxu0 0.0
      %2389 = vmatprep.subr.mxu0 0.0
      %2390 = vmatpush2.msra.mxu0 0.0
      %2391 = vmatprep.subr.mxu0 0.0
      %2392 = vmatpush2.msra.mxu0 0.0
      %2393 = vmatprep.subr.mxu0 0.0
      %2394 = vmatpush2.msra.mxu0 0.0
      %2395 = vmatprep.subr.mxu0 0.0
      %2396 = vmatpush2.msra.mxu0 0.0
      %2397 = vmatprep.subr.mxu0 0.0
      %2398 = vmatpush2.msra.mxu0 0.0
      %2399 = vmatprep.subr.mxu0 0.0
      %2400 = vmatpush2.msra.mxu0 0.0
      %2401 = vmatprep.subr.mxu0 0.0
      %2402 = vmatpush2.msra.mxu0 0.0
      %2403 = vmatprep.subr.mxu0 0.0
      %2404 = vmatpush2.msra.mxu0 0.0
      %2405 = vmatprep.subr.mxu0 0.0
      %2406 = vmatpush2.msra.mxu0 0.0
      %2407 = vmatprep.subr.mxu0 0.0
      %2408 = vmatpush2.msra.mxu0 0.0
      %2409 = vmatprep.mubr.f32.mxu0 0.0
      %2410 = vmatmul.mubr.f32.gmra.mxu0 %v2338
      %v2411 = vpop.f32.mrf.mxu0
      %v2412 = vadd.f32 0.0, %v2411
      %v2413 = vpop.f32.mrf.mxu0
      %2414 = vmatprep.mubr.f32.mxu0 0.0
      %2415 = vmatmul.mubr.f32.gmra.mxu0 %v2340
      %v2416 = vpop.f32.mrf.mxu0
      %v2417 = vadd.f32 0.0, %v2416
      %v2418 = vpop.f32.mrf.mxu0
      %2419 = vdwg.mxu0
      %v2420 = vadd.f32 %v2313, %v2412
      %v2421 = vadd.f32 %v2314, %v2417
      %s2422 = scalar_lea.vmem %s5, 512
      %v2423 = vld [vmem:[%s2422] sm:$0xff]
      %v2424 = vld [vmem:[%s2422 + $0x8] sm:$0xff]
      %v2425 = vld [vmem:[%s2422 + $0x10] sm:$0xff]
      %v2426 = vld [vmem:[%s2422 + $0x18] sm:$0xff]
      %v2427 = vld [vmem:[%s2422 + $0x20] sm:$0xff]
      %v2428 = vld [vmem:[%s2422 + $0x28] sm:$0xff]
      %v2429 = vld [vmem:[%s2422 + $0x30] sm:$0xff]
      %v2430 = vld [vmem:[%s2422 + $0x38] sm:$0xff]
      %v2431 = vld [vmem:[%s2422 + $0x40] sm:$0xff]
      %v2432 = vld [vmem:[%s2422 + $0x48] sm:$0xff]
      %v2433 = vld [vmem:[%s2422 + $0x50] sm:$0xff]
      %v2434 = vld [vmem:[%s2422 + $0x58] sm:$0xff]
      %v2435 = vld [vmem:[%s2422 + $0x60] sm:$0xff]
      %v2436 = vld [vmem:[%s2422 + $0x68] sm:$0xff]
      %v2437 = vld [vmem:[%s2422 + $0x70] sm:$0xff]
      %v2438 = vld [vmem:[%s2422 + $0x78] sm:$0x3f]
      %v2440 = vrot.slane %v1249, 1
      %v2441 = vrot.slane %v1250, 1
      %v2442 = vsel %vm823, %v2440, %v2441
      %v2443 = vrot.slane %v1251, 1
      %v2444 = vsel %vm823, %v2441, %v2443
      %v2445 = vsel %vm2043, %v2442, 0
      %v2447 = vsel %vm2043, %v2444, 0
      %v2450 = vsel %vm489, %v2438, 0
      %2452 = vmatprep.subr.mxu0 0.0
      %2453 = vmatpush1.msra.mxu0 %v2450
      %2454 = vmatprep.subr.mxu0 0.0
      %2455 = vmatpush1.msra.mxu0 %v2437
      %2456 = vmatprep.subr.mxu0 0.0
      %2457 = vmatpush1.msra.mxu0 %v2436
      %2458 = vmatprep.subr.mxu0 0.0
      %2459 = vmatpush1.msra.mxu0 %v2435
      %2460 = vmatprep.subr.mxu0 0.0
      %2461 = vmatpush1.msra.mxu0 %v2434
      %2462 = vmatprep.subr.mxu0 0.0
      %2463 = vmatpush1.msra.mxu0 %v2433
      %2464 = vmatprep.subr.mxu0 0.0
      %2465 = vmatpush1.msra.mxu0 %v2432
      %2466 = vmatprep.subr.mxu0 0.0
      %2467 = vmatpush1.msra.mxu0 %v2431
      %2468 = vmatprep.subr.mxu0 0.0
      %2469 = vmatpush1.msra.mxu0 %v2430
      %2470 = vmatprep.subr.mxu0 0.0
      %2471 = vmatpush1.msra.mxu0 %v2429
      %2472 = vmatprep.subr.mxu0 0.0
      %2473 = vmatpush1.msra.mxu0 %v2428
      %2474 = vmatprep.subr.mxu0 0.0
      %2475 = vmatpush1.msra.mxu0 %v2427
      %2476 = vmatprep.subr.mxu0 0.0
      %2477 = vmatpush1.msra.mxu0 %v2426
      %2478 = vmatprep.subr.mxu0 0.0
      %2479 = vmatpush1.msra.mxu0 %v2425
      %2480 = vmatprep.subr.mxu0 0.0
      %2481 = vmatpush1.msra.mxu0 %v2424
      %2482 = vmatprep.subr.mxu0 0.0
      %2483 = vmatpush1.msra.mxu0 %v2423
      %2484 = vmatprep.subr.mxu0 0.0
      %2485 = vmatpush2.msra.mxu0 0.0
      %2486 = vmatprep.subr.mxu0 0.0
      %2487 = vmatpush2.msra.mxu0 0.0
      %2488 = vmatprep.subr.mxu0 0.0
      %2489 = vmatpush2.msra.mxu0 0.0
      %2490 = vmatprep.subr.mxu0 0.0
      %2491 = vmatpush2.msra.mxu0 0.0
      %2492 = vmatprep.subr.mxu0 0.0
      %2493 = vmatpush2.msra.mxu0 0.0
      %2494 = vmatprep.subr.mxu0 0.0
      %2495 = vmatpush2.msra.mxu0 0.0
      %2496 = vmatprep.subr.mxu0 0.0
      %2497 = vmatpush2.msra.mxu0 0.0
      %2498 = vmatprep.subr.mxu0 0.0
      %2499 = vmatpush2.msra.mxu0 0.0
      %2500 = vmatprep.subr.mxu0 0.0
      %2501 = vmatpush2.msra.mxu0 0.0
      %2502 = vmatprep.subr.mxu0 0.0
      %2503 = vmatpush2.msra.mxu0 0.0
      %2504 = vmatprep.subr.mxu0 0.0
      %2505 = vmatpush2.msra.mxu0 0.0
      %2506 = vmatprep.subr.mxu0 0.0
      %2507 = vmatpush2.msra.mxu0 0.0
      %2508 = vmatprep.subr.mxu0 0.0
      %2509 = vmatpush2.msra.mxu0 0.0
      %2510 = vmatprep.subr.mxu0 0.0
      %2511 = vmatpush2.msra.mxu0 0.0
      %2512 = vmatprep.subr.mxu0 0.0
      %2513 = vmatpush2.msra.mxu0 0.0
      %2514 = vmatprep.subr.mxu0 0.0
      %2515 = vmatpush2.msra.mxu0 0.0
      %2516 = vmatprep.mubr.f32.mxu0 0.0
      %2517 = vmatmul.mubr.f32.gmra.mxu0 %v2445
      %v2518 = vpop.f32.mrf.mxu0
      %v2519 = vadd.f32 0.0, %v2518
      %v2520 = vpop.f32.mrf.mxu0
      %2521 = vmatprep.mubr.f32.mxu0 0.0
      %2522 = vmatmul.mubr.f32.gmra.mxu0 %v2447
      %v2523 = vpop.f32.mrf.mxu0
      %v2524 = vadd.f32 0.0, %v2523
      %v2525 = vpop.f32.mrf.mxu0
      %2526 = vdwg.mxu0
      %v2527 = vadd.f32 %v2420, %v2519
      %v2528 = vadd.f32 %v2421, %v2524
      %s2529 = scalar_lea.vmem %s5, 896
      %v2530 = vld [vmem:[%s2529] sm:$0xff]
      %v2531 = vld [vmem:[%s2529 + $0x8] sm:$0xff]
      %v2532 = vld [vmem:[%s2529 + $0x10] sm:$0xff]
      %v2533 = vld [vmem:[%s2529 + $0x18] sm:$0xff]
      %v2534 = vld [vmem:[%s2529 + $0x20] sm:$0xff]
      %v2535 = vld [vmem:[%s2529 + $0x28] sm:$0xff]
      %v2536 = vld [vmem:[%s2529 + $0x30] sm:$0xff]
      %v2537 = vld [vmem:[%s2529 + $0x38] sm:$0xff]
      %v2538 = vld [vmem:[%s2529 + $0x40] sm:$0xff]
      %v2539 = vld [vmem:[%s2529 + $0x48] sm:$0xff]
      %v2540 = vld [vmem:[%s2529 + $0x50] sm:$0xff]
      %v2541 = vld [vmem:[%s2529 + $0x58] sm:$0xff]
      %v2542 = vld [vmem:[%s2529 + $0x60] sm:$0xff]
      %v2543 = vld [vmem:[%s2529 + $0x68] sm:$0xff]
      %v2544 = vld [vmem:[%s2529 + $0x70] sm:$0xff]
      %v2545 = vld [vmem:[%s2529 + $0x78] sm:$0x3f]
      %v2547 = vrot.slane %v2007, 1
      %v2548 = vrot.slane %v2008, 1
      %v2549 = vsel %vm823, %v2547, %v2548
      %v2550 = vrot.slane %v2009, 1
      %v2551 = vsel %vm823, %v2548, %v2550
      %v2552 = vsel %vm2043, %v2549, 0
      %v2554 = vsel %vm2043, %v2551, 0
      %v2557 = vsel %vm489, %v2545, 0
      %2559 = vmatprep.subr.mxu0 0.0
      %2560 = vmatpush1.msra.mxu0 %v2557
      %2561 = vmatprep.subr.mxu0 0.0
      %2562 = vmatpush1.msra.mxu0 %v2544
      %2563 = vmatprep.subr.mxu0 0.0
      %2564 = vmatpush1.msra.mxu0 %v2543
      %2565 = vmatprep.subr.mxu0 0.0
      %2566 = vmatpush1.msra.mxu0 %v2542
      %2567 = vmatprep.subr.mxu0 0.0
      %2568 = vmatpush1.msra.mxu0 %v2541
      %2569 = vmatprep.subr.mxu0 0.0
      %2570 = vmatpush1.msra.mxu0 %v2540
      %2571 = vmatprep.subr.mxu0 0.0
      %2572 = vmatpush1.msra.mxu0 %v2539
      %2573 = vmatprep.subr.mxu0 0.0
      %2574 = vmatpush1.msra.mxu0 %v2538
      %2575 = vmatprep.subr.mxu0 0.0
      %2576 = vmatpush1.msra.mxu0 %v2537
      %2577 = vmatprep.subr.mxu0 0.0
      %2578 = vmatpush1.msra.mxu0 %v2536
      %2579 = vmatprep.subr.mxu0 0.0
      %2580 = vmatpush1.msra.mxu0 %v2535
      %2581 = vmatprep.subr.mxu0 0.0
      %2582 = vmatpush1.msra.mxu0 %v2534
      %2583 = vmatprep.subr.mxu0 0.0
      %2584 = vmatpush1.msra.mxu0 %v2533
      %2585 = vmatprep.subr.mxu0 0.0
      %2586 = vmatpush1.msra.mxu0 %v2532
      %2587 = vmatprep.subr.mxu0 0.0
      %2588 = vmatpush1.msra.mxu0 %v2531
      %2589 = vmatprep.subr.mxu0 0.0
      %2590 = vmatpush1.msra.mxu0 %v2530
      %2591 = vmatprep.subr.mxu0 0.0
      %2592 = vmatpush2.msra.mxu0 0.0
      %2593 = vmatprep.subr.mxu0 0.0
      %2594 = vmatpush2.msra.mxu0 0.0
      %2595 = vmatprep.subr.mxu0 0.0
      %2596 = vmatpush2.msra.mxu0 0.0
      %2597 = vmatprep.subr.mxu0 0.0
      %2598 = vmatpush2.msra.mxu0 0.0
      %2599 = vmatprep.subr.mxu0 0.0
      %2600 = vmatpush2.msra.mxu0 0.0
      %2601 = vmatprep.subr.mxu0 0.0
      %2602 = vmatpush2.msra.mxu0 0.0
      %2603 = vmatprep.subr.mxu0 0.0
      %2604 = vmatpush2.msra.mxu0 0.0
      %2605 = vmatprep.subr.mxu0 0.0
      %2606 = vmatpush2.msra.mxu0 0.0
      %2607 = vmatprep.subr.mxu0 0.0
      %2608 = vmatpush2.msra.mxu0 0.0
      %2609 = vmatprep.subr.mxu0 0.0
      %2610 = vmatpush2.msra.mxu0 0.0
      %2611 = vmatprep.subr.mxu0 0.0
      %2612 = vmatpush2.msra.mxu0 0.0
      %2613 = vmatprep.subr.mxu0 0.0
      %2614 = vmatpush2.msra.mxu0 0.0
      %2615 = vmatprep.subr.mxu0 0.0
      %2616 = vmatpush2.msra.mxu0 0.0
      %2617 = vmatprep.subr.mxu0 0.0
      %2618 = vmatpush2.msra.mxu0 0.0
      %2619 = vmatprep.subr.mxu0 0.0
      %2620 = vmatpush2.msra.mxu0 0.0
      %2621 = vmatprep.subr.mxu0 0.0
      %2622 = vmatpush2.msra.mxu0 0.0
      %2623 = vmatprep.mubr.f32.mxu0 0.0
      %2624 = vmatmul.mubr.f32.gmra.mxu0 %v2552
      %v2625 = vpop.f32.mrf.mxu0
      %v2626 = vadd.f32 0.0, %v2625
      %v2627 = vpop.f32.mrf.mxu0
      %2628 = vmatprep.mubr.f32.mxu0 0.0
      %2629 = vmatmul.mubr.f32.gmra.mxu0 %v2554
      %v2630 = vpop.f32.mrf.mxu0
      %v2631 = vadd.f32 0.0, %v2630
      %v2632 = vpop.f32.mrf.mxu0
      %2633 = vdwg.mxu0
      %v2634 = vadd.f32 %v2527, %v2626
      %v2635 = vadd.f32 %v2528, %v2631
      %s2636 = scalar_lea.vmem %s5, 256
      %v2637 = vld [vmem:[%s2636] sm:$0xff]
      %v2638 = vld [vmem:[%s2636 + $0x8] sm:$0xff]
      %v2639 = vld [vmem:[%s2636 + $0x10] sm:$0xff]
      %v2640 = vld [vmem:[%s2636 + $0x18] sm:$0xff]
      %v2641 = vld [vmem:[%s2636 + $0x20] sm:$0xff]
      %v2642 = vld [vmem:[%s2636 + $0x28] sm:$0xff]
      %v2643 = vld [vmem:[%s2636 + $0x30] sm:$0xff]
      %v2644 = vld [vmem:[%s2636 + $0x38] sm:$0xff]
      %v2645 = vld [vmem:[%s2636 + $0x40] sm:$0xff]
      %v2646 = vld [vmem:[%s2636 + $0x48] sm:$0xff]
      %v2647 = vld [vmem:[%s2636 + $0x50] sm:$0xff]
      %v2648 = vld [vmem:[%s2636 + $0x58] sm:$0xff]
      %v2649 = vld [vmem:[%s2636 + $0x60] sm:$0xff]
      %v2650 = vld [vmem:[%s2636 + $0x68] sm:$0xff]
      %v2651 = vld [vmem:[%s2636 + $0x70] sm:$0xff]
      %v2652 = vld [vmem:[%s2636 + $0x78] sm:$0x3f]
      %v2653 = vrot.slane %v699, 2
      %v2654 = vrot.slane %v700, 2
      %v2655 = vsel %vm489, %v2653, %v2654
      %v2656 = vrot.slane %v701, 2
      %v2657 = vsel %vm489, %v2654, %v2656
      %v2658 = vsel %vm2043, %v2655, 0
      %v2660 = vsel %vm2043, %v2657, 0
      %v2663 = vsel %vm489, %v2652, 0
      %2665 = vmatprep.subr.mxu0 0.0
      %2666 = vmatpush1.msra.mxu0 %v2663
      %2667 = vmatprep.subr.mxu0 0.0
      %2668 = vmatpush1.msra.mxu0 %v2651
      %2669 = vmatprep.subr.mxu0 0.0
      %2670 = vmatpush1.msra.mxu0 %v2650
      %2671 = vmatprep.subr.mxu0 0.0
      %2672 = vmatpush1.msra.mxu0 %v2649
      %2673 = vmatprep.subr.mxu0 0.0
      %2674 = vmatpush1.msra.mxu0 %v2648
      %2675 = vmatprep.subr.mxu0 0.0
      %2676 = vmatpush1.msra.mxu0 %v2647
      %2677 = vmatprep.subr.mxu0 0.0
      %2678 = vmatpush1.msra.mxu0 %v2646
      %2679 = vmatprep.subr.mxu0 0.0
      %2680 = vmatpush1.msra.mxu0 %v2645
      %2681 = vmatprep.subr.mxu0 0.0
      %2682 = vmatpush1.msra.mxu0 %v2644
      %2683 = vmatprep.subr.mxu0 0.0
      %2684 = vmatpush1.msra.mxu0 %v2643
      %2685 = vmatprep.subr.mxu0 0.0
      %2686 = vmatpush1.msra.mxu0 %v2642
      %2687 = vmatprep.subr.mxu0 0.0
      %2688 = vmatpush1.msra.mxu0 %v2641
      %2689 = vmatprep.subr.mxu0 0.0
      %2690 = vmatpush1.msra.mxu0 %v2640
      %2691 = vmatprep.subr.mxu0 0.0
      %2692 = vmatpush1.msra.mxu0 %v2639
      %2693 = vmatprep.subr.mxu0 0.0
      %2694 = vmatpush1.msra.mxu0 %v2638
      %2695 = vmatprep.subr.mxu0 0.0
      %2696 = vmatpush1.msra.mxu0 %v2637
      %2697 = vmatprep.subr.mxu0 0.0
      %2698 = vmatpush2.msra.mxu0 0.0
      %2699 = vmatprep.subr.mxu0 0.0
      %2700 = vmatpush2.msra.mxu0 0.0
      %2701 = vmatprep.subr.mxu0 0.0
      %2702 = vmatpush2.msra.mxu0 0.0
      %2703 = vmatprep.subr.mxu0 0.0
      %2704 = vmatpush2.msra.mxu0 0.0
      %2705 = vmatprep.subr.mxu0 0.0
      %2706 = vmatpush2.msra.mxu0 0.0
      %2707 = vmatprep.subr.mxu0 0.0
      %2708 = vmatpush2.msra.mxu0 0.0
      %2709 = vmatprep.subr.mxu0 0.0
      %2710 = vmatpush2.msra.mxu0 0.0
      %2711 = vmatprep.subr.mxu0 0.0
      %2712 = vmatpush2.msra.mxu0 0.0
      %2713 = vmatprep.subr.mxu0 0.0
      %2714 = vmatpush2.msra.mxu0 0.0
      %2715 = vmatprep.subr.mxu0 0.0
      %2716 = vmatpush2.msra.mxu0 0.0
      %2717 = vmatprep.subr.mxu0 0.0
      %2718 = vmatpush2.msra.mxu0 0.0
      %2719 = vmatprep.subr.mxu0 0.0
      %2720 = vmatpush2.msra.mxu0 0.0
      %2721 = vmatprep.subr.mxu0 0.0
      %2722 = vmatpush2.msra.mxu0 0.0
      %2723 = vmatprep.subr.mxu0 0.0
      %2724 = vmatpush2.msra.mxu0 0.0
      %2725 = vmatprep.subr.mxu0 0.0
      %2726 = vmatpush2.msra.mxu0 0.0
      %2727 = vmatprep.subr.mxu0 0.0
      %2728 = vmatpush2.msra.mxu0 0.0
      %2729 = vmatprep.mubr.f32.mxu0 0.0
      %2730 = vmatmul.mubr.f32.gmra.mxu0 %v2658
      %v2731 = vpop.f32.mrf.mxu0
      %v2732 = vadd.f32 0.0, %v2731
      %v2733 = vpop.f32.mrf.mxu0
      %2734 = vmatprep.mubr.f32.mxu0 0.0
      %2735 = vmatmul.mubr.f32.gmra.mxu0 %v2660
      %v2736 = vpop.f32.mrf.mxu0
      %v2737 = vadd.f32 0.0, %v2736
      %v2738 = vpop.f32.mrf.mxu0
      %2739 = vdwg.mxu0
      %v2740 = vadd.f32 %v2634, %v2732
      %v2741 = vadd.f32 %v2635, %v2737
      %s2742 = scalar_lea.vmem %s5, 640
      %v2743 = vld [vmem:[%s2742] sm:$0xff]
      %v2744 = vld [vmem:[%s2742 + $0x8] sm:$0xff]
      %v2745 = vld [vmem:[%s2742 + $0x10] sm:$0xff]
      %v2746 = vld [vmem:[%s2742 + $0x18] sm:$0xff]
      %v2747 = vld [vmem:[%s2742 + $0x20] sm:$0xff]
      %v2748 = vld [vmem:[%s2742 + $0x28] sm:$0xff]
      %v2749 = vld [vmem:[%s2742 + $0x30] sm:$0xff]
      %v2750 = vld [vmem:[%s2742 + $0x38] sm:$0xff]
      %v2751 = vld [vmem:[%s2742 + $0x40] sm:$0xff]
      %v2752 = vld [vmem:[%s2742 + $0x48] sm:$0xff]
      %v2753 = vld [vmem:[%s2742 + $0x50] sm:$0xff]
      %v2754 = vld [vmem:[%s2742 + $0x58] sm:$0xff]
      %v2755 = vld [vmem:[%s2742 + $0x60] sm:$0xff]
      %v2756 = vld [vmem:[%s2742 + $0x68] sm:$0xff]
      %v2757 = vld [vmem:[%s2742 + $0x70] sm:$0xff]
      %v2758 = vld [vmem:[%s2742 + $0x78] sm:$0x3f]
      %v2759 = vrot.slane %v1249, 2
      %v2760 = vrot.slane %v1250, 2
      %v2761 = vsel %vm489, %v2759, %v2760
      %v2762 = vrot.slane %v1251, 2
      %v2763 = vsel %vm489, %v2760, %v2762
      %v2764 = vsel %vm2043, %v2761, 0
      %v2766 = vsel %vm2043, %v2763, 0
      %v2769 = vsel %vm489, %v2758, 0
      %2771 = vmatprep.subr.mxu0 0.0
      %2772 = vmatpush1.msra.mxu0 %v2769
      %2773 = vmatprep.subr.mxu0 0.0
      %2774 = vmatpush1.msra.mxu0 %v2757
      %2775 = vmatprep.subr.mxu0 0.0
      %2776 = vmatpush1.msra.mxu0 %v2756
      %2777 = vmatprep.subr.mxu0 0.0
      %2778 = vmatpush1.msra.mxu0 %v2755
      %2779 = vmatprep.subr.mxu0 0.0
      %2780 = vmatpush1.msra.mxu0 %v2754
      %2781 = vmatprep.subr.mxu0 0.0
      %2782 = vmatpush1.msra.mxu0 %v2753
      %2783 = vmatprep.subr.mxu0 0.0
      %2784 = vmatpush1.msra.mxu0 %v2752
      %2785 = vmatprep.subr.mxu0 0.0
      %2786 = vmatpush1.msra.mxu0 %v2751
      %2787 = vmatprep.subr.mxu0 0.0
      %2788 = vmatpush1.msra.mxu0 %v2750
      %2789 = vmatprep.subr.mxu0 0.0
      %2790 = vmatpush1.msra.mxu0 %v2749
      %2791 = vmatprep.subr.mxu0 0.0
      %2792 = vmatpush1.msra.mxu0 %v2748
      %2793 = vmatprep.subr.mxu0 0.0
      %2794 = vmatpush1.msra.mxu0 %v2747
      %2795 = vmatprep.subr.mxu0 0.0
      %2796 = vmatpush1.msra.mxu0 %v2746
      %2797 = vmatprep.subr.mxu0 0.0
      %2798 = vmatpush1.msra.mxu0 %v2745
      %2799 = vmatprep.subr.mxu0 0.0
      %2800 = vmatpush1.msra.mxu0 %v2744
      %2801 = vmatprep.subr.mxu0 0.0
      %2802 = vmatpush1.msra.mxu0 %v2743
      %2803 = vmatprep.subr.mxu0 0.0
      %2804 = vmatpush2.msra.mxu0 0.0
      %2805 = vmatprep.subr.mxu0 0.0
      %2806 = vmatpush2.msra.mxu0 0.0
      %2807 = vmatprep.subr.mxu0 0.0
      %2808 = vmatpush2.msra.mxu0 0.0
      %2809 = vmatprep.subr.mxu0 0.0
      %2810 = vmatpush2.msra.mxu0 0.0
      %2811 = vmatprep.subr.mxu0 0.0
      %2812 = vmatpush2.msra.mxu0 0.0
      %2813 = vmatprep.subr.mxu0 0.0
      %2814 = vmatpush2.msra.mxu0 0.0
      %2815 = vmatprep.subr.mxu0 0.0
      %2816 = vmatpush2.msra.mxu0 0.0
      %2817 = vmatprep.subr.mxu0 0.0
      %2818 = vmatpush2.msra.mxu0 0.0
      %2819 = vmatprep.subr.mxu0 0.0
      %2820 = vmatpush2.msra.mxu0 0.0
      %2821 = vmatprep.subr.mxu0 0.0
      %2822 = vmatpush2.msra.mxu0 0.0
      %2823 = vmatprep.subr.mxu0 0.0
      %2824 = vmatpush2.msra.mxu0 0.0
      %2825 = vmatprep.subr.mxu0 0.0
      %2826 = vmatpush2.msra.mxu0 0.0
      %2827 = vmatprep.subr.mxu0 0.0
      %2828 = vmatpush2.msra.mxu0 0.0
      %2829 = vmatprep.subr.mxu0 0.0
      %2830 = vmatpush2.msra.mxu0 0.0
      %2831 = vmatprep.subr.mxu0 0.0
      %2832 = vmatpush2.msra.mxu0 0.0
      %2833 = vmatprep.subr.mxu0 0.0
      %2834 = vmatpush2.msra.mxu0 0.0
      %2835 = vmatprep.mubr.f32.mxu0 0.0
      %2836 = vmatmul.mubr.f32.gmra.mxu0 %v2764
      %v2837 = vpop.f32.mrf.mxu0
      %v2838 = vadd.f32 0.0, %v2837
      %v2839 = vpop.f32.mrf.mxu0
      %2840 = vmatprep.mubr.f32.mxu0 0.0
      %2841 = vmatmul.mubr.f32.gmra.mxu0 %v2766
      %v2842 = vpop.f32.mrf.mxu0
      %v2843 = vadd.f32 0.0, %v2842
      %v2844 = vpop.f32.mrf.mxu0
      %2845 = vdwg.mxu0
      %v2846 = vadd.f32 %v2740, %v2838
      %v2847 = vadd.f32 %v2741, %v2843
      %s2848 = scalar_lea.vmem %s5, 1024
      %v2849 = vld [vmem:[%s2848] sm:$0xff]
      %v2850 = vld [vmem:[%s2848 + $0x8] sm:$0xff]
      %v2851 = vld [vmem:[%s2848 + $0x10] sm:$0xff]
      %v2852 = vld [vmem:[%s2848 + $0x18] sm:$0xff]
      %v2853 = vld [vmem:[%s2848 + $0x20] sm:$0xff]
      %v2854 = vld [vmem:[%s2848 + $0x28] sm:$0xff]
      %v2855 = vld [vmem:[%s2848 + $0x30] sm:$0xff]
      %v2856 = vld [vmem:[%s2848 + $0x38] sm:$0xff]
      %v2857 = vld [vmem:[%s2848 + $0x40] sm:$0xff]
      %v2858 = vld [vmem:[%s2848 + $0x48] sm:$0xff]
      %v2859 = vld [vmem:[%s2848 + $0x50] sm:$0xff]
      %v2860 = vld [vmem:[%s2848 + $0x58] sm:$0xff]
      %v2861 = vld [vmem:[%s2848 + $0x60] sm:$0xff]
      %v2862 = vld [vmem:[%s2848 + $0x68] sm:$0xff]
      %v2863 = vld [vmem:[%s2848 + $0x70] sm:$0xff]
      %v2864 = vld [vmem:[%s2848 + $0x78] sm:$0x3f]
      %v2865 = vrot.slane %v2007, 2
      %v2866 = vrot.slane %v2008, 2
      %v2867 = vsel %vm489, %v2865, %v2866
      %v2868 = vrot.slane %v2009, 2
      %v2869 = vsel %vm489, %v2866, %v2868
      %v2870 = vsel %vm2043, %v2867, 0
      %v2872 = vsel %vm2043, %v2869, 0
      %v2875 = vsel %vm489, %v2864, 0
      %2877 = vmatprep.subr.mxu0 0.0
      %2878 = vmatpush1.msra.mxu0 %v2875
      %2879 = vmatprep.subr.mxu0 0.0
      %2880 = vmatpush1.msra.mxu0 %v2863
      %2881 = vmatprep.subr.mxu0 0.0
      %2882 = vmatpush1.msra.mxu0 %v2862
      %2883 = vmatprep.subr.mxu0 0.0
      %2884 = vmatpush1.msra.mxu0 %v2861
      %2885 = vmatprep.subr.mxu0 0.0
      %2886 = vmatpush1.msra.mxu0 %v2860
      %2887 = vmatprep.subr.mxu0 0.0
      %2888 = vmatpush1.msra.mxu0 %v2859
      %2889 = vmatprep.subr.mxu0 0.0
      %2890 = vmatpush1.msra.mxu0 %v2858
      %2891 = vmatprep.subr.mxu0 0.0
      %2892 = vmatpush1.msra.mxu0 %v2857
      %2893 = vmatprep.subr.mxu0 0.0
      %2894 = vmatpush1.msra.mxu0 %v2856
      %2895 = vmatprep.subr.mxu0 0.0
      %2896 = vmatpush1.msra.mxu0 %v2855
      %2897 = vmatprep.subr.mxu0 0.0
      %2898 = vmatpush1.msra.mxu0 %v2854
      %2899 = vmatprep.subr.mxu0 0.0
      %2900 = vmatpush1.msra.mxu0 %v2853
      %2901 = vmatprep.subr.mxu0 0.0
      %2902 = vmatpush1.msra.mxu0 %v2852
      %2903 = vmatprep.subr.mxu0 0.0
      %2904 = vmatpush1.msra.mxu0 %v2851
      %2905 = vmatprep.subr.mxu0 0.0
      %2906 = vmatpush1.msra.mxu0 %v2850
      %2907 = vmatprep.subr.mxu0 0.0
      %2908 = vmatpush1.msra.mxu0 %v2849
      %2909 = vmatprep.subr.mxu0 0.0
      %2910 = vmatpush2.msra.mxu0 0.0
      %2911 = vmatprep.subr.mxu0 0.0
      %2912 = vmatpush2.msra.mxu0 0.0
      %2913 = vmatprep.subr.mxu0 0.0
      %2914 = vmatpush2.msra.mxu0 0.0
      %2915 = vmatprep.subr.mxu0 0.0
      %2916 = vmatpush2.msra.mxu0 0.0
      %2917 = vmatprep.subr.mxu0 0.0
      %2918 = vmatpush2.msra.mxu0 0.0
      %2919 = vmatprep.subr.mxu0 0.0
      %2920 = vmatpush2.msra.mxu0 0.0
      %2921 = vmatprep.subr.mxu0 0.0
      %2922 = vmatpush2.msra.mxu0 0.0
      %2923 = vmatprep.subr.mxu0 0.0
      %2924 = vmatpush2.msra.mxu0 0.0
      %2925 = vmatprep.subr.mxu0 0.0
      %2926 = vmatpush2.msra.mxu0 0.0
      %2927 = vmatprep.subr.mxu0 0.0
      %2928 = vmatpush2.msra.mxu0 0.0
      %2929 = vmatprep.subr.mxu0 0.0
      %2930 = vmatpush2.msra.mxu0 0.0
      %2931 = vmatprep.subr.mxu0 0.0
      %2932 = vmatpush2.msra.mxu0 0.0
      %2933 = vmatprep.subr.mxu0 0.0
      %2934 = vmatpush2.msra.mxu0 0.0
      %2935 = vmatprep.subr.mxu0 0.0
      %2936 = vmatpush2.msra.mxu0 0.0
      %2937 = vmatprep.subr.mxu0 0.0
      %2938 = vmatpush2.msra.mxu0 0.0
      %2939 = vmatprep.subr.mxu0 0.0
      %2940 = vmatpush2.msra.mxu0 0.0
      %2941 = vmatprep.mubr.f32.mxu0 0.0
      %2942 = vmatmul.mubr.f32.gmra.mxu0 %v2870
      %v2943 = vpop.f32.mrf.mxu0
      %v2944 = vadd.f32 0.0, %v2943
      %v2945 = vpop.f32.mrf.mxu0
      %2946 = vmatprep.mubr.f32.mxu0 0.0
      %2947 = vmatmul.mubr.f32.gmra.mxu0 %v2872
      %v2948 = vpop.f32.mrf.mxu0
      %v2949 = vadd.f32 0.0, %v2948
      %v2950 = vpop.f32.mrf.mxu0
      %2951 = vdwg.mxu0
      %v2952 = vadd.f32 %v2846, %v2944
      %v2953 = vadd.f32 %v2847, %v2949
      %v2954 = vld [vmem:[%s6] sm:$0x1]
      %v2956 = vlaneseq
      %v2957 = vshrl.u32 %v2956, 7
      %v2958 = vsub.s32 0, %v2957
      %v2959 = vrot.slane %v2954, %v2958
      %v2961 = vadd.f32 %v2952, %v2959
      %v2962 = vadd.f32 %v2953, %v2959
      %vm2963 = vcmask 392192
      %2964 = vst.msk [vmem:[%s278] sm:$0xff] %vm2963, %v2961
      %2965 = vst.msk [vmem:[%s278 + $0x8] sm:$0xff] %vm2963, %v2962
      %p2966 = scmp.lt.s32.totalorder %s18, 1
      %s2967 = scalar_select %p2966, %s18, 1
      %s2968 = smul.addr %s2967, 2
      %s2969 = smul.addr %s2968, 8
      %s2970 = scalar_lea.vmem %s7, %s2969
      // Predicated region
      $region49: #{actc_forward.1} parent=47 // pred_check
        %p2971 = pneg %p188
      $region50: #{actc_forward.1} parent=47 // pred_check_branch
        %2973 = sbr.rel (%p2971) target = $region52
      $region51: #{actc_forward.1} parent=47 // pred_region
        _
      $region52: #{actc_forward.1} parent=47 // pred_fallthru
        _
    $region48: #{actc_forward.1} parent=5 // pred_fallthru
      _
    %p2974 = scmp.le.s32.totalorder 2, %s13
    // Predicated region
    $region53: #{actc_forward.1} parent=5 // pred_check
      %p2975 = pneg %p2974
    $region54: #{actc_forward.1} parent=5 // pred_check_branch
      %2977 = sbr.rel (%p2975) target = $region56
    $region55: #{actc_forward.1} parent=5 // pred_region
      %s2978 = ssub.s32 %s13, 2
      // Predicated region
      $region57: #{actc_forward.1} parent=55 // pred_check
        %p2979 = pneg %p194
      $region58: #{actc_forward.1} parent=55 // pred_check_branch
        %2981 = sbr.rel (%p2979) target = $region60
      $region59: #{actc_forward.1} parent=55 // pred_region
        %p2982 = scmp.lt.s32.totalorder %s19, 1
        %s2983 = scalar_select %p2982, %s19, 1
        %s2984 = smul.addr %s2983, 2
        %s2985 = smul.addr %s2984, 8
        %s2986 = scalar_lea.vmem %s7, %s2985
      $region60: #{actc_forward.1} parent=55 // pred_fallthru
        _
    $region56: #{actc_forward.1} parent=5 // pred_fallthru
      _
  $region6: #{actc_forward.1} parent=0 // loop_footer
    %s17 = sadd.s32 1, %s13
  $region7: #{actc_forward.1} parent=0 // loop_footer_branch
    %12 = sbr.rel target = $region3
  $region8: #{actc_forward.1} parent=0 // loop_exit
    _

</llo_original>
